<compile_context>
chip_gen: v7x
topology: tpu7x:2x2x1
jax: 0.10.0
libtpu: 0.0.40
codegen_flags: <defaults>
</compile_context>

<pallas_src>
import functools

import jax
import jax.numpy as jnp
from jax import lax
from jax.experimental import pallas as pl
from jax.experimental.pallas import tpu as pltpu

BN_EPS = 1e-5            # torch.nn.BatchNorm2d default eps
NORM_EPS = 1e-12         # torch.nn.functional.normalize default eps
VMEM_LIMIT = 32 * 1024 * 1024    # safe on v7x's 64-MiB VMEM; v5e/v6e have headroom


def _ceil_to(n, m):
    return -(-n // m) * m


def _lane_tile(n, max_tile):
    """Largest multiple of 128 that divides n (n itself a 128 multiple) and is <= max_tile."""
    assert n % 128 == 0, n
    t = max(min(n, max_tile) - (min(n, max_tile) % 128), 128)
    while n % t != 0:
        t -= 128
    return t


# ----------------------------------------------------------------------------------
# Kernel pair 1: fused 1x1 conv (channel mix) + BatchNorm2d with batch statistics.
# NCHW layout, lanes = spatial.  Two passes: stats (reduction grid) + apply (parallel).
# ----------------------------------------------------------------------------------
def _conv_stats_kernel(x_ref, w_ref, sum_ref, ssq_ref):
    # x: (1, Cin, TL) bf16 (padded lanes are zero), w: (Cout, Cin) bf16.
    # sum/ssq: (Cout, 1) f32 accumulators resident across the whole grid.
    @pl.when(jnp.logical_and(pl.program_id(0) == 0, pl.program_id(1) == 0))
    def _():
        sum_ref[...] = jnp.zeros_like(sum_ref)
        ssq_ref[...] = jnp.zeros_like(ssq_ref)

    y = jnp.dot(w_ref[...], x_ref[0], preferred_element_type=jnp.float32)   # (Cout, TL)
    sum_ref[...] += jnp.sum(y, axis=1, keepdims=True)
    ssq_ref[...] += jnp.sum(y * y, axis=1, keepdims=True)


def _conv_apply_kernel(x_ref, w_ref, scale_ref, shift_ref, o_ref, *, valid_cols, tl):
    y = jnp.dot(w_ref[...], x_ref[0], preferred_element_type=jnp.float32)   # (Cout, TL)
    out = y * scale_ref[...] + shift_ref[...]
    if valid_cols is not None:
        # Zero the padded spatial lanes so the downstream gram / mix stay exact.
        col = pl.program_id(1) * tl + lax.broadcasted_iota(jnp.int32, out.shape, 1)
        out = jnp.where(col < valid_cols, out, 0.0)
    o_ref[0] = out.astype(o_ref.dtype)


def conv1x1_bn_nchw(x3, w, gamma, beta, *, valid_hw=None, out_dtype=jnp.bfloat16,
                    max_lane_tile=8192):
    """1x1 conv (bias-free) + BatchNorm2d (training-mode batch statistics), NCHW layout.

    x3: (B, Cin, HW).  Returns (B, Cout, HWp) with HWp = ceil128(HW); padded lanes zero.
    valid_hw: number of real spatial positions if x3 is already lane-padded (BN divisor).
    """
    b, cin, hw = x3.shape
    cout = w.shape[0]
    valid = hw if valid_hw is None else valid_hw
    hwp = _ceil_to(hw, 128)

    xb = x3.astype(jnp.bfloat16)                       # bf16 streaming (perf review)
    if hwp != hw:
        xb = jnp.pad(xb, ((0, 0), (0, 0), (0, hwp - hw)))
    wb = w.astype(jnp.bfloat16)

    tl = _lane_tile(hwp, max_lane_tile)
    nt = hwp // tl
    grid = (b, nt)

    if b * nt >= 3:
        x_spec = pl.BlockSpec((1, cin, tl), lambda i, t: (i, 0, t),
                              pipeline_mode=pl.Buffered(3))
    else:
        x_spec = pl.BlockSpec((1, cin, tl), lambda i, t: (i, 0, t))
    w_spec = pl.BlockSpec((cout, cin), lambda i, t: (0, 0))
    c_spec = pl.BlockSpec((cout, 1), lambda i, t: (0, 0))      # per-channel columns

    s, q = pl.pallas_call(
        _conv_stats_kernel,
        out_shape=(jax.ShapeDtypeStruct((cout, 1), jnp.float32),
                   jax.ShapeDtypeStruct((cout, 1), jnp.float32)),
        grid=grid,
        in_specs=[x_spec, w_spec],
        out_specs=(c_spec, c_spec),
        compiler_params=pltpu.CompilerParams(
            dimension_semantics=("arbitrary", "arbitrary"),     # reduction into (Cout,1)
            vmem_limit_bytes=VMEM_LIMIT),
    )(xb, wb)

    # Tiny per-channel BN affine folded ONCE in plain JAX (not redone per tile).
    inv_n = 1.0 / float(b * valid)                    # true BatchNorm divisor over (N,H,W)
    mean = s * inv_n
    var = q * inv_n - mean * mean                     # biased variance (torch train mode)
    scale = gamma.reshape(cout, 1) * lax.rsqrt(var + BN_EPS)
    shift = beta.reshape(cout, 1) - mean * scale

    valid_cols = valid if valid < hwp else None
    return pl.pallas_call(
        functools.partial(_conv_apply_kernel, valid_cols=valid_cols, tl=tl),
        out_shape=jax.ShapeDtypeStruct((b, cout, hwp), out_dtype),
        grid=grid,
        in_specs=[x_spec, w_spec, c_spec, c_spec],
        out_specs=pl.BlockSpec((1, cout, tl), lambda i, t: (i, 0, t)),
        compiler_params=pltpu.CompilerParams(
            dimension_semantics=("parallel", "parallel"),       # independent tiles (2 TCs)
            vmem_limit_bytes=VMEM_LIMIT),
    )(xb, wb, scale, shift)


# ----------------------------------------------------------------------------------
# Kernel 2: Gram matrix A = f @ f^T, streaming the huge D axis (bf16 in, f32 acc).
# ----------------------------------------------------------------------------------
def _gram_kernel(f_ref, a_ref):
    @pl.when(pl.program_id(0) == 0)
    def _():
        a_ref[...] = jnp.zeros_like(a_ref)
    f = f_ref[...]                                              # (Bp, TD) bf16
    a_ref[...] += lax.dot_general(f, f, (((1,), (1,)), ((), ())),
                                  preferred_element_type=jnp.float32)


def _gram_split_kernel(f_ref, a_ref):
    @pl.when(pl.program_id(1) == 0)
    def _():
        a_ref[...] = jnp.zeros_like(a_ref)
    f = f_ref[...]
    a_ref[0] += lax.dot_general(f, f, (((1,), (1,)), ((), ())),
                                preferred_element_type=jnp.float32)


def gram(f, max_lane_tile=4096, core_split=2):
    """f: (Bp, D) bf16 -> f @ f.T (f32); D streamed through a reduction grid.

    When the reduction has >= core_split tiles, a leading "parallel" axis shards it
    across the two v7x TensorCores (each accumulates its own partial); the tiny
    partial sum is done in plain JAX.  Harmless on single-core v5e/v6e.
    """
    bp, d = f.shape
    td = _lane_tile(d, max_lane_tile)
    nt = d // td

    def f_spec(index_map, steps):
        if steps >= 3:
            return pl.BlockSpec((bp, td), index_map, pipeline_mode=pl.Buffered(3))
        return pl.BlockSpec((bp, td), index_map)

    if core_split > 1 and nt >= core_split and nt % core_split == 0:
        njt = nt // core_split
        partial = pl.pallas_call(
            _gram_split_kernel,
            out_shape=jax.ShapeDtypeStruct((core_split, bp, bp), jnp.float32),
            grid=(core_split, njt),
            in_specs=[f_spec(lambda c, j: (0, c * njt + j), njt)],
            out_specs=pl.BlockSpec((1, bp, bp), lambda c, j: (c, 0, 0)),
            compiler_params=pltpu.CompilerParams(
                dimension_semantics=("parallel", "arbitrary"),
                vmem_limit_bytes=VMEM_LIMIT),
        )(f)
        return jnp.sum(partial, axis=0)

    return pl.pallas_call(
        _gram_kernel,
        out_shape=jax.ShapeDtypeStruct((bp, bp), jnp.float32),
        grid=(nt,),
        in_specs=[f_spec(lambda j: (0, j), nt)],
        out_specs=pl.BlockSpec((bp, bp), lambda j: (0, 0)),
        compiler_params=pltpu.CompilerParams(
            dimension_semantics=("arbitrary",),
            vmem_limit_bytes=VMEM_LIMIT),
    )(f)


# ----------------------------------------------------------------------------------
# Kernel 3: g = M @ f with the output D axis tiled as a parallel grid (bf16 in/out).
# ----------------------------------------------------------------------------------
def _mix_kernel(m_ref, f_ref, g_ref):
    g_ref[...] = jnp.dot(m_ref[...], f_ref[...],
                         preferred_element_type=jnp.float32).astype(g_ref.dtype)


def mix(m, f, max_lane_tile=4096):
    """m: (Bp, Bp) bf16, f: (Bp, D) bf16 -> (Bp, D) bf16 (f32 MXU accumulation)."""
    bp, d = f.shape
    td = _lane_tile(d, max_lane_tile)
    nt = d // td
    if nt >= 3:
        f_spec = pl.BlockSpec((bp, td), lambda j: (0, j), pipeline_mode=pl.Buffered(3))
    else:
        f_spec = pl.BlockSpec((bp, td), lambda j: (0, j))
    return pl.pallas_call(
        _mix_kernel,
        out_shape=jax.ShapeDtypeStruct((bp, d), jnp.bfloat16),
        grid=(nt,),
        in_specs=[pl.BlockSpec((bp, bp), lambda j: (0, 0)), f_spec],
        out_specs=pl.BlockSpec((bp, td), lambda j: (0, j)),
        compiler_params=pltpu.CompilerParams(
            dimension_semantics=("parallel",),
            vmem_limit_bytes=VMEM_LIMIT),
    )(m, f)


# ----------------------------------------------------------------------------------
# Parameters / glue
# ----------------------------------------------------------------------------------
def init_params(key, in_channels, out_channels):
    ks = jax.random.split(key, 12)
    n = lambda k, shp: 0.1 * jax.random.normal(k, shp, jnp.float32)
    return {
        # conv weights stored as (Cout_conv, Cin_conv) == torch weight[:, :, 0, 0]
        "w_low": n(ks[0], (out_channels, in_channels)),
        "w_super": n(ks[1], (out_channels, in_channels)),
        "w_to_low": n(ks[2], (in_channels, out_channels)),
        "w_to_super": n(ks[3], (in_channels, out_channels)),
        "gamma_low": 1.0 + n(ks[4], (out_channels,)),
        "beta_low": n(ks[5], (out_channels,)),
        "gamma_super": 1.0 + n(ks[6], (out_channels,)),
        "beta_super": n(ks[7], (out_channels,)),
        "gamma_to_low": 1.0 + n(ks[8], (in_channels,)),
        "beta_to_low": n(ks[9], (in_channels,)),
        "gamma_to_super": 1.0 + n(ks[10], (in_channels,)),
        "beta_to_super": n(ks[11], (in_channels,)),
    }


def _rownorm(x):                      # F.normalize(x, dim=1)
    n = jnp.sqrt(jnp.sum(x * x, axis=1, keepdims=True))
    return x / jnp.maximum(n, NORM_EPS)


def ssi_forward(f_low, f_super, params):
    b, cin, hl, wl = f_low.shape
    _, _, hs, ws = f_super.shape
    f_low_shape, f_super_shape = f_low.shape, f_super.shape
    cout = params["w_low"].shape[0]
    hw_l, hw_s = hl * wl, hs * ws
    hwp_l, hwp_s = _ceil_to(hw_l, 128), _ceil_to(hw_s, 128)

    # Stage 1: branch convs + BN (bf16 streaming; padded spatial lanes masked to zero).
    fl3 = conv1x1_bn_nchw(f_low.reshape(b, cin, hw_l), params["w_low"],
                          params["gamma_low"], params["beta_low"])      # (B,Cout,HWp_l) bf16
    fs3 = conv1x1_bn_nchw(f_super.reshape(b, cin, hw_s), params["w_super"],
                          params["gamma_super"], params["beta_super"])  # (B,Cout,HWp_s) bf16

    # NCHW flatten == torch .view(bsz, -1) on the lane-padded layout (free reshape,
    # zero columns are inert).  Batch padded to 16 rows for bf16 sublane packing;
    # padded rows stay zero through every eps-guarded normalization below.
    dl, ds = cout * hwp_l, cout * hwp_s
    bp = max(16, _ceil_to(b, 16))
    fl = jnp.pad(fl3.reshape(b, dl), ((0, bp - b), (0, 0)))
    fs = jnp.pad(fs3.reshape(b, ds), ((0, bp - b), (0, 0)))

    # Gram matrices (f32), big D streamed; reduction sharded across the 2 v7x cores.
    gl_raw = gram(fl)                 # fl @ fl.T  (Bp, Bp)
    gs_raw = gram(fs)                 # fs @ fs.T

    # Tiny (Bp x Bp) affinity chain in plain JAX: the cross matmul is computed once,
    # the reverse mix matrix is the row-normalized transpose of the same product.
    a_low = _rownorm(gl_raw)
    a_sup = _rownorm(gs_raw)
    m_pre = jnp.dot(a_low, a_sup.T, precision=lax.Precision.HIGHEST)
    m_s2l = _rownorm(m_pre)           # normalize(A_low   @ A_super^T)
    m_l2s = _rownorm(m_pre.T)         # normalize(A_super @ A_low^T)

    # Stage 2: g = M @ f (bf16 in/out), then 1x1 conv back to in_channels + BN.
    g_low = mix(m_s2l.astype(jnp.bfloat16), fs)[:b].reshape(b, cout, hwp_s)
    g_sup = mix(m_l2s.astype(jnp.bfloat16), fl)[:b].reshape(b, cout, hwp_l)

    f_to_low = conv1x1_bn_nchw(g_low, params["w_to_low"],
                               params["gamma_to_low"], params["beta_to_low"],
                               valid_hw=hw_s, out_dtype=jnp.float32)[:, :, :hw_s]
    f_to_low = f_to_low.reshape(b, cin, hs, ws)
    f_to_super = conv1x1_bn_nchw(g_sup, params["w_to_super"],
                                 params["gamma_to_super"], params["beta_to_super"],
                                 valid_hw=hw_l, out_dtype=jnp.float32)[:, :, :hw_l]
    f_to_super = f_to_super.reshape(b, cin, hl, wl)

    # adjust_resolution (bilinear, ~ F.interpolate(align_corners=False)).
    if f_to_low.shape != f_low_shape or f_to_super.shape != f_super_shape:
        f_to_low = jax.image.resize(f_to_low, f_low_shape, method="bilinear",
                                    antialias=False)
        f_to_super = jax.image.resize(f_to_super, f_super_shape, method="bilinear",
                                      antialias=False)

    return (f_to_low, f_to_super, a_low[:b, :b], a_sup[:b, :b],
            m_s2l[:b, :b], m_l2s[:b, :b])


# ----------------------------------------------------------------------------------
# Pure-JAX reference (sanity check only)
# ----------------------------------------------------------------------------------
def ssi_reference(f_low, f_super, params):
    def conv_bn(x, w, g, bta):
        y = jnp.einsum("oc,bchw->bohw", w, x)
        mean = jnp.mean(y, axis=(0, 2, 3), keepdims=True)
        var = jnp.mean((y - mean) ** 2, axis=(0, 2, 3), keepdims=True)
        return ((y - mean) / jnp.sqrt(var + BN_EPS) * g.reshape(1, -1, 1, 1)
                + bta.reshape(1, -1, 1, 1))

    def l2n(x):
        return x / jnp.maximum(jnp.linalg.norm(x, axis=1, keepdims=True), NORM_EPS)

    b = f_low.shape[0]
    fls, fss = f_low.shape, f_super.shape
    fl = conv_bn(f_low, params["w_low"], params["gamma_low"], params["beta_low"]).reshape(b, -1)
    fs = conv_bn(f_super, params["w_super"], params["gamma_super"], params["beta_super"]).reshape(b, -1)
    A_low = l2n(fl @ fl.T)
    A_super = l2n(fs @ fs.T)
    M_s2l = l2n(A_low @ A_super.T)
    M_l2s = l2n(A_super @ A_low.T)
    f_to_low = conv_bn((M_s2l @ fs).reshape(fss), params["w_to_low"],
                       params["gamma_to_low"], params["beta_to_low"])
    f_to_super = conv_bn((M_l2s @ fl).reshape(fls), params["w_to_super"],
                         params["gamma_to_super"], params["beta_to_super"])
    if f_to_low.shape != fls or f_to_super.shape != fss:
        f_to_low = jax.image.resize(f_to_low, fls, method="bilinear", antialias=False)
        f_to_super = jax.image.resize(f_to_super, fss, method="bilinear", antialias=False)
    return f_to_low, f_to_super, A_low, A_super, M_s2l, M_l2s


if __name__ == "__main__":
    key = jax.random.PRNGKey(0)
    k_low, k_sup, k_par = jax.random.split(key, 3)

    # SSI's own .view(f_super_shape) / conv_to_* wiring only type-checks when
    # in_channels == out_channels.  Spatial sizes chosen so H*W is NOT a multiple of
    # 128 (exercises the lane-pad + mask path) and D = C*H*W spans multiple gram
    # tiles (exercises the streamed reduction + 2-core split).
    B, C_IN, C_OUT = 2, 8, 8
    f_low = jax.random.normal(k_low, (B, C_IN, 24, 24), jnp.float32)    # low-res branch
    f_super = jax.random.normal(k_sup, (B, C_IN, 12, 12), jnp.float32)  # super branch
    params = init_params(k_par, C_IN, C_OUT)

    outs = jax.jit(ssi_forward)(f_low, f_super, params)
    outs = jax.block_until_ready(outs)

    with jax.default_matmul_precision("highest"):
        refs = ssi_reference(f_low, f_super, params)

    names = ("f_to_low", "f_to_super", "A_low", "A_super", "M_super2low", "M_low2super")
    for name, o, r in zip(names, outs, refs):
        assert o.shape == r.shape, (name, o.shape, r.shape)
        err = float(jnp.max(jnp.abs(o - r)))
        # bf16-streamed inputs / weights / intermediates (per perf review) vs an
        # all-f32 reference -> 2e-2 comfortably covers the extra rounding.
        assert jnp.allclose(o, r, atol=2e-2, rtol=2e-2), (name, err)

    print("KERNEL_OK")
</pallas_src>

<mosaic_0001>
module attributes {stable_mosaic.version = 11 : i64} {
  func.func @_conv_stats_kernel(%arg0: i32, %arg1: i32, %arg2: memref<1x8x256xbf16, #tpu.memory_space<vmem>>, %arg3: memref<8x8xbf16, #tpu.memory_space<vmem>>, %arg4: memref<8x1xf32, #tpu.memory_space<vmem>>, %arg5: memref<8x1xf32, #tpu.memory_space<vmem>>) attributes {dimension_semantics = [#tpu.dimension_semantics<arbitrary>, #tpu.dimension_semantics<arbitrary>], iteration_bounds = array<i64: 2, 1>, scalar_prefetch = 0 : i64, scratch_operands = 0 : i64, tpu.core_type = #tpu.core_type<tc>, window_params = [{transform_indices = @transform_0, window_bounds = array<i64: 1, 8, 256>}, {pipeline_mode = #tpu.pipeline_mode<synchronous>, transform_indices = @transform_1, window_bounds = array<i64: 8, 8>}, {pipeline_mode = #tpu.pipeline_mode<synchronous>, transform_indices = @transform_2, window_bounds = array<i64: 8, 1>}, {pipeline_mode = #tpu.pipeline_mode<synchronous>, transform_indices = @transform_3, window_bounds = array<i64: 8, 1>}]} {
    %c0_i32 = arith.constant 0 : i32
    %0 = arith.cmpi eq, %arg0, %c0_i32 : i32
    %c0_i32_0 = arith.constant 0 : i32
    %1 = arith.cmpi eq, %arg1, %c0_i32_0 : i32
    %2 = arith.andi %0, %1 : i1
    %3 = arith.extui %2 : i1 to i32
    %c0_i32_1 = arith.constant 0 : i32
    %4 = arith.cmpi ne, %3, %c0_i32_1 : i32
    scf.if %4 {
      %cst_16 = arith.constant 0.000000e+00 : f32
      %20 = vector.broadcast %cst_16 : f32 to vector<8x1xf32>
      %c0_17 = arith.constant 0 : index
      %c0_18 = arith.constant 0 : index
      %21 = vector.load %arg4[%c0_17, %c0_18] : memref<8x1xf32, #tpu.memory_space<vmem>>, vector<8x1xf32>
      tpu.vector_store %arg4[%c0_17, %c0_18], %20 {strides = array<i32>} : memref<8x1xf32, #tpu.memory_space<vmem>>, vector<8x1xf32>,
      %cst_19 = arith.constant 0.000000e+00 : f32
      %22 = vector.broadcast %cst_19 : f32 to vector<8x1xf32>
      %c0_20 = arith.constant 0 : index
      %c0_21 = arith.constant 0 : index
      %23 = vector.load %arg5[%c0_20, %c0_21] : memref<8x1xf32, #tpu.memory_space<vmem>>, vector<8x1xf32>
      tpu.vector_store %arg5[%c0_20, %c0_21], %22 {strides = array<i32>} : memref<8x1xf32, #tpu.memory_space<vmem>>, vector<8x1xf32>,
    } else {
    }
    %c0 = arith.constant 0 : index
    %c0_2 = arith.constant 0 : index
    %5 = vector.load %arg3[%c0, %c0_2] : memref<8x8xbf16, #tpu.memory_space<vmem>>, vector<8x8xbf16>
    %c0_3 = arith.constant 0 : index
    %c0_4 = arith.constant 0 : index
    %c0_5 = arith.constant 0 : index
    %6 = vector.load %arg2[%c0_3, %c0_4, %c0_5] : memref<1x8x256xbf16, #tpu.memory_space<vmem>>, vector<1x8x256xbf16>
    %7 = vector.shape_cast %6 : vector<1x8x256xbf16> to vector<8x256xbf16>
    %cst = arith.constant dense<0.000000e+00> : vector<8x256xf32>
    %8 = tpu.matmul %5, %7, %cst {dimension_numbers = #tpu.dot_dimension_numbers<[1], [0], [0], [1], [0, 0, 1, 1], [], []>} : vector<8x8xbf16>, vector<8x256xbf16>, vector<8x256xf32> -> vector<8x256xf32>
    %c0_6 = arith.constant 0 : index
    %c0_7 = arith.constant 0 : index
    %9 = vector.load %arg4[%c0_6, %c0_7] : memref<8x1xf32, #tpu.memory_space<vmem>>, vector<8x1xf32>
    %cst_8 = arith.constant dense<0.000000e+00> : vector<8xf32>
    %10 = vector.multi_reduction <add>, %8, %cst_8 [1] : vector<8x256xf32> to vector<8xf32>
    %11 = vector.shape_cast %10 : vector<8xf32> to vector<8x1xf32>
    %12 = arith.addf %9, %11 : vector<8x1xf32>
    %c0_9 = arith.constant 0 : index
    %c0_10 = arith.constant 0 : index
    %13 = vector.load %arg4[%c0_9, %c0_10] : memref<8x1xf32, #tpu.memory_space<vmem>>, vector<8x1xf32>
    tpu.vector_store %arg4[%c0_9, %c0_10], %12 {strides = array<i32>} : memref<8x1xf32, #tpu.memory_space<vmem>>, vector<8x1xf32>,
    %c0_11 = arith.constant 0 : index
    %c0_12 = arith.constant 0 : index
    %14 = vector.load %arg5[%c0_11, %c0_12] : memref<8x1xf32, #tpu.memory_space<vmem>>, vector<8x1xf32>
    %15 = arith.mulf %8, %8 : vector<8x256xf32>
    %cst_13 = arith.constant dense<0.000000e+00> : vector<8xf32>
    %16 = vector.multi_reduction <add>, %15, %cst_13 [1] : vector<8x256xf32> to vector<8xf32>
    %17 = vector.shape_cast %16 : vector<8xf32> to vector<8x1xf32>
    %18 = arith.addf %14, %17 : vector<8x1xf32>
    %c0_14 = arith.constant 0 : index
    %c0_15 = arith.constant 0 : index
    %19 = vector.load %arg5[%c0_14, %c0_15] : memref<8x1xf32, #tpu.memory_space<vmem>>, vector<8x1xf32>
    tpu.vector_store %arg5[%c0_14, %c0_15], %18 {strides = array<i32>} : memref<8x1xf32, #tpu.memory_space<vmem>>, vector<8x1xf32>,
    return
  }
  func.func @transform_0(%arg0: i32, %arg1: i32) -> (i32, i32, i32) {
    %c0_i32 = arith.constant 0 : i32
    %c0_i32_0 = arith.constant 0 : i32
    return %arg0, %c0_i32, %arg1 : i32, i32, i32
  }
  func.func @transform_1(%arg0: i32, %arg1: i32) -> (i32, i32) {
    %c0_i32 = arith.constant 0 : i32
    %c0_i32_0 = arith.constant 0 : i32
    %c0_i32_1 = arith.constant 0 : i32
    return %c0_i32, %c0_i32_0 : i32, i32
  }
  func.func @transform_2(%arg0: i32, %arg1: i32) -> (i32, i32) {
    %c0_i32 = arith.constant 0 : i32
    %c0_i32_0 = arith.constant 0 : i32
    %c0_i32_1 = arith.constant 0 : i32
    return %c0_i32, %c0_i32_0 : i32, i32
  }
  func.func @transform_3(%arg0: i32, %arg1: i32) -> (i32, i32) {
    %c0_i32 = arith.constant 0 : i32
    %c0_i32_0 = arith.constant 0 : i32
    %c0_i32_1 = arith.constant 0 : i32
    return %c0_i32, %c0_i32_0 : i32, i32
  }
}

module attributes {stable_mosaic.version = 11 : i64} {
  func.func @_conv_apply_kernel(%arg0: i32, %arg1: i32, %arg2: memref<1x8x256xbf16, #tpu.memory_space<vmem>>, %arg3: memref<8x8xbf16, #tpu.memory_space<vmem>>, %arg4: memref<8x1xf32, #tpu.memory_space<vmem>>, %arg5: memref<8x1xf32, #tpu.memory_space<vmem>>, %arg6: memref<1x8x256xbf16, #tpu.memory_space<vmem>>) attributes {dimension_semantics = [#tpu.dimension_semantics<parallel>, #tpu.dimension_semantics<parallel>], iteration_bounds = array<i64: 2, 1>, scalar_prefetch = 0 : i64, scratch_operands = 0 : i64, tpu.core_type = #tpu.core_type<tc>, window_params = [{transform_indices = @transform_0, window_bounds = array<i64: 1, 8, 256>}, {pipeline_mode = #tpu.pipeline_mode<synchronous>, transform_indices = @transform_1, window_bounds = array<i64: 8, 8>}, {pipeline_mode = #tpu.pipeline_mode<synchronous>, transform_indices = @transform_2, window_bounds = array<i64: 8, 1>}, {pipeline_mode = #tpu.pipeline_mode<synchronous>, transform_indices = @transform_3, window_bounds = array<i64: 8, 1>}, {transform_indices = @transform_4, window_bounds = array<i64: 1, 8, 256>}]} {
    %c0 = arith.constant 0 : index
    %c0_0 = arith.constant 0 : index
    %0 = vector.load %arg3[%c0, %c0_0] : memref<8x8xbf16, #tpu.memory_space<vmem>>, vector<8x8xbf16>
    %c0_1 = arith.constant 0 : index
    %c0_2 = arith.constant 0 : index
    %c0_3 = arith.constant 0 : index
    %1 = vector.load %arg2[%c0_1, %c0_2, %c0_3] : memref<1x8x256xbf16, #tpu.memory_space<vmem>>, vector<1x8x256xbf16>
    %2 = vector.shape_cast %1 : vector<1x8x256xbf16> to vector<8x256xbf16>
    %cst = arith.constant dense<0.000000e+00> : vector<8x256xf32>
    %3 = tpu.matmul %0, %2, %cst {dimension_numbers = #tpu.dot_dimension_numbers<[1], [0], [0], [1], [0, 0, 1, 1], [], []>} : vector<8x8xbf16>, vector<8x256xbf16>, vector<8x256xf32> -> vector<8x256xf32>
    %c0_4 = arith.constant 0 : index
    %c0_5 = arith.constant 0 : index
    %4 = vector.load %arg4[%c0_4, %c0_5] : memref<8x1xf32, #tpu.memory_space<vmem>>, vector<8x1xf32>
    %5 = vector.broadcast %4 : vector<8x1xf32> to vector<8x256xf32>
    %6 = arith.mulf %3, %5 : vector<8x256xf32>
    %c0_6 = arith.constant 0 : index
    %c0_7 = arith.constant 0 : index
    %7 = vector.load %arg5[%c0_6, %c0_7] : memref<8x1xf32, #tpu.memory_space<vmem>>, vector<8x1xf32>
    %8 = vector.broadcast %7 : vector<8x1xf32> to vector<8x256xf32>
    %9 = arith.addf %6, %8 : vector<8x256xf32>
    %c256_i32 = arith.constant 256 : i32
    %10 = arith.muli %arg1, %c256_i32 : i32
    %11 = tpu.iota {dimensions = array<i32: 1>} : vector<8x256xi32>
    %12 = vector.broadcast %10 : i32 to vector<8x256xi32>
    %13 = arith.addi %12, %11 : vector<8x256xi32>
    %c144_i32 = arith.constant 144 : i32
    %14 = vector.broadcast %c144_i32 : i32 to vector<8x256xi32>
    %15 = arith.cmpi slt, %13, %14 : vector<8x256xi32>
    %cst_8 = arith.constant 0.000000e+00 : f32
    %16 = vector.broadcast %cst_8 : f32 to vector<8x256xf32>
    %17 = arith.select %15, %9, %16 : vector<8x256xi1>, vector<8x256xf32>
    %18 = arith.truncf %17 : vector<8x256xf32> to vector<8x256xbf16>
    %c0_9 = arith.constant 0 : index
    %c0_10 = arith.constant 0 : index
    %c0_11 = arith.constant 0 : index
    %19 = vector.load %arg6[%c0_9, %c0_10, %c0_11] : memref<1x8x256xbf16, #tpu.memory_space<vmem>>, vector<1x8x256xbf16>
    %20 = vector.shape_cast %19 : vector<1x8x256xbf16> to vector<8x256xbf16>
    %21 = vector.shape_cast %18 : vector<8x256xbf16> to vector<1x8x256xbf16>
    tpu.vector_store %arg6[%c0_9, %c0_10, %c0_11], %21 {strides = array<i32>} : memref<1x8x256xbf16, #tpu.memory_space<vmem>>, vector<1x8x256xbf16>,
    return
  }
  func.func @transform_0(%arg0: i32, %arg1: i32) -> (i32, i32, i32) {
    %c0_i32 = arith.constant 0 : i32
    %c0_i32_0 = arith.constant 0 : i32
    return %arg0, %c0_i32, %arg1 : i32, i32, i32
  }
  func.func @transform_1(%arg0: i32, %arg1: i32) -> (i32, i32) {
    %c0_i32 = arith.constant 0 : i32
    %c0_i32_0 = arith.constant 0 : i32
    %c0_i32_1 = arith.constant 0 : i32
    return %c0_i32, %c0_i32_0 : i32, i32
  }
  func.func @transform_2(%arg0: i32, %arg1: i32) -> (i32, i32) {
    %c0_i32 = arith.constant 0 : i32
    %c0_i32_0 = arith.constant 0 : i32
    %c0_i32_1 = arith.constant 0 : i32
    return %c0_i32, %c0_i32_0 : i32, i32
  }
  func.func @transform_3(%arg0: i32, %arg1: i32) -> (i32, i32) {
    %c0_i32 = arith.constant 0 : i32
    %c0_i32_0 = arith.constant 0 : i32
    %c0_i32_1 = arith.constant 0 : i32
    return %c0_i32, %c0_i32_0 : i32, i32
  }
  func.func @transform_4(%arg0: i32, %arg1: i32) -> (i32, i32, i32) {
    %c0_i32 = arith.constant 0 : i32
    %c0_i32_0 = arith.constant 0 : i32
    return %arg0, %c0_i32, %arg1 : i32, i32, i32
  }
}

module attributes {stable_mosaic.version = 11 : i64} {
  func.func @_gram_kernel(%arg0: i32, %arg1: memref<16x2048xbf16, #tpu.memory_space<vmem>>, %arg2: memref<16x16xf32, #tpu.memory_space<vmem>>) attributes {dimension_semantics = [#tpu.dimension_semantics<arbitrary>], iteration_bounds = array<i64: 1>, scalar_prefetch = 0 : i64, scratch_operands = 0 : i64, tpu.core_type = #tpu.core_type<tc>, window_params = [{transform_indices = @transform_0, window_bounds = array<i64: 16, 2048>}, {pipeline_mode = #tpu.pipeline_mode<synchronous>, transform_indices = @transform_1, window_bounds = array<i64: 16, 16>}]} {
    %c0_i32 = arith.constant 0 : i32
    %0 = arith.cmpi eq, %arg0, %c0_i32 : i32
    %1 = arith.extui %0 : i1 to i32
    %c0_i32_0 = arith.constant 0 : i32
    %2 = arith.cmpi ne, %1, %c0_i32_0 : i32
    scf.if %2 {
      %cst_6 = arith.constant 0.000000e+00 : f32
      %8 = vector.broadcast %cst_6 : f32 to vector<16x16xf32>
      %c0_7 = arith.constant 0 : index
      %c0_8 = arith.constant 0 : index
      %9 = vector.load %arg2[%c0_7, %c0_8] : memref<16x16xf32, #tpu.memory_space<vmem>>, vector<16x16xf32>
      tpu.vector_store %arg2[%c0_7, %c0_8], %8 {strides = array<i32>} : memref<16x16xf32, #tpu.memory_space<vmem>>, vector<16x16xf32>,
    } else {
    }
    %c0 = arith.constant 0 : index
    %c0_1 = arith.constant 0 : index
    %3 = vector.load %arg1[%c0, %c0_1] : memref<16x2048xbf16, #tpu.memory_space<vmem>>, vector<16x2048xbf16>
    %c0_2 = arith.constant 0 : index
    %c0_3 = arith.constant 0 : index
    %4 = vector.load %arg2[%c0_2, %c0_3] : memref<16x16xf32, #tpu.memory_space<vmem>>, vector<16x16xf32>
    %cst = arith.constant dense<0.000000e+00> : vector<16x16xf32>
    %5 = tpu.matmul %3, %3, %cst {dimension_numbers = #tpu.dot_dimension_numbers<[1], [1], [0], [0], [0, 0, 1, 0], [], []>} : vector<16x2048xbf16>, vector<16x2048xbf16>, vector<16x16xf32> -> vector<16x16xf32>
    %6 = arith.addf %4, %5 : vector<16x16xf32>
    %c0_4 = arith.constant 0 : index
    %c0_5 = arith.constant 0 : index
    %7 = vector.load %arg2[%c0_4, %c0_5] : memref<16x16xf32, #tpu.memory_space<vmem>>, vector<16x16xf32>
    tpu.vector_store %arg2[%c0_4, %c0_5], %6 {strides = array<i32>} : memref<16x16xf32, #tpu.memory_space<vmem>>, vector<16x16xf32>,
    return
  }
  func.func @transform_0(%arg0: i32) -> (i32, i32) {
    %c0_i32 = arith.constant 0 : i32
    %c0_i32_0 = arith.constant 0 : i32
    return %c0_i32, %arg0 : i32, i32
  }
  func.func @transform_1(%arg0: i32) -> (i32, i32) {
    %c0_i32 = arith.constant 0 : i32
    %c0_i32_0 = arith.constant 0 : i32
    %c0_i32_1 = arith.constant 0 : i32
    return %c0_i32, %c0_i32_0 : i32, i32
  }
}

module attributes {stable_mosaic.version = 11 : i64} {
  func.func @_conv_apply_kernel(%arg0: i32, %arg1: i32, %arg2: memref<1x8x640xbf16, #tpu.memory_space<vmem>>, %arg3: memref<8x8xbf16, #tpu.memory_space<vmem>>, %arg4: memref<8x1xf32, #tpu.memory_space<vmem>>, %arg5: memref<8x1xf32, #tpu.memory_space<vmem>>, %arg6: memref<1x8x640xbf16, #tpu.memory_space<vmem>>) attributes {dimension_semantics = [#tpu.dimension_semantics<parallel>, #tpu.dimension_semantics<parallel>], iteration_bounds = array<i64: 2, 1>, scalar_prefetch = 0 : i64, scratch_operands = 0 : i64, tpu.core_type = #tpu.core_type<tc>, window_params = [{transform_indices = @transform_0, window_bounds = array<i64: 1, 8, 640>}, {pipeline_mode = #tpu.pipeline_mode<synchronous>, transform_indices = @transform_1, window_bounds = array<i64: 8, 8>}, {pipeline_mode = #tpu.pipeline_mode<synchronous>, transform_indices = @transform_2, window_bounds = array<i64: 8, 1>}, {pipeline_mode = #tpu.pipeline_mode<synchronous>, transform_indices = @transform_3, window_bounds = array<i64: 8, 1>}, {transform_indices = @transform_4, window_bounds = array<i64: 1, 8, 640>}]} {
    %c0 = arith.constant 0 : index
    %c0_0 = arith.constant 0 : index
    %0 = vector.load %arg3[%c0, %c0_0] : memref<8x8xbf16, #tpu.memory_space<vmem>>, vector<8x8xbf16>
    %c0_1 = arith.constant 0 : index
    %c0_2 = arith.constant 0 : index
    %c0_3 = arith.constant 0 : index
    %1 = vector.load %arg2[%c0_1, %c0_2, %c0_3] : memref<1x8x640xbf16, #tpu.memory_space<vmem>>, vector<1x8x640xbf16>
    %2 = vector.shape_cast %1 : vector<1x8x640xbf16> to vector<8x640xbf16>
    %cst = arith.constant dense<0.000000e+00> : vector<8x640xf32>
    %3 = tpu.matmul %0, %2, %cst {dimension_numbers = #tpu.dot_dimension_numbers<[1], [0], [0], [1], [0, 0, 1, 1], [], []>} : vector<8x8xbf16>, vector<8x640xbf16>, vector<8x640xf32> -> vector<8x640xf32>
    %c0_4 = arith.constant 0 : index
    %c0_5 = arith.constant 0 : index
    %4 = vector.load %arg4[%c0_4, %c0_5] : memref<8x1xf32, #tpu.memory_space<vmem>>, vector<8x1xf32>
    %5 = vector.broadcast %4 : vector<8x1xf32> to vector<8x640xf32>
    %6 = arith.mulf %3, %5 : vector<8x640xf32>
    %c0_6 = arith.constant 0 : index
    %c0_7 = arith.constant 0 : index
    %7 = vector.load %arg5[%c0_6, %c0_7] : memref<8x1xf32, #tpu.memory_space<vmem>>, vector<8x1xf32>
    %8 = vector.broadcast %7 : vector<8x1xf32> to vector<8x640xf32>
    %9 = arith.addf %6, %8 : vector<8x640xf32>
    %c640_i32 = arith.constant 640 : i32
    %10 = arith.muli %arg1, %c640_i32 : i32
    %11 = tpu.iota {dimensions = array<i32: 1>} : vector<8x640xi32>
    %12 = vector.broadcast %10 : i32 to vector<8x640xi32>
    %13 = arith.addi %12, %11 : vector<8x640xi32>
    %c576_i32 = arith.constant 576 : i32
    %14 = vector.broadcast %c576_i32 : i32 to vector<8x640xi32>
    %15 = arith.cmpi slt, %13, %14 : vector<8x640xi32>
    %cst_8 = arith.constant 0.000000e+00 : f32
    %16 = vector.broadcast %cst_8 : f32 to vector<8x640xf32>
    %17 = arith.select %15, %9, %16 : vector<8x640xi1>, vector<8x640xf32>
    %18 = arith.truncf %17 : vector<8x640xf32> to vector<8x640xbf16>
    %c0_9 = arith.constant 0 : index
    %c0_10 = arith.constant 0 : index
    %c0_11 = arith.constant 0 : index
    %19 = vector.load %arg6[%c0_9, %c0_10, %c0_11] : memref<1x8x640xbf16, #tpu.memory_space<vmem>>, vector<1x8x640xbf16>
    %20 = vector.shape_cast %19 : vector<1x8x640xbf16> to vector<8x640xbf16>
    %21 = vector.shape_cast %18 : vector<8x640xbf16> to vector<1x8x640xbf16>
    tpu.vector_store %arg6[%c0_9, %c0_10, %c0_11], %21 {strides = array<i32>} : memref<1x8x640xbf16, #tpu.memory_space<vmem>>, vector<1x8x640xbf16>,
    return
  }
  func.func @transform_0(%arg0: i32, %arg1: i32) -> (i32, i32, i32) {
    %c0_i32 = arith.constant 0 : i32
    %c0_i32_0 = arith.constant 0 : i32
    return %arg0, %c0_i32, %arg1 : i32, i32, i32
  }
  func.func @transform_1(%arg0: i32, %arg1: i32) -> (i32, i32) {
    %c0_i32 = arith.constant 0 : i32
    %c0_i32_0 = arith.constant 0 : i32
    %c0_i32_1 = arith.constant 0 : i32
    return %c0_i32, %c0_i32_0 : i32, i32
  }
  func.func @transform_2(%arg0: i32, %arg1: i32) -> (i32, i32) {
    %c0_i32 = arith.constant 0 : i32
    %c0_i32_0 = arith.constant 0 : i32
    %c0_i32_1 = arith.constant 0 : i32
    return %c0_i32, %c0_i32_0 : i32, i32
  }
  func.func @transform_3(%arg0: i32, %arg1: i32) -> (i32, i32) {
    %c0_i32 = arith.constant 0 : i32
    %c0_i32_0 = arith.constant 0 : i32
    %c0_i32_1 = arith.constant 0 : i32
    return %c0_i32, %c0_i32_0 : i32, i32
  }
  func.func @transform_4(%arg0: i32, %arg1: i32) -> (i32, i32, i32) {
    %c0_i32 = arith.constant 0 : i32
    %c0_i32_0 = arith.constant 0 : i32
    return %arg0, %c0_i32, %arg1 : i32, i32, i32
  }
}

module attributes {stable_mosaic.version = 11 : i64} {
  func.func @_conv_stats_kernel(%arg0: i32, %arg1: i32, %arg2: memref<1x8x640xbf16, #tpu.memory_space<vmem>>, %arg3: memref<8x8xbf16, #tpu.memory_space<vmem>>, %arg4: memref<8x1xf32, #tpu.memory_space<vmem>>, %arg5: memref<8x1xf32, #tpu.memory_space<vmem>>) attributes {dimension_semantics = [#tpu.dimension_semantics<arbitrary>, #tpu.dimension_semantics<arbitrary>], iteration_bounds = array<i64: 2, 1>, scalar_prefetch = 0 : i64, scratch_operands = 0 : i64, tpu.core_type = #tpu.core_type<tc>, window_params = [{transform_indices = @transform_0, window_bounds = array<i64: 1, 8, 640>}, {pipeline_mode = #tpu.pipeline_mode<synchronous>, transform_indices = @transform_1, window_bounds = array<i64: 8, 8>}, {pipeline_mode = #tpu.pipeline_mode<synchronous>, transform_indices = @transform_2, window_bounds = array<i64: 8, 1>}, {pipeline_mode = #tpu.pipeline_mode<synchronous>, transform_indices = @transform_3, window_bounds = array<i64: 8, 1>}]} {
    %c0_i32 = arith.constant 0 : i32
    %0 = arith.cmpi eq, %arg0, %c0_i32 : i32
    %c0_i32_0 = arith.constant 0 : i32
    %1 = arith.cmpi eq, %arg1, %c0_i32_0 : i32
    %2 = arith.andi %0, %1 : i1
    %3 = arith.extui %2 : i1 to i32
    %c0_i32_1 = arith.constant 0 : i32
    %4 = arith.cmpi ne, %3, %c0_i32_1 : i32
    scf.if %4 {
      %cst_16 = arith.constant 0.000000e+00 : f32
      %20 = vector.broadcast %cst_16 : f32 to vector<8x1xf32>
      %c0_17 = arith.constant 0 : index
      %c0_18 = arith.constant 0 : index
      %21 = vector.load %arg4[%c0_17, %c0_18] : memref<8x1xf32, #tpu.memory_space<vmem>>, vector<8x1xf32>
      tpu.vector_store %arg4[%c0_17, %c0_18], %20 {strides = array<i32>} : memref<8x1xf32, #tpu.memory_space<vmem>>, vector<8x1xf32>,
      %cst_19 = arith.constant 0.000000e+00 : f32
      %22 = vector.broadcast %cst_19 : f32 to vector<8x1xf32>
      %c0_20 = arith.constant 0 : index
      %c0_21 = arith.constant 0 : index
      %23 = vector.load %arg5[%c0_20, %c0_21] : memref<8x1xf32, #tpu.memory_space<vmem>>, vector<8x1xf32>
      tpu.vector_store %arg5[%c0_20, %c0_21], %22 {strides = array<i32>} : memref<8x1xf32, #tpu.memory_space<vmem>>, vector<8x1xf32>,
    } else {
    }
    %c0 = arith.constant 0 : index
    %c0_2 = arith.constant 0 : index
    %5 = vector.load %arg3[%c0, %c0_2] : memref<8x8xbf16, #tpu.memory_space<vmem>>, vector<8x8xbf16>
    %c0_3 = arith.constant 0 : index
    %c0_4 = arith.constant 0 : index
    %c0_5 = arith.constant 0 : index
    %6 = vector.load %arg2[%c0_3, %c0_4, %c0_5] : memref<1x8x640xbf16, #tpu.memory_space<vmem>>, vector<1x8x640xbf16>
    %7 = vector.shape_cast %6 : vector<1x8x640xbf16> to vector<8x640xbf16>
    %cst = arith.constant dense<0.000000e+00> : vector<8x640xf32>
    %8 = tpu.matmul %5, %7, %cst {dimension_numbers = #tpu.dot_dimension_numbers<[1], [0], [0], [1], [0, 0, 1, 1], [], []>} : vector<8x8xbf16>, vector<8x640xbf16>, vector<8x640xf32> -> vector<8x640xf32>
    %c0_6 = arith.constant 0 : index
    %c0_7 = arith.constant 0 : index
    %9 = vector.load %arg4[%c0_6, %c0_7] : memref<8x1xf32, #tpu.memory_space<vmem>>, vector<8x1xf32>
    %cst_8 = arith.constant dense<0.000000e+00> : vector<8xf32>
    %10 = vector.multi_reduction <add>, %8, %cst_8 [1] : vector<8x640xf32> to vector<8xf32>
    %11 = vector.shape_cast %10 : vector<8xf32> to vector<8x1xf32>
    %12 = arith.addf %9, %11 : vector<8x1xf32>
    %c0_9 = arith.constant 0 : index
    %c0_10 = arith.constant 0 : index
    %13 = vector.load %arg4[%c0_9, %c0_10] : memref<8x1xf32, #tpu.memory_space<vmem>>, vector<8x1xf32>
    tpu.vector_store %arg4[%c0_9, %c0_10], %12 {strides = array<i32>} : memref<8x1xf32, #tpu.memory_space<vmem>>, vector<8x1xf32>,
    %c0_11 = arith.constant 0 : index
    %c0_12 = arith.constant 0 : index
    %14 = vector.load %arg5[%c0_11, %c0_12] : memref<8x1xf32, #tpu.memory_space<vmem>>, vector<8x1xf32>
    %15 = arith.mulf %8, %8 : vector<8x640xf32>
    %cst_13 = arith.constant dense<0.000000e+00> : vector<8xf32>
    %16 = vector.multi_reduction <add>, %15, %cst_13 [1] : vector<8x640xf32> to vector<8xf32>
    %17 = vector.shape_cast %16 : vector<8xf32> to vector<8x1xf32>
    %18 = arith.addf %14, %17 : vector<8x1xf32>
    %c0_14 = arith.constant 0 : index
    %c0_15 = arith.constant 0 : index
    %19 = vector.load %arg5[%c0_14, %c0_15] : memref<8x1xf32, #tpu.memory_space<vmem>>, vector<8x1xf32>
    tpu.vector_store %arg5[%c0_14, %c0_15], %18 {strides = array<i32>} : memref<8x1xf32, #tpu.memory_space<vmem>>, vector<8x1xf32>,
    return
  }
  func.func @transform_0(%arg0: i32, %arg1: i32) -> (i32, i32, i32) {
    %c0_i32 = arith.constant 0 : i32
    %c0_i32_0 = arith.constant 0 : i32
    return %arg0, %c0_i32, %arg1 : i32, i32, i32
  }
  func.func @transform_1(%arg0: i32, %arg1: i32) -> (i32, i32) {
    %c0_i32 = arith.constant 0 : i32
    %c0_i32_0 = arith.constant 0 : i32
    %c0_i32_1 = arith.constant 0 : i32
    return %c0_i32, %c0_i32_0 : i32, i32
  }
  func.func @transform_2(%arg0: i32, %arg1: i32) -> (i32, i32) {
    %c0_i32 = arith.constant 0 : i32
    %c0_i32_0 = arith.constant 0 : i32
    %c0_i32_1 = arith.constant 0 : i32
    return %c0_i32, %c0_i32_0 : i32, i32
  }
  func.func @transform_3(%arg0: i32, %arg1: i32) -> (i32, i32) {
    %c0_i32 = arith.constant 0 : i32
    %c0_i32_0 = arith.constant 0 : i32
    %c0_i32_1 = arith.constant 0 : i32
    return %c0_i32, %c0_i32_0 : i32, i32
  }
}

module attributes {stable_mosaic.version = 11 : i64} {
  func.func @_gram_split_kernel(%arg0: i32, %arg1: i32, %arg2: memref<16x2560xbf16, #tpu.memory_space<vmem>>, %arg3: memref<1x16x16xf32, #tpu.memory_space<vmem>>) attributes {dimension_semantics = [#tpu.dimension_semantics<parallel>, #tpu.dimension_semantics<arbitrary>], iteration_bounds = array<i64: 2, 1>, scalar_prefetch = 0 : i64, scratch_operands = 0 : i64, tpu.core_type = #tpu.core_type<tc>, window_params = [{transform_indices = @transform_0, window_bounds = array<i64: 16, 2560>}, {transform_indices = @transform_1, window_bounds = array<i64: 1, 16, 16>}]} {
    %c0_i32 = arith.constant 0 : i32
    %0 = arith.cmpi eq, %arg1, %c0_i32 : i32
    %1 = arith.extui %0 : i1 to i32
    %c0_i32_0 = arith.constant 0 : i32
    %2 = arith.cmpi ne, %1, %c0_i32_0 : i32
    scf.if %2 {
      %cst_8 = arith.constant 0.000000e+00 : f32
      %11 = vector.broadcast %cst_8 : f32 to vector<1x16x16xf32>
      %c0_9 = arith.constant 0 : index
      %c0_10 = arith.constant 0 : index
      %c0_11 = arith.constant 0 : index
      %12 = vector.load %arg3[%c0_9, %c0_10, %c0_11] : memref<1x16x16xf32, #tpu.memory_space<vmem>>, vector<1x16x16xf32>
      tpu.vector_store %arg3[%c0_9, %c0_10, %c0_11], %11 {strides = array<i32>} : memref<1x16x16xf32, #tpu.memory_space<vmem>>, vector<1x16x16xf32>,
    } else {
    }
    %c0 = arith.constant 0 : index
    %c0_1 = arith.constant 0 : index
    %3 = vector.load %arg2[%c0, %c0_1] : memref<16x2560xbf16, #tpu.memory_space<vmem>>, vector<16x2560xbf16>
    %c0_2 = arith.constant 0 : index
    %c0_3 = arith.constant 0 : index
    %c0_4 = arith.constant 0 : index
    %4 = vector.load %arg3[%c0_2, %c0_3, %c0_4] : memref<1x16x16xf32, #tpu.memory_space<vmem>>, vector<1x16x16xf32>
    %5 = vector.shape_cast %4 : vector<1x16x16xf32> to vector<16x16xf32>
    %cst = arith.constant dense<0.000000e+00> : vector<16x16xf32>
    %6 = tpu.matmul %3, %3, %cst {dimension_numbers = #tpu.dot_dimension_numbers<[1], [1], [0], [0], [0, 0, 1, 0], [], []>} : vector<16x2560xbf16>, vector<16x2560xbf16>, vector<16x16xf32> -> vector<16x16xf32>
    %7 = arith.addf %5, %6 : vector<16x16xf32>
    %c0_5 = arith.constant 0 : index
    %c0_6 = arith.constant 0 : index
    %c0_7 = arith.constant 0 : index
    %8 = vector.load %arg3[%c0_5, %c0_6, %c0_7] : memref<1x16x16xf32, #tpu.memory_space<vmem>>, vector<1x16x16xf32>
    %9 = vector.shape_cast %8 : vector<1x16x16xf32> to vector<16x16xf32>
    %10 = vector.shape_cast %7 : vector<16x16xf32> to vector<1x16x16xf32>
    tpu.vector_store %arg3[%c0_5, %c0_6, %c0_7], %10 {strides = array<i32>} : memref<1x16x16xf32, #tpu.memory_space<vmem>>, vector<1x16x16xf32>,
    return
  }
  func.func @transform_0(%arg0: i32, %arg1: i32) -> (i32, i32) {
    %c1_i32 = arith.constant 1 : i32
    %0 = arith.muli %arg0, %c1_i32 : i32
    %1 = arith.addi %0, %arg1 : i32
    %c0_i32 = arith.constant 0 : i32
    %c0_i32_0 = arith.constant 0 : i32
    return %c0_i32, %1 : i32, i32
  }
  func.func @transform_1(%arg0: i32, %arg1: i32) -> (i32, i32, i32) {
    %c0_i32 = arith.constant 0 : i32
    %c0_i32_0 = arith.constant 0 : i32
    %c0_i32_1 = arith.constant 0 : i32
    return %arg0, %c0_i32, %c0_i32_0 : i32, i32, i32
  }
}

module attributes {stable_mosaic.version = 11 : i64} {
  func.func @_mix_kernel(%arg0: i32, %arg1: memref<16x16xbf16, #tpu.memory_space<vmem>>, %arg2: memref<16x2560xbf16, #tpu.memory_space<vmem>>, %arg3: memref<16x2560xbf16, #tpu.memory_space<vmem>>) attributes {dimension_semantics = [#tpu.dimension_semantics<parallel>], iteration_bounds = array<i64: 2>, scalar_prefetch = 0 : i64, scratch_operands = 0 : i64, tpu.core_type = #tpu.core_type<tc>, window_params = [{pipeline_mode = #tpu.pipeline_mode<synchronous>, transform_indices = @transform_0, window_bounds = array<i64: 16, 16>}, {transform_indices = @transform_1, window_bounds = array<i64: 16, 2560>}, {transform_indices = @transform_2, window_bounds = array<i64: 16, 2560>}]} {
    %c0 = arith.constant 0 : index
    %c0_0 = arith.constant 0 : index
    %0 = vector.load %arg1[%c0, %c0_0] : memref<16x16xbf16, #tpu.memory_space<vmem>>, vector<16x16xbf16>
    %c0_1 = arith.constant 0 : index
    %c0_2 = arith.constant 0 : index
    %1 = vector.load %arg2[%c0_1, %c0_2] : memref<16x2560xbf16, #tpu.memory_space<vmem>>, vector<16x2560xbf16>
    %cst = arith.constant dense<0.000000e+00> : vector<16x2560xf32>
    %2 = tpu.matmul %0, %1, %cst {dimension_numbers = #tpu.dot_dimension_numbers<[1], [0], [0], [1], [0, 0, 1, 1], [], []>} : vector<16x16xbf16>, vector<16x2560xbf16>, vector<16x2560xf32> -> vector<16x2560xf32>
    %3 = arith.truncf %2 : vector<16x2560xf32> to vector<16x2560xbf16>
    %c0_3 = arith.constant 0 : index
    %c0_4 = arith.constant 0 : index
    %4 = vector.load %arg3[%c0_3, %c0_4] : memref<16x2560xbf16, #tpu.memory_space<vmem>>, vector<16x2560xbf16>
    tpu.vector_store %arg3[%c0_3, %c0_4], %3 {strides = array<i32>} : memref<16x2560xbf16, #tpu.memory_space<vmem>>, vector<16x2560xbf16>,
    return
  }
  func.func @transform_0(%arg0: i32) -> (i32, i32) {
    %c0_i32 = arith.constant 0 : i32
    %c0_i32_0 = arith.constant 0 : i32
    %c0_i32_1 = arith.constant 0 : i32
    return %c0_i32, %c0_i32_0 : i32, i32
  }
  func.func @transform_1(%arg0: i32) -> (i32, i32) {
    %c0_i32 = arith.constant 0 : i32
    %c0_i32_0 = arith.constant 0 : i32
    return %c0_i32, %arg0 : i32, i32
  }
  func.func @transform_2(%arg0: i32) -> (i32, i32) {
    %c0_i32 = arith.constant 0 : i32
    %c0_i32_0 = arith.constant 0 : i32
    return %c0_i32, %arg0 : i32, i32
  }
}

module attributes {stable_mosaic.version = 11 : i64} {
  func.func @_conv_apply_kernel(%arg0: i32, %arg1: i32, %arg2: memref<1x8x640xbf16, #tpu.memory_space<vmem>>, %arg3: memref<8x8xbf16, #tpu.memory_space<vmem>>, %arg4: memref<8x1xf32, #tpu.memory_space<vmem>>, %arg5: memref<8x1xf32, #tpu.memory_space<vmem>>, %arg6: memref<1x8x640xf32, #tpu.memory_space<vmem>>) attributes {dimension_semantics = [#tpu.dimension_semantics<parallel>, #tpu.dimension_semantics<parallel>], iteration_bounds = array<i64: 2, 1>, scalar_prefetch = 0 : i64, scratch_operands = 0 : i64, tpu.core_type = #tpu.core_type<tc>, window_params = [{transform_indices = @transform_0, window_bounds = array<i64: 1, 8, 640>}, {pipeline_mode = #tpu.pipeline_mode<synchronous>, transform_indices = @transform_1, window_bounds = array<i64: 8, 8>}, {pipeline_mode = #tpu.pipeline_mode<synchronous>, transform_indices = @transform_2, window_bounds = array<i64: 8, 1>}, {pipeline_mode = #tpu.pipeline_mode<synchronous>, transform_indices = @transform_3, window_bounds = array<i64: 8, 1>}, {transform_indices = @transform_4, window_bounds = array<i64: 1, 8, 640>}]} {
    %c0 = arith.constant 0 : index
    %c0_0 = arith.constant 0 : index
    %0 = vector.load %arg3[%c0, %c0_0] : memref<8x8xbf16, #tpu.memory_space<vmem>>, vector<8x8xbf16>
    %c0_1 = arith.constant 0 : index
    %c0_2 = arith.constant 0 : index
    %c0_3 = arith.constant 0 : index
    %1 = vector.load %arg2[%c0_1, %c0_2, %c0_3] : memref<1x8x640xbf16, #tpu.memory_space<vmem>>, vector<1x8x640xbf16>
    %2 = vector.shape_cast %1 : vector<1x8x640xbf16> to vector<8x640xbf16>
    %cst = arith.constant dense<0.000000e+00> : vector<8x640xf32>
    %3 = tpu.matmul %0, %2, %cst {dimension_numbers = #tpu.dot_dimension_numbers<[1], [0], [0], [1], [0, 0, 1, 1], [], []>} : vector<8x8xbf16>, vector<8x640xbf16>, vector<8x640xf32> -> vector<8x640xf32>
    %c0_4 = arith.constant 0 : index
    %c0_5 = arith.constant 0 : index
    %4 = vector.load %arg4[%c0_4, %c0_5] : memref<8x1xf32, #tpu.memory_space<vmem>>, vector<8x1xf32>
    %5 = vector.broadcast %4 : vector<8x1xf32> to vector<8x640xf32>
    %6 = arith.mulf %3, %5 : vector<8x640xf32>
    %c0_6 = arith.constant 0 : index
    %c0_7 = arith.constant 0 : index
    %7 = vector.load %arg5[%c0_6, %c0_7] : memref<8x1xf32, #tpu.memory_space<vmem>>, vector<8x1xf32>
    %8 = vector.broadcast %7 : vector<8x1xf32> to vector<8x640xf32>
    %9 = arith.addf %6, %8 : vector<8x640xf32>
    %c640_i32 = arith.constant 640 : i32
    %10 = arith.muli %arg1, %c640_i32 : i32
    %11 = tpu.iota {dimensions = array<i32: 1>} : vector<8x640xi32>
    %12 = vector.broadcast %10 : i32 to vector<8x640xi32>
    %13 = arith.addi %12, %11 : vector<8x640xi32>
    %c576_i32 = arith.constant 576 : i32
    %14 = vector.broadcast %c576_i32 : i32 to vector<8x640xi32>
    %15 = arith.cmpi slt, %13, %14 : vector<8x640xi32>
    %cst_8 = arith.constant 0.000000e+00 : f32
    %16 = vector.broadcast %cst_8 : f32 to vector<8x640xf32>
    %17 = arith.select %15, %9, %16 : vector<8x640xi1>, vector<8x640xf32>
    %c0_9 = arith.constant 0 : index
    %c0_10 = arith.constant 0 : index
    %c0_11 = arith.constant 0 : index
    %18 = vector.load %arg6[%c0_9, %c0_10, %c0_11] : memref<1x8x640xf32, #tpu.memory_space<vmem>>, vector<1x8x640xf32>
    %19 = vector.shape_cast %18 : vector<1x8x640xf32> to vector<8x640xf32>
    %20 = vector.shape_cast %17 : vector<8x640xf32> to vector<1x8x640xf32>
    tpu.vector_store %arg6[%c0_9, %c0_10, %c0_11], %20 {strides = array<i32>} : memref<1x8x640xf32, #tpu.memory_space<vmem>>, vector<1x8x640xf32>,
    return
  }
  func.func @transform_0(%arg0: i32, %arg1: i32) -> (i32, i32, i32) {
    %c0_i32 = arith.constant 0 : i32
    %c0_i32_0 = arith.constant 0 : i32
    return %arg0, %c0_i32, %arg1 : i32, i32, i32
  }
  func.func @transform_1(%arg0: i32, %arg1: i32) -> (i32, i32) {
    %c0_i32 = arith.constant 0 : i32
    %c0_i32_0 = arith.constant 0 : i32
    %c0_i32_1 = arith.constant 0 : i32
    return %c0_i32, %c0_i32_0 : i32, i32
  }
  func.func @transform_2(%arg0: i32, %arg1: i32) -> (i32, i32) {
    %c0_i32 = arith.constant 0 : i32
    %c0_i32_0 = arith.constant 0 : i32
    %c0_i32_1 = arith.constant 0 : i32
    return %c0_i32, %c0_i32_0 : i32, i32
  }
  func.func @transform_3(%arg0: i32, %arg1: i32) -> (i32, i32) {
    %c0_i32 = arith.constant 0 : i32
    %c0_i32_0 = arith.constant 0 : i32
    %c0_i32_1 = arith.constant 0 : i32
    return %c0_i32, %c0_i32_0 : i32, i32
  }
  func.func @transform_4(%arg0: i32, %arg1: i32) -> (i32, i32, i32) {
    %c0_i32 = arith.constant 0 : i32
    %c0_i32_0 = arith.constant 0 : i32
    return %arg0, %c0_i32, %arg1 : i32, i32, i32
  }
}

module attributes {stable_mosaic.version = 11 : i64} {
  func.func @_mix_kernel(%arg0: i32, %arg1: memref<16x16xbf16, #tpu.memory_space<vmem>>, %arg2: memref<16x2048xbf16, #tpu.memory_space<vmem>>, %arg3: memref<16x2048xbf16, #tpu.memory_space<vmem>>) attributes {dimension_semantics = [#tpu.dimension_semantics<parallel>], iteration_bounds = array<i64: 1>, scalar_prefetch = 0 : i64, scratch_operands = 0 : i64, tpu.core_type = #tpu.core_type<tc>, window_params = [{pipeline_mode = #tpu.pipeline_mode<synchronous>, transform_indices = @transform_0, window_bounds = array<i64: 16, 16>}, {transform_indices = @transform_1, window_bounds = array<i64: 16, 2048>}, {transform_indices = @transform_2, window_bounds = array<i64: 16, 2048>}]} {
    %c0 = arith.constant 0 : index
    %c0_0 = arith.constant 0 : index
    %0 = vector.load %arg1[%c0, %c0_0] : memref<16x16xbf16, #tpu.memory_space<vmem>>, vector<16x16xbf16>
    %c0_1 = arith.constant 0 : index
    %c0_2 = arith.constant 0 : index
    %1 = vector.load %arg2[%c0_1, %c0_2] : memref<16x2048xbf16, #tpu.memory_space<vmem>>, vector<16x2048xbf16>
    %cst = arith.constant dense<0.000000e+00> : vector<16x2048xf32>
    %2 = tpu.matmul %0, %1, %cst {dimension_numbers = #tpu.dot_dimension_numbers<[1], [0], [0], [1], [0, 0, 1, 1], [], []>} : vector<16x16xbf16>, vector<16x2048xbf16>, vector<16x2048xf32> -> vector<16x2048xf32>
    %3 = arith.truncf %2 : vector<16x2048xf32> to vector<16x2048xbf16>
    %c0_3 = arith.constant 0 : index
    %c0_4 = arith.constant 0 : index
    %4 = vector.load %arg3[%c0_3, %c0_4] : memref<16x2048xbf16, #tpu.memory_space<vmem>>, vector<16x2048xbf16>
    tpu.vector_store %arg3[%c0_3, %c0_4], %3 {strides = array<i32>} : memref<16x2048xbf16, #tpu.memory_space<vmem>>, vector<16x2048xbf16>,
    return
  }
  func.func @transform_0(%arg0: i32) -> (i32, i32) {
    %c0_i32 = arith.constant 0 : i32
    %c0_i32_0 = arith.constant 0 : i32
    %c0_i32_1 = arith.constant 0 : i32
    return %c0_i32, %c0_i32_0 : i32, i32
  }
  func.func @transform_1(%arg0: i32) -> (i32, i32) {
    %c0_i32 = arith.constant 0 : i32
    %c0_i32_0 = arith.constant 0 : i32
    return %c0_i32, %arg0 : i32, i32
  }
  func.func @transform_2(%arg0: i32) -> (i32, i32) {
    %c0_i32 = arith.constant 0 : i32
    %c0_i32_0 = arith.constant 0 : i32
    return %c0_i32, %arg0 : i32, i32
  }
}

module attributes {stable_mosaic.version = 11 : i64} {
  func.func @_conv_apply_kernel(%arg0: i32, %arg1: i32, %arg2: memref<1x8x256xbf16, #tpu.memory_space<vmem>>, %arg3: memref<8x8xbf16, #tpu.memory_space<vmem>>, %arg4: memref<8x1xf32, #tpu.memory_space<vmem>>, %arg5: memref<8x1xf32, #tpu.memory_space<vmem>>, %arg6: memref<1x8x256xf32, #tpu.memory_space<vmem>>) attributes {dimension_semantics = [#tpu.dimension_semantics<parallel>, #tpu.dimension_semantics<parallel>], iteration_bounds = array<i64: 2, 1>, scalar_prefetch = 0 : i64, scratch_operands = 0 : i64, tpu.core_type = #tpu.core_type<tc>, window_params = [{transform_indices = @transform_0, window_bounds = array<i64: 1, 8, 256>}, {pipeline_mode = #tpu.pipeline_mode<synchronous>, transform_indices = @transform_1, window_bounds = array<i64: 8, 8>}, {pipeline_mode = #tpu.pipeline_mode<synchronous>, transform_indices = @transform_2, window_bounds = array<i64: 8, 1>}, {pipeline_mode = #tpu.pipeline_mode<synchronous>, transform_indices = @transform_3, window_bounds = array<i64: 8, 1>}, {transform_indices = @transform_4, window_bounds = array<i64: 1, 8, 256>}]} {
    %c0 = arith.constant 0 : index
    %c0_0 = arith.constant 0 : index
    %0 = vector.load %arg3[%c0, %c0_0] : memref<8x8xbf16, #tpu.memory_space<vmem>>, vector<8x8xbf16>
    %c0_1 = arith.constant 0 : index
    %c0_2 = arith.constant 0 : index
    %c0_3 = arith.constant 0 : index
    %1 = vector.load %arg2[%c0_1, %c0_2, %c0_3] : memref<1x8x256xbf16, #tpu.memory_space<vmem>>, vector<1x8x256xbf16>
    %2 = vector.shape_cast %1 : vector<1x8x256xbf16> to vector<8x256xbf16>
    %cst = arith.constant dense<0.000000e+00> : vector<8x256xf32>
    %3 = tpu.matmul %0, %2, %cst {dimension_numbers = #tpu.dot_dimension_numbers<[1], [0], [0], [1], [0, 0, 1, 1], [], []>} : vector<8x8xbf16>, vector<8x256xbf16>, vector<8x256xf32> -> vector<8x256xf32>
    %c0_4 = arith.constant 0 : index
    %c0_5 = arith.constant 0 : index
    %4 = vector.load %arg4[%c0_4, %c0_5] : memref<8x1xf32, #tpu.memory_space<vmem>>, vector<8x1xf32>
    %5 = vector.broadcast %4 : vector<8x1xf32> to vector<8x256xf32>
    %6 = arith.mulf %3, %5 : vector<8x256xf32>
    %c0_6 = arith.constant 0 : index
    %c0_7 = arith.constant 0 : index
    %7 = vector.load %arg5[%c0_6, %c0_7] : memref<8x1xf32, #tpu.memory_space<vmem>>, vector<8x1xf32>
    %8 = vector.broadcast %7 : vector<8x1xf32> to vector<8x256xf32>
    %9 = arith.addf %6, %8 : vector<8x256xf32>
    %c256_i32 = arith.constant 256 : i32
    %10 = arith.muli %arg1, %c256_i32 : i32
    %11 = tpu.iota {dimensions = array<i32: 1>} : vector<8x256xi32>
    %12 = vector.broadcast %10 : i32 to vector<8x256xi32>
    %13 = arith.addi %12, %11 : vector<8x256xi32>
    %c144_i32 = arith.constant 144 : i32
    %14 = vector.broadcast %c144_i32 : i32 to vector<8x256xi32>
    %15 = arith.cmpi slt, %13, %14 : vector<8x256xi32>
    %cst_8 = arith.constant 0.000000e+00 : f32
    %16 = vector.broadcast %cst_8 : f32 to vector<8x256xf32>
    %17 = arith.select %15, %9, %16 : vector<8x256xi1>, vector<8x256xf32>
    %c0_9 = arith.constant 0 : index
    %c0_10 = arith.constant 0 : index
    %c0_11 = arith.constant 0 : index
    %18 = vector.load %arg6[%c0_9, %c0_10, %c0_11] : memref<1x8x256xf32, #tpu.memory_space<vmem>>, vector<1x8x256xf32>
    %19 = vector.shape_cast %18 : vector<1x8x256xf32> to vector<8x256xf32>
    %20 = vector.shape_cast %17 : vector<8x256xf32> to vector<1x8x256xf32>
    tpu.vector_store %arg6[%c0_9, %c0_10, %c0_11], %20 {strides = array<i32>} : memref<1x8x256xf32, #tpu.memory_space<vmem>>, vector<1x8x256xf32>,
    return
  }
  func.func @transform_0(%arg0: i32, %arg1: i32) -> (i32, i32, i32) {
    %c0_i32 = arith.constant 0 : i32
    %c0_i32_0 = arith.constant 0 : i32
    return %arg0, %c0_i32, %arg1 : i32, i32, i32
  }
  func.func @transform_1(%arg0: i32, %arg1: i32) -> (i32, i32) {
    %c0_i32 = arith.constant 0 : i32
    %c0_i32_0 = arith.constant 0 : i32
    %c0_i32_1 = arith.constant 0 : i32
    return %c0_i32, %c0_i32_0 : i32, i32
  }
  func.func @transform_2(%arg0: i32, %arg1: i32) -> (i32, i32) {
    %c0_i32 = arith.constant 0 : i32
    %c0_i32_0 = arith.constant 0 : i32
    %c0_i32_1 = arith.constant 0 : i32
    return %c0_i32, %c0_i32_0 : i32, i32
  }
  func.func @transform_3(%arg0: i32, %arg1: i32) -> (i32, i32) {
    %c0_i32 = arith.constant 0 : i32
    %c0_i32_0 = arith.constant 0 : i32
    %c0_i32_1 = arith.constant 0 : i32
    return %c0_i32, %c0_i32_0 : i32, i32
  }
  func.func @transform_4(%arg0: i32, %arg1: i32) -> (i32, i32, i32) {
    %c0_i32 = arith.constant 0 : i32
    %c0_i32_0 = arith.constant 0 : i32
    return %arg0, %c0_i32, %arg1 : i32, i32, i32
  }
}

</mosaic_0001>

<llo_original>
// kernel: ssi_forward.15
$region0: #{ssi_forward.15}
  #allocation0 [shape = 'u32[]', space=smem, size = 0x4, offset = 0x4, fixed_abs, tag = 'smem constant byte address 0x4 - core index']
  #allocation1 [shape = 'u32[144,128]{1,0:T(1,128)}', space=vmem, size = 0x12000, scoped, tag = 'internal scratch']
  %s0 = inlined_call_operand.vmem [shape: bf16[2,8,256], index: 0, kind: input, shape index: {}]
  %s1 = inlined_call_operand.vmem [shape: bf16[8,8], index: 1, kind: input, shape index: {}]
  %s2 = inlined_call_operand.vmem [shape: f32[8,1], index: 2, kind: input, shape index: {}]
  %s3 = inlined_call_operand.vmem [shape: f32[8,1], index: 3, kind: input, shape index: {}]
  %s4 = inlined_call_operand.vmem [shape: bf16[2,8,256], index: 4, kind: output, shape index: {}]
  %s5 = sld [smem:[#allocation0]]
  $region49: #{ssi_forward.15} parent=0
    _
  %s7 = ssub.s32 1, %s5
  %s8 = scalar_select 0, %s7, %s5
  loop: start=0, step=1, limit=4
  $region2: #{ssi_forward.15} parent=0 // loop_pre_header
    _
  $region3: #{ssi_forward.15} parent=0 // loop_header
    %s10 = sphi 0, %s14
    %p11 = scmp.ge.s32.totalorder %s10, 4
    %s17 = sphi 0, %s29
    %s18 = sphi 0, %s25
    %s19 = sphi 0, %s17
    %s20 = sphi 0, %s18
    %s21 = sphi 0, %s19
    %s22 = sphi 0, %s20
    %s34 = sphi 0, %s36
    %s37 = sphi 0, %s34
    %s38 = sphi 0, %s37
    %s54 = sphi 0, %s38
    %s58 = sphi 0, %s58
    %s60 = sphi 0, %s58
    %s61 = sphi 0, %s60
    %s75 = sphi 0, %s61
    %s79 = sphi 0, %s79
    %s81 = sphi 0, %s79
    %s82 = sphi 0, %s81
    %s96 = sphi 0, %s82
    %s100 = sphi 0, %s100
    %s102 = sphi 0, %s100
    %s103 = sphi 0, %s102
    %s117 = sphi 0, %s103
    %s125 = sphi 0, %s127
    %s128 = sphi 0, %s125
    %s129 = sphi 0, %s128
    %s145 = sphi 0, %s129
  $region4: #{ssi_forward.15} parent=0 // loop_header_branch
    %13 = sbr.rel (%p11) target = $region8
  $region5: #{ssi_forward.15} parent=0 // loop_body
    %s15 = ssub.s32 %s10, 1
    %s16 = ssub.s32 %s10, 2
    %s23 = sadd.s32 1, %s18
    %p24 = scmp.ge.s32.totalorder %s23, 1
    %s25 = scalar_select %p24, 0, %s23
    %s26 = sadd.s32 1, %s17
    %s27 = scalar_select %p24, %s26, %s17
    %p28 = scmp.ge.s32.totalorder %s27, 2
    %s29 = scalar_select %p28, 0, %s27
    %s30 = ssub.s32 %s17, %s29
    %s31 = ssub.s32 %s18, %s25
    %s32 = sor.u32 %s30, %s31
    %p33 = scmp.eq.s32.totalorder %s32, 0
    %s35 = sadd.s32 %s34, 1
    %s36 = scalar_select %p33, %s34, %s35
    %p39 = pneg %p33
    %p40 = scmp.eq.s32.totalorder %s10, 1
    %p41 = por %p39, %p40
    %p42 = scmp.ne.s32.totalorder %s34, %s37
    %p43 = scmp.eq.s32.totalorder %s10, 0
    %p44 = por %p42, %p43
    %p45 = scmp.ne.s32.totalorder %s34, %s37
    %p46 = scmp.eq.s32.totalorder %s15, 1
    %p47 = por %p45, %p46
    %p48 = scmp.ne.s32.totalorder %s37, %s38
    %p49 = scmp.eq.s32.totalorder %s15, 0
    %p50 = por %p48, %p49
    %p51 = scmp.ne.s32.totalorder %s37, %s38
    %p52 = scmp.eq.s32.totalorder %s16, 1
    %p53 = por %p51, %p52
    %p55 = scmp.ne.s32.totalorder %s38, %s54
    %p56 = scmp.eq.s32.totalorder %s16, 0
    %p57 = por %p55, %p56
    %s59 = sadd.s32 %s58, 1
    %p62 = scmp.eq.s32.totalorder %s10, 1
    %p63 = scmp.ne.s32.totalorder %s58, %s60
    %p64 = scmp.eq.s32.totalorder %s10, 0
    %p65 = por %p63, %p64
    %p66 = scmp.ne.s32.totalorder %s58, %s60
    %p67 = scmp.eq.s32.totalorder %s15, 1
    %p68 = por %p66, %p67
    %p69 = scmp.ne.s32.totalorder %s60, %s61
    %p70 = scmp.eq.s32.totalorder %s15, 0
    %p71 = por %p69, %p70
    %p72 = scmp.ne.s32.totalorder %s60, %s61
    %p73 = scmp.eq.s32.totalorder %s16, 1
    %p74 = por %p72, %p73
    %p76 = scmp.ne.s32.totalorder %s61, %s75
    %p77 = scmp.eq.s32.totalorder %s16, 0
    %p78 = por %p76, %p77
    %s80 = sadd.s32 %s79, 1
    %p83 = scmp.eq.s32.totalorder %s10, 1
    %p84 = scmp.ne.s32.totalorder %s79, %s81
    %p85 = scmp.eq.s32.totalorder %s10, 0
    %p86 = por %p84, %p85
    %p87 = scmp.ne.s32.totalorder %s79, %s81
    %p88 = scmp.eq.s32.totalorder %s15, 1
    %p89 = por %p87, %p88
    %p90 = scmp.ne.s32.totalorder %s81, %s82
    %p91 = scmp.eq.s32.totalorder %s15, 0
    %p92 = por %p90, %p91
    %p93 = scmp.ne.s32.totalorder %s81, %s82
    %p94 = scmp.eq.s32.totalorder %s16, 1
    %p95 = por %p93, %p94
    %p97 = scmp.ne.s32.totalorder %s82, %s96
    %p98 = scmp.eq.s32.totalorder %s16, 0
    %p99 = por %p97, %p98
    %s101 = sadd.s32 %s100, 1
    %p104 = scmp.eq.s32.totalorder %s10, 1
    %p105 = scmp.ne.s32.totalorder %s100, %s102
    %p106 = scmp.eq.s32.totalorder %s10, 0
    %p107 = por %p105, %p106
    %p108 = scmp.ne.s32.totalorder %s100, %s102
    %p109 = scmp.eq.s32.totalorder %s15, 1
    %p110 = por %p108, %p109
    %p111 = scmp.ne.s32.totalorder %s102, %s103
    %p112 = scmp.eq.s32.totalorder %s15, 0
    %p113 = por %p111, %p112
    %p114 = scmp.ne.s32.totalorder %s102, %s103
    %p115 = scmp.eq.s32.totalorder %s16, 1
    %p116 = por %p114, %p115
    %p118 = scmp.ne.s32.totalorder %s103, %s117
    %p119 = scmp.eq.s32.totalorder %s16, 0
    %p120 = por %p118, %p119
    %s121 = ssub.s32 %s17, %s29
    %s122 = ssub.s32 %s18, %s25
    %s123 = sor.u32 %s121, %s122
    %p124 = scmp.eq.s32.totalorder %s123, 0
    %s126 = sadd.s32 %s125, 1
    %s127 = scalar_select %p124, %s125, %s126
    %p130 = pneg %p124
    %p131 = scmp.eq.s32.totalorder %s10, 1
    %p132 = por %p130, %p131
    %p133 = scmp.ne.s32.totalorder %s125, %s128
    %p134 = scmp.eq.s32.totalorder %s10, 0
    %p135 = por %p133, %p134
    %p136 = scmp.ne.s32.totalorder %s125, %s128
    %p137 = scmp.eq.s32.totalorder %s15, 1
    %p138 = por %p136, %p137
    %p139 = scmp.ne.s32.totalorder %s128, %s129
    %p140 = scmp.eq.s32.totalorder %s15, 0
    %p141 = por %p139, %p140
    %p142 = scmp.ne.s32.totalorder %s128, %s129
    %p143 = scmp.eq.s32.totalorder %s16, 1
    %p144 = por %p142, %p143
    %p146 = scmp.ne.s32.totalorder %s129, %s145
    %p147 = scmp.eq.s32.totalorder %s16, 0
    %p148 = por %p146, %p147
    %p149 = scmp.le.s32.totalorder 1, %s10
    %p150 = scmp.lt.s32.totalorder %s10, 3
    %p151 = pnand %p149, %p150
    %p152 = pneg %p151
    // Predicated region
    $region9: #{ssi_forward.15} parent=5 // pred_check
      _
    $region10: #{ssi_forward.15} parent=5 // pred_check_branch
      %154 = sbr.rel (%p151) target = $region12
    $region11: #{ssi_forward.15} parent=5 // pred_region
      %s155 = ssub.s32 %s10, 1
      // Predicated region
      $region13: #{ssi_forward.15} parent=11 // pred_check
        %p156 = pneg %p71
      $region14: #{ssi_forward.15} parent=11 // pred_check_branch
        %158 = sbr.rel (%p156) target = $region16
      $region15: #{ssi_forward.15} parent=11 // pred_region
        _
      $region16: #{ssi_forward.15} parent=11 // pred_fallthru
        _
      // Predicated region
      $region17: #{ssi_forward.15} parent=11 // pred_check
        %p159 = pneg %p92
      $region18: #{ssi_forward.15} parent=11 // pred_check_branch
        %161 = sbr.rel (%p159) target = $region20
      $region19: #{ssi_forward.15} parent=11 // pred_region
        _
      $region20: #{ssi_forward.15} parent=11 // pred_fallthru
        _
      // Predicated region
      $region21: #{ssi_forward.15} parent=11 // pred_check
        %p162 = pneg %p113
      $region22: #{ssi_forward.15} parent=11 // pred_check_branch
        %164 = sbr.rel (%p162) target = $region24
      $region23: #{ssi_forward.15} parent=11 // pred_region
        _
      $region24: #{ssi_forward.15} parent=11 // pred_fallthru
        _
    $region12: #{ssi_forward.15} parent=5 // pred_fallthru
      _
    %p165 = scmp.lt.s32.totalorder %s10, 2
    // Predicated region
    $region25: #{ssi_forward.15} parent=5 // pred_check
      %p166 = pneg %p165
    $region26: #{ssi_forward.15} parent=5 // pred_check_branch
      %168 = sbr.rel (%p166) target = $region28
    $region27: #{ssi_forward.15} parent=5 // pred_region
      // Predicated region
      $region29: #{ssi_forward.15} parent=27 // pred_check
        %p169 = pneg %p44
      $region30: #{ssi_forward.15} parent=27 // pred_check_branch
        %171 = sbr.rel (%p169) target = $region32
      $region31: #{ssi_forward.15} parent=27 // pred_region
        %s172 = smul.u32 2, %s18
        %p173 = scmp.lt.s32.totalorder %s17, 1
        %s174 = scalar_select %p173, %s17, 1
        %p175 = scmp.lt.s32.totalorder %s172, 1
        %s176 = scalar_select %p175, %s172, 1
        %s177 = smul.addr %s174, 2
        %s178 = sadd.s32 %s176, %s177
        %s179 = smul.addr %s178, 4
        %s180 = scalar_lea.vmem %s0, %s179
        %s181 = smul.u32 2, %s18
      $region32: #{ssi_forward.15} parent=27 // pred_fallthru
        _
    $region28: #{ssi_forward.15} parent=5 // pred_fallthru
      _
    %p182 = scmp.le.s32.totalorder 1, %s10
    %p183 = scmp.lt.s32.totalorder %s10, 3
    %p184 = pnand %p182, %p183
    %p185 = pneg %p184
    // Predicated region
    $region33: #{ssi_forward.15} parent=5 // pred_check
      _
    $region34: #{ssi_forward.15} parent=5 // pred_check_branch
      %187 = sbr.rel (%p184) target = $region36
    $region35: #{ssi_forward.15} parent=5 // pred_region
      %s188 = ssub.s32 %s10, 1
      %s189 = smul.u32 2, %s20
      %p190 = scmp.lt.s32.totalorder %s19, 1
      %s191 = scalar_select %p190, %s19, 1
      %p192 = scmp.lt.s32.totalorder %s189, 1
      %s193 = scalar_select %p192, %s189, 1
      %s194 = smul.addr %s191, 2
      %s195 = sadd.s32 %s193, %s194
      %s196 = smul.addr %s195, 4
      %s197 = scalar_lea.vmem %s0, %s196
      %p198 = pneg %p50
      %p199 = pneg %p47
      %p200 = pneg %p71
      %p201 = pneg %p68
      %p202 = pneg %p92
      %p203 = pneg %p89
      %p204 = pneg %p113
      %p205 = pneg %p110
      %p206 = pneg %p141
      %p207 = pneg %p138
      %s208 = smul.u32 2, %s20
      %p209 = scmp.lt.s32.totalorder %s19, 1
      %s210 = scalar_select %p209, %s19, 1
      %p211 = scmp.lt.s32.totalorder %s208, 1
      %s212 = scalar_select %p211, %s208, 1
      %s213 = smul.addr %s210, 2
      %s214 = sadd.s32 %s212, %s213
      %s215 = smul.addr %s214, 4
      %s216 = scalar_lea.vmem %s4, %s215
      %s217 = smul.u32 2, %s20
      %p218 = scmp.lt.s32.totalorder %s19, 1
      %s219 = scalar_select %p218, %s19, 1
      %p220 = scmp.lt.s32.totalorder %s217, 1
      %s221 = scalar_select %p220, %s217, 1
      %s222 = smul.addr %s219, 2
      %s223 = sadd.s32 %s221, %s222
      %s224 = smul.addr %s223, 4
      %s225 = scalar_lea.vmem %s0, %s224
      %s226 = smul.u32 2, %s20
      %s227 = smul.u32 2, %s20
      %p228 = scmp.lt.s32.totalorder %s19, 1
      %s229 = scalar_select %p228, %s19, 1
      %p230 = scmp.lt.s32.totalorder %s227, 1
      %s231 = scalar_select %p230, %s227, 1
      %s232 = smul.addr %s229, 2
      %s233 = sadd.s32 %s231, %s232
      %s234 = smul.addr %s233, 4
      %s235 = scalar_lea.vmem %s4, %s234
      %s236 = smul.u32 2, %s20
      %v238 = vld [vmem:[%s1] sm:$0xf]
      %v239 = vld [vmem:[%s225] sm:$0xff]
      %v241 = vunpack.c.l.b16 %v239
      %v242 = vunpack.c.h.b16 %v239
      %v243 = vpack.c.b16 %v241, %v241
      %v244 = vpack.c.b16 %v242, %v242
      %vm245 = vcmask 64512
      %v247 = vsel %vm245, %v238, 0
      %vm249 = vcmask 1043456
      %v251 = vsel %vm249, %v243, 0
      %v254 = vsel %vm249, %v244, 0
      %256 = vmatprep.subr.bf16.mxu0 %v254
      %257 = vmatpush1.bf16.msra.mxu0 %v251
      %258 = vmatprep.subr.bf16.mxu0 0
      %259 = vmatpush1.bf16.msra.mxu0 0
      %260 = vmatprep.subr.bf16.mxu0 0
      %261 = vmatpush1.bf16.msra.mxu0 0
      %262 = vmatprep.subr.bf16.mxu0 0
      %263 = vmatpush1.bf16.msra.mxu0 0
      %264 = vmatprep.subr.bf16.mxu0 0
      %265 = vmatpush1.bf16.msra.mxu0 0
      %266 = vmatprep.subr.bf16.mxu0 0
      %267 = vmatpush1.bf16.msra.mxu0 0
      %268 = vmatprep.subr.bf16.mxu0 0
      %269 = vmatpush1.bf16.msra.mxu0 0
      %270 = vmatprep.subr.bf16.mxu0 0
      %271 = vmatpush1.bf16.msra.mxu0 0
      %272 = vmatprep.subr.bf16.mxu0 0
      %273 = vmatpush1.bf16.msra.mxu0 0
      %274 = vmatprep.subr.bf16.mxu0 0
      %275 = vmatpush1.bf16.msra.mxu0 0
      %276 = vmatprep.subr.bf16.mxu0 0
      %277 = vmatpush1.bf16.msra.mxu0 0
      %278 = vmatprep.subr.bf16.mxu0 0
      %279 = vmatpush1.bf16.msra.mxu0 0
      %280 = vmatprep.subr.bf16.mxu0 0
      %281 = vmatpush1.bf16.msra.mxu0 0
      %282 = vmatprep.subr.bf16.mxu0 0
      %283 = vmatpush1.bf16.msra.mxu0 0
      %284 = vmatprep.subr.bf16.mxu0 0
      %285 = vmatpush1.bf16.msra.mxu0 0
      %286 = vmatprep.subr.bf16.mxu0 0
      %287 = vmatpush1.bf16.msra.mxu0 0
      %288 = vmatprep.mubr.bf16.mxu0 0
      %289 = vmatmul.mubr.bf16.gmra.mrb[0].mxu0 %v247
      %v290 = vpop.f32.mrb[0].mxu0
      %v291 = vadd.f32 0.0, %v290
      %v292 = vpop.f32.mrb[0].mxu0
      %v293 = vadd.f32 0.0, %v292
      %v294 = vpop.f32.mrb[0].mxu0
      %v295 = vpop.f32.mrb[0].mxu0
      %296 = vdwg.mxu0
      %v297 = vld [vmem:[%s2] sm:$0xff]
      %299 = vset.pattern.permute.xlu0 0
      %300 = vperm.xlu0 %299, %v297
      %v301 = vpop.permute.xlu0 %300
      %v303 = vmul.f32 %v291, %v301
      %v304 = vmul.f32 %v293, %v301
      %v305 = vld [vmem:[%s3] sm:$0xff]
      %307 = vset.pattern.permute.xlu0 0
      %308 = vperm.xlu0 %307, %v305
      %v309 = vpop.permute.xlu0 %308
      %v311 = vadd.f32 %v303, %v309
      %v312 = vadd.f32 %v304, %v309
      %s313 = smul.u32 %s20, 256
      %v314 = vlaneseq
      %v315 = vand.u32 %v314, 127
      %v316 = vadd.s32 %v315, 128
      %v317 = vstv %s313
      %v318 = vadd.s32 %v317, %v315
      %v319 = vadd.s32 %v317, %v316
      %vm320 = vcmp.lt.s32.totalorder %v318, 144
      %vm321 = vcmp.lt.s32.totalorder %v319, 144
      %v322 = vsel %vm320, %v311, 0.0
      %v323 = vsel %vm321, %v312, 0.0
      %v324 = vpack.c.bf16 %v322, %v322
      %v325 = vpack.c.bf16 %v323, %v323
      %v328 = vunpack.c.l.b16 %v324
      %v329 = vunpack.c.l.b16 %v325
      %v330 = vpack.c.b16 %v329, %v328
      %332 = vst [vmem:[%s235] sm:$0xff] %v330
      %s333 = smul.u32 2, %s20
      %p334 = scmp.lt.s32.totalorder %s19, 1
      %s335 = scalar_select %p334, %s19, 1
      %p336 = scmp.lt.s32.totalorder %s333, 1
      %s337 = scalar_select %p336, %s333, 1
      %s338 = smul.addr %s335, 2
      %s339 = sadd.s32 %s337, %s338
      %s340 = smul.addr %s339, 4
      %s341 = scalar_lea.vmem %s4, %s340
      // Predicated region
      $region37: #{ssi_forward.15} parent=35 // pred_check
        %p342 = pneg %p138
      $region38: #{ssi_forward.15} parent=35 // pred_check_branch
        %344 = sbr.rel (%p342) target = $region40
      $region39: #{ssi_forward.15} parent=35 // pred_region
        %s345 = smul.u32 2, %s20
      $region40: #{ssi_forward.15} parent=35 // pred_fallthru
        _
    $region36: #{ssi_forward.15} parent=5 // pred_fallthru
      _
    %p346 = scmp.le.s32.totalorder 2, %s10
    // Predicated region
    $region41: #{ssi_forward.15} parent=5 // pred_check
      %p347 = pneg %p346
    $region42: #{ssi_forward.15} parent=5 // pred_check_branch
      %349 = sbr.rel (%p347) target = $region44
    $region43: #{ssi_forward.15} parent=5 // pred_region
      %s350 = ssub.s32 %s10, 2
      // Predicated region
      $region45: #{ssi_forward.15} parent=43 // pred_check
        %p351 = pneg %p144
      $region46: #{ssi_forward.15} parent=43 // pred_check_branch
        %353 = sbr.rel (%p351) target = $region48
      $region47: #{ssi_forward.15} parent=43 // pred_region
        %s354 = smul.u32 2, %s22
        %p355 = scmp.lt.s32.totalorder %s21, 1
        %s356 = scalar_select %p355, %s21, 1
        %p357 = scmp.lt.s32.totalorder %s354, 1
        %s358 = scalar_select %p357, %s354, 1
        %s359 = smul.addr %s356, 2
        %s360 = sadd.s32 %s358, %s359
        %s361 = smul.addr %s360, 4
        %s362 = scalar_lea.vmem %s4, %s361
      $region48: #{ssi_forward.15} parent=43 // pred_fallthru
        _
    $region44: #{ssi_forward.15} parent=5 // pred_fallthru
      _
  $region6: #{ssi_forward.15} parent=0 // loop_footer
    %s14 = sadd.s32 1, %s10
  $region7: #{ssi_forward.15} parent=0 // loop_footer_branch
    %9 = sbr.rel target = $region3
  $region8: #{ssi_forward.15} parent=0 // loop_exit
    _

// kernel: ssi_forward.14
$region0: #{ssi_forward.14}
  #allocation0 [shape = 'u32[]', space=smem, size = 0x4, offset = 0x4, fixed_abs, tag = 'smem constant byte address 0x4 - core index']
  #allocation1 [shape = 'u32[144,128]{1,0:T(1,128)}', space=vmem, size = 0x12000, scoped, tag = 'internal scratch']
  %s0 = inlined_call_operand.vmem [shape: bf16[2,8,256], index: 0, kind: input, shape index: {}]
  %s1 = inlined_call_operand.vmem [shape: bf16[8,8], index: 1, kind: input, shape index: {}]
  %s2 = inlined_call_operand.vmem [shape: f32[8,1], index: 2, kind: output, shape index: {0}]
  %s3 = inlined_call_operand.vmem [shape: f32[8,1], index: 3, kind: output, shape index: {1}]
  %4 = xla_tuple %s2, %s3
  %s5 = sld [smem:[#allocation0]]
  $region53: #{ssi_forward.14} parent=0
    _
  %s7 = ssub.s32 1, %s5
  %s8 = scalar_select 0, %s7, %s5
  loop: start=0, step=1, limit=4
  $region2: #{ssi_forward.14} parent=0 // loop_pre_header
    _
  $region3: #{ssi_forward.14} parent=0 // loop_header
    %s10 = sphi 0, %s14
    %p11 = scmp.ge.s32.totalorder %s10, 4
    %s17 = sphi 0, %s29
    %s18 = sphi 0, %s25
    %s19 = sphi 0, %s17
    %s20 = sphi 0, %s18
    %s21 = sphi 0, %s19
    %s22 = sphi 0, %s20
    %s34 = sphi 0, %s36
    %s37 = sphi 0, %s34
    %s38 = sphi 0, %s37
    %s54 = sphi 0, %s38
    %s58 = sphi 0, %s58
    %s60 = sphi 0, %s58
    %s61 = sphi 0, %s60
    %s75 = sphi 0, %s61
    %s79 = sphi 0, %s79
    %s81 = sphi 0, %s79
    %s82 = sphi 0, %s81
    %s96 = sphi 0, %s82
    %s100 = sphi 0, %s100
    %s102 = sphi 0, %s100
    %s103 = sphi 0, %s102
    %s117 = sphi 0, %s103
  $region4: #{ssi_forward.14} parent=0 // loop_header_branch
    %13 = sbr.rel (%p11) target = $region8
  $region5: #{ssi_forward.14} parent=0 // loop_body
    %s15 = ssub.s32 %s10, 1
    %s16 = ssub.s32 %s10, 2
    %s23 = sadd.s32 1, %s18
    %p24 = scmp.ge.s32.totalorder %s23, 1
    %s25 = scalar_select %p24, 0, %s23
    %s26 = sadd.s32 1, %s17
    %s27 = scalar_select %p24, %s26, %s17
    %p28 = scmp.ge.s32.totalorder %s27, 2
    %s29 = scalar_select %p28, 0, %s27
    %s30 = ssub.s32 %s17, %s29
    %s31 = ssub.s32 %s18, %s25
    %s32 = sor.u32 %s30, %s31
    %p33 = scmp.eq.s32.totalorder %s32, 0
    %s35 = sadd.s32 %s34, 1
    %s36 = scalar_select %p33, %s34, %s35
    %p39 = pneg %p33
    %p40 = scmp.eq.s32.totalorder %s10, 1
    %p41 = por %p39, %p40
    %p42 = scmp.ne.s32.totalorder %s34, %s37
    %p43 = scmp.eq.s32.totalorder %s10, 0
    %p44 = por %p42, %p43
    %p45 = scmp.ne.s32.totalorder %s34, %s37
    %p46 = scmp.eq.s32.totalorder %s15, 1
    %p47 = por %p45, %p46
    %p48 = scmp.ne.s32.totalorder %s37, %s38
    %p49 = scmp.eq.s32.totalorder %s15, 0
    %p50 = por %p48, %p49
    %p51 = scmp.ne.s32.totalorder %s37, %s38
    %p52 = scmp.eq.s32.totalorder %s16, 1
    %p53 = por %p51, %p52
    %p55 = scmp.ne.s32.totalorder %s38, %s54
    %p56 = scmp.eq.s32.totalorder %s16, 0
    %p57 = por %p55, %p56
    %s59 = sadd.s32 %s58, 1
    %p62 = scmp.eq.s32.totalorder %s10, 1
    %p63 = scmp.ne.s32.totalorder %s58, %s60
    %p64 = scmp.eq.s32.totalorder %s10, 0
    %p65 = por %p63, %p64
    %p66 = scmp.ne.s32.totalorder %s58, %s60
    %p67 = scmp.eq.s32.totalorder %s15, 1
    %p68 = por %p66, %p67
    %p69 = scmp.ne.s32.totalorder %s60, %s61
    %p70 = scmp.eq.s32.totalorder %s15, 0
    %p71 = por %p69, %p70
    %p72 = scmp.ne.s32.totalorder %s60, %s61
    %p73 = scmp.eq.s32.totalorder %s16, 1
    %p74 = por %p72, %p73
    %p76 = scmp.ne.s32.totalorder %s61, %s75
    %p77 = scmp.eq.s32.totalorder %s16, 0
    %p78 = por %p76, %p77
    %s80 = sadd.s32 %s79, 1
    %p83 = scmp.eq.s32.totalorder %s10, 1
    %p84 = scmp.ne.s32.totalorder %s79, %s81
    %p85 = scmp.eq.s32.totalorder %s10, 0
    %p86 = por %p84, %p85
    %p87 = scmp.ne.s32.totalorder %s79, %s81
    %p88 = scmp.eq.s32.totalorder %s15, 1
    %p89 = por %p87, %p88
    %p90 = scmp.ne.s32.totalorder %s81, %s82
    %p91 = scmp.eq.s32.totalorder %s15, 0
    %p92 = por %p90, %p91
    %p93 = scmp.ne.s32.totalorder %s81, %s82
    %p94 = scmp.eq.s32.totalorder %s16, 1
    %p95 = por %p93, %p94
    %p97 = scmp.ne.s32.totalorder %s82, %s96
    %p98 = scmp.eq.s32.totalorder %s16, 0
    %p99 = por %p97, %p98
    %s101 = sadd.s32 %s100, 1
    %p104 = scmp.eq.s32.totalorder %s10, 1
    %p105 = scmp.ne.s32.totalorder %s100, %s102
    %p106 = scmp.eq.s32.totalorder %s10, 0
    %p107 = por %p105, %p106
    %p108 = scmp.ne.s32.totalorder %s100, %s102
    %p109 = scmp.eq.s32.totalorder %s15, 1
    %p110 = por %p108, %p109
    %p111 = scmp.ne.s32.totalorder %s102, %s103
    %p112 = scmp.eq.s32.totalorder %s15, 0
    %p113 = por %p111, %p112
    %p114 = scmp.ne.s32.totalorder %s102, %s103
    %p115 = scmp.eq.s32.totalorder %s16, 1
    %p116 = por %p114, %p115
    %p118 = scmp.ne.s32.totalorder %s103, %s117
    %p119 = scmp.eq.s32.totalorder %s16, 0
    %p120 = por %p118, %p119
    %p121 = scmp.le.s32.totalorder 1, %s10
    %p122 = scmp.lt.s32.totalorder %s10, 3
    %p123 = pnand %p121, %p122
    %p124 = pneg %p123
    // Predicated region
    $region9: #{ssi_forward.14} parent=5 // pred_check
      _
    $region10: #{ssi_forward.14} parent=5 // pred_check_branch
      %126 = sbr.rel (%p123) target = $region12
    $region11: #{ssi_forward.14} parent=5 // pred_region
      %s127 = ssub.s32 %s10, 1
      // Predicated region
      $region13: #{ssi_forward.14} parent=11 // pred_check
        %p128 = pneg %p71
      $region14: #{ssi_forward.14} parent=11 // pred_check_branch
        %130 = sbr.rel (%p128) target = $region16
      $region15: #{ssi_forward.14} parent=11 // pred_region
        _
      $region16: #{ssi_forward.14} parent=11 // pred_fallthru
        _
    $region12: #{ssi_forward.14} parent=5 // pred_fallthru
      _
    %p131 = scmp.lt.s32.totalorder %s10, 2
    // Predicated region
    $region17: #{ssi_forward.14} parent=5 // pred_check
      %p132 = pneg %p131
    $region18: #{ssi_forward.14} parent=5 // pred_check_branch
      %134 = sbr.rel (%p132) target = $region20
    $region19: #{ssi_forward.14} parent=5 // pred_region
      // Predicated region
      $region21: #{ssi_forward.14} parent=19 // pred_check
        %p135 = pneg %p44
      $region22: #{ssi_forward.14} parent=19 // pred_check_branch
        %137 = sbr.rel (%p135) target = $region24
      $region23: #{ssi_forward.14} parent=19 // pred_region
        %s138 = smul.u32 2, %s18
        %p139 = scmp.lt.s32.totalorder %s17, 1
        %s140 = scalar_select %p139, %s17, 1
        %p141 = scmp.lt.s32.totalorder %s138, 1
        %s142 = scalar_select %p141, %s138, 1
        %s143 = smul.addr %s140, 2
        %s144 = sadd.s32 %s142, %s143
        %s145 = smul.addr %s144, 4
        %s146 = scalar_lea.vmem %s0, %s145
        %s147 = smul.u32 2, %s18
      $region24: #{ssi_forward.14} parent=19 // pred_fallthru
        _
    $region20: #{ssi_forward.14} parent=5 // pred_fallthru
      _
    %p148 = scmp.le.s32.totalorder 1, %s10
    %p149 = scmp.lt.s32.totalorder %s10, 3
    %p150 = pnand %p148, %p149
    %p151 = pneg %p150
    // Predicated region
    $region25: #{ssi_forward.14} parent=5 // pred_check
      _
    $region26: #{ssi_forward.14} parent=5 // pred_check_branch
      %153 = sbr.rel (%p150) target = $region28
    $region27: #{ssi_forward.14} parent=5 // pred_region
      %s154 = ssub.s32 %s10, 1
      %s155 = smul.u32 2, %s20
      %p156 = scmp.lt.s32.totalorder %s19, 1
      %s157 = scalar_select %p156, %s19, 1
      %p158 = scmp.lt.s32.totalorder %s155, 1
      %s159 = scalar_select %p158, %s155, 1
      %s160 = smul.addr %s157, 2
      %s161 = sadd.s32 %s159, %s160
      %s162 = smul.addr %s161, 4
      %s163 = scalar_lea.vmem %s0, %s162
      %p164 = pneg %p50
      %p165 = pneg %p47
      %p166 = pneg %p71
      %p167 = pneg %p68
      %p168 = pneg %p92
      %p169 = pneg %p89
      %p170 = pneg %p113
      %p171 = pneg %p110
      %s172 = smul.u32 2, %s20
      %p173 = scmp.lt.s32.totalorder %s19, 1
      %s174 = scalar_select %p173, %s19, 1
      %p175 = scmp.lt.s32.totalorder %s172, 1
      %s176 = scalar_select %p175, %s172, 1
      %s177 = smul.addr %s174, 2
      %s178 = sadd.s32 %s176, %s177
      %s179 = smul.addr %s178, 4
      %s180 = scalar_lea.vmem %s0, %s179
      %s181 = smul.u32 2, %s20
      %p183 = scmp.eq.s32.totalorder %s19, 0
      %p184 = scmp.eq.s32.totalorder %s20, 0
      %p185 = pnand %p183, %p184
      %p186 = pneg %p185
      // Predicated region
      $region29: #{ssi_forward.14} parent=27 // pred_check
        _
      $region30: #{ssi_forward.14} parent=27 // pred_check_branch
        %188 = sbr.rel (%p185) target = $region32
      $region31: #{ssi_forward.14} parent=27 // pred_region
        %vm189 = vcmask 7168
        %190 = vst.msk [vmem:[%s2] sm:$0xff] %vm189, 0.0
        %191 = vst.msk [vmem:[%s3] sm:$0xff] %vm189, 0.0
      $region32: #{ssi_forward.14} parent=27 // pred_fallthru
        _
      %v192 = vld [vmem:[%s1] sm:$0xf]
      %v193 = vld [vmem:[%s180] sm:$0xff]
      %v195 = vunpack.c.l.b16 %v193
      %v196 = vunpack.c.h.b16 %v193
      %v197 = vpack.c.b16 %v195, %v195
      %v198 = vpack.c.b16 %v196, %v196
      %vm199 = vcmask 64512
      %v201 = vsel %vm199, %v192, 0
      %vm203 = vcmask 1043456
      %v205 = vsel %vm203, %v197, 0
      %v208 = vsel %vm203, %v198, 0
      %210 = vmatprep.subr.bf16.mxu0 %v208
      %211 = vmatpush1.bf16.msra.mxu0 %v205
      %212 = vmatprep.subr.bf16.mxu0 0
      %213 = vmatpush1.bf16.msra.mxu0 0
      %214 = vmatprep.subr.bf16.mxu0 0
      %215 = vmatpush1.bf16.msra.mxu0 0
      %216 = vmatprep.subr.bf16.mxu0 0
      %217 = vmatpush1.bf16.msra.mxu0 0
      %218 = vmatprep.subr.bf16.mxu0 0
      %219 = vmatpush1.bf16.msra.mxu0 0
      %220 = vmatprep.subr.bf16.mxu0 0
      %221 = vmatpush1.bf16.msra.mxu0 0
      %222 = vmatprep.subr.bf16.mxu0 0
      %223 = vmatpush1.bf16.msra.mxu0 0
      %224 = vmatprep.subr.bf16.mxu0 0
      %225 = vmatpush1.bf16.msra.mxu0 0
      %226 = vmatprep.subr.bf16.mxu0 0
      %227 = vmatpush1.bf16.msra.mxu0 0
      %228 = vmatprep.subr.bf16.mxu0 0
      %229 = vmatpush1.bf16.msra.mxu0 0
      %230 = vmatprep.subr.bf16.mxu0 0
      %231 = vmatpush1.bf16.msra.mxu0 0
      %232 = vmatprep.subr.bf16.mxu0 0
      %233 = vmatpush1.bf16.msra.mxu0 0
      %234 = vmatprep.subr.bf16.mxu0 0
      %235 = vmatpush1.bf16.msra.mxu0 0
      %236 = vmatprep.subr.bf16.mxu0 0
      %237 = vmatpush1.bf16.msra.mxu0 0
      %238 = vmatprep.subr.bf16.mxu0 0
      %239 = vmatpush1.bf16.msra.mxu0 0
      %240 = vmatprep.subr.bf16.mxu0 0
      %241 = vmatpush1.bf16.msra.mxu0 0
      %242 = vmatprep.mubr.bf16.mxu0 0
      %243 = vmatmul.mubr.bf16.gmra.mrb[0].mxu0 %v201
      %v244 = vpop.f32.mrb[0].mxu0
      %v245 = vadd.f32 0.0, %v244
      %v246 = vpop.f32.mrb[0].mxu0
      %v247 = vadd.f32 0.0, %v246
      %v248 = vpop.f32.mrb[0].mxu0
      %v249 = vpop.f32.mrb[0].mxu0
      %250 = vdwg.mxu0
      %v251 = vld [vmem:[%s2] sm:$0xff]
      %v252 = vadd.f32 %v245, %v247
      %253 = vadd.xlane.f32.xlu0 %v252
      %v254 = vpop.xlane.xlu0 %253
      %v255 = vadd.f32 %v251, %v254
      %vm256 = vcmask 7168
      %257 = vst.msk [vmem:[%s2] sm:$0xff] %vm256, %v255
      %v258 = vld [vmem:[%s3] sm:$0xff]
      %v259 = vmul.f32 %v245, %v245
      %v260 = vmul.f32 %v247, %v247
      %v261 = vadd.f32 %v259, %v260
      %262 = vadd.xlane.f32.xlu0 %v261
      %v263 = vpop.xlane.xlu0 %262
      %v264 = vadd.f32 %v258, %v263
      %265 = vst.msk [vmem:[%s3] sm:$0xff] %vm256, %v264
      // Predicated region
      $region33: #{ssi_forward.14} parent=27 // pred_check
        %p266 = pneg %p89
      $region34: #{ssi_forward.14} parent=27 // pred_check_branch
        %268 = sbr.rel (%p266) target = $region36
      $region35: #{ssi_forward.14} parent=27 // pred_region
        _
      $region36: #{ssi_forward.14} parent=27 // pred_fallthru
        _
      // Predicated region
      $region37: #{ssi_forward.14} parent=27 // pred_check
        %p269 = pneg %p110
      $region38: #{ssi_forward.14} parent=27 // pred_check_branch
        %271 = sbr.rel (%p269) target = $region40
      $region39: #{ssi_forward.14} parent=27 // pred_region
        _
      $region40: #{ssi_forward.14} parent=27 // pred_fallthru
        _
      // Predicated region
      $region41: #{ssi_forward.14} parent=27 // pred_check
        %p272 = pneg %p89
      $region42: #{ssi_forward.14} parent=27 // pred_check_branch
        %274 = sbr.rel (%p272) target = $region44
      $region43: #{ssi_forward.14} parent=27 // pred_region
        _
      $region44: #{ssi_forward.14} parent=27 // pred_fallthru
        _
      // Predicated region
      $region45: #{ssi_forward.14} parent=27 // pred_check
        %p275 = pneg %p110
      $region46: #{ssi_forward.14} parent=27 // pred_check_branch
        %277 = sbr.rel (%p275) target = $region48
      $region47: #{ssi_forward.14} parent=27 // pred_region
        _
      $region48: #{ssi_forward.14} parent=27 // pred_fallthru
        _
    $region28: #{ssi_forward.14} parent=5 // pred_fallthru
      _
    %p278 = scmp.le.s32.totalorder 2, %s10
    // Predicated region
    $region49: #{ssi_forward.14} parent=5 // pred_check
      %p279 = pneg %p278
    $region50: #{ssi_forward.14} parent=5 // pred_check_branch
      %281 = sbr.rel (%p279) target = $region52
    $region51: #{ssi_forward.14} parent=5 // pred_region
      %s282 = ssub.s32 %s10, 2
    $region52: #{ssi_forward.14} parent=5 // pred_fallthru
      _
  $region6: #{ssi_forward.14} parent=0 // loop_footer
    %s14 = sadd.s32 1, %s10
  $region7: #{ssi_forward.14} parent=0 // loop_footer_branch
    %9 = sbr.rel target = $region3
  $region8: #{ssi_forward.14} parent=0 // loop_exit
    _

// kernel: ssi_forward.17
$region0: #{ssi_forward.17}
  #allocation0 [shape = 'u32[]', space=smem, size = 0x4, offset = 0x4, fixed_abs, tag = 'smem constant byte address 0x4 - core index']
  #allocation1 [shape = 'u32[144,128]{1,0:T(1,128)}', space=vmem, size = 0x12000, scoped, tag = 'internal scratch']
  %s0 = inlined_call_operand.vmem [shape: bf16[16,2048], index: 0, kind: input, shape index: {}]
  %s1 = inlined_call_operand.vmem [shape: f32[16,16], index: 1, kind: output, shape index: {}]
  %s2 = sld [smem:[#allocation0]]
  $region18: #{ssi_forward.17} parent=0
    _
  %s4 = ssub.s32 1, %s2
  %s5 = scalar_select 0, %s4, %s2
  // Predicated region
  $region2: #{ssi_forward.17} parent=0 // pred_check
    _
  $region3: #{ssi_forward.17} parent=0 // pred_check_branch
    %7 = sbr.rel (0) target = $region5
  $region4: #{ssi_forward.17} parent=0 // pred_region
    _
  $region5: #{ssi_forward.17} parent=0 // pred_fallthru
    _
  %p9 = scmp.eq.s32.totalorder 0, 0
  // Predicated region
  $region6: #{ssi_forward.17} parent=0 // pred_check
    %p10 = pneg %p9
  $region7: #{ssi_forward.17} parent=0 // pred_check_branch
    %12 = sbr.rel (%p10) target = $region9
  $region8: #{ssi_forward.17} parent=0 // pred_region
    %vm13 = vcmask 130048
    %14 = vst.msk [vmem:[%s1] sm:$0xff] %vm13, 0.0
    %15 = vst.msk [vmem:[%s1 + $0x8] sm:$0xff] %vm13, 0.0
  $region9: #{ssi_forward.17} parent=0 // pred_fallthru
    _
  %v16 = vld [vmem:[%s0] sm:$0xff]
  %v17 = vld [vmem:[%s0 + $0x8] sm:$0xff]
  %v18 = vld [vmem:[%s0 + $0x10] sm:$0xff]
  %v19 = vld [vmem:[%s0 + $0x18] sm:$0xff]
  %v20 = vld [vmem:[%s0 + $0x20] sm:$0xff]
  %v21 = vld [vmem:[%s0 + $0x28] sm:$0xff]
  %v22 = vld [vmem:[%s0 + $0x30] sm:$0xff]
  %v23 = vld [vmem:[%s0 + $0x38] sm:$0xff]
  %v24 = vld [vmem:[%s0 + $0x40] sm:$0xff]
  %v25 = vld [vmem:[%s0 + $0x48] sm:$0xff]
  %v26 = vld [vmem:[%s0 + $0x50] sm:$0xff]
  %v27 = vld [vmem:[%s0 + $0x58] sm:$0xff]
  %v28 = vld [vmem:[%s0 + $0x60] sm:$0xff]
  %v29 = vld [vmem:[%s0 + $0x68] sm:$0xff]
  %v30 = vld [vmem:[%s0 + $0x70] sm:$0xff]
  %v31 = vld [vmem:[%s0 + $0x78] sm:$0xff]
  %v32 = vld [vmem:[%s1] sm:$0xff]
  %v33 = vld [vmem:[%s1 + $0x8] sm:$0xff]
  %v50 = vunpack.c.l.b16 %v16
  %v51 = vunpack.c.h.b16 %v16
  %v52 = vunpack.c.l.b16 %v17
  %v53 = vunpack.c.h.b16 %v17
  %v54 = vunpack.c.l.b16 %v18
  %v55 = vunpack.c.h.b16 %v18
  %v56 = vunpack.c.l.b16 %v19
  %v57 = vunpack.c.h.b16 %v19
  %v58 = vunpack.c.l.b16 %v20
  %v59 = vunpack.c.h.b16 %v20
  %v60 = vunpack.c.l.b16 %v21
  %v61 = vunpack.c.h.b16 %v21
  %v62 = vunpack.c.l.b16 %v22
  %v63 = vunpack.c.h.b16 %v22
  %v64 = vunpack.c.l.b16 %v23
  %v65 = vunpack.c.h.b16 %v23
  %v66 = vunpack.c.l.b16 %v24
  %v67 = vunpack.c.h.b16 %v24
  %v68 = vunpack.c.l.b16 %v25
  %v69 = vunpack.c.h.b16 %v25
  %v70 = vunpack.c.l.b16 %v26
  %v71 = vunpack.c.h.b16 %v26
  %v72 = vunpack.c.l.b16 %v27
  %v73 = vunpack.c.h.b16 %v27
  %v74 = vunpack.c.l.b16 %v28
  %v75 = vunpack.c.h.b16 %v28
  %v76 = vunpack.c.l.b16 %v29
  %v77 = vunpack.c.h.b16 %v29
  %v78 = vunpack.c.l.b16 %v30
  %v79 = vunpack.c.h.b16 %v30
  %v80 = vunpack.c.l.b16 %v31
  %v81 = vunpack.c.h.b16 %v31
  %v82 = vpack.c.b16 %v66, %v50
  %v83 = vpack.c.b16 %v67, %v51
  %v84 = vpack.c.b16 %v68, %v52
  %v85 = vpack.c.b16 %v69, %v53
  %v86 = vpack.c.b16 %v70, %v54
  %v87 = vpack.c.b16 %v71, %v55
  %v88 = vpack.c.b16 %v72, %v56
  %v89 = vpack.c.b16 %v73, %v57
  %v90 = vpack.c.b16 %v74, %v58
  %v91 = vpack.c.b16 %v75, %v59
  %v92 = vpack.c.b16 %v76, %v60
  %v93 = vpack.c.b16 %v77, %v61
  %v94 = vpack.c.b16 %v78, %v62
  %v95 = vpack.c.b16 %v79, %v63
  %v96 = vpack.c.b16 %v80, %v64
  %v97 = vpack.c.b16 %v81, %v65
  %114 = vmatprep.subr.bf16.mxu0 %v83
  %115 = vmatpush1.bf16.xpose.msra.mxu0 %v82
  %116 = vmatprep.subr.bf16.mxu0 0
  %117 = vmatpush1.bf16.xpose.msra.mxu0 0
  %118 = vmatprep.subr.bf16.mxu0 0
  %119 = vmatpush1.bf16.xpose.msra.mxu0 0
  %120 = vmatprep.subr.bf16.mxu0 0
  %121 = vmatpush1.bf16.xpose.msra.mxu0 0
  %122 = vmatprep.subr.bf16.mxu0 0
  %123 = vmatpush1.bf16.xpose.msra.mxu0 0
  %124 = vmatprep.subr.bf16.mxu0 0
  %125 = vmatpush1.bf16.xpose.msra.mxu0 0
  %126 = vmatprep.subr.bf16.mxu0 0
  %127 = vmatpush1.bf16.xpose.msra.mxu0 0
  %128 = vmatprep.subr.bf16.mxu0 0
  %129 = vmatpush1.bf16.xpose.msra.mxu0 0
  %130 = vmatprep.subr.bf16.mxu0 0
  %131 = vmatpush1.bf16.xpose.msra.mxu0 0
  %132 = vmatprep.subr.bf16.mxu0 0
  %133 = vmatpush1.bf16.xpose.msra.mxu0 0
  %134 = vmatprep.subr.bf16.mxu0 0
  %135 = vmatpush1.bf16.xpose.msra.mxu0 0
  %136 = vmatprep.subr.bf16.mxu0 0
  %137 = vmatpush1.bf16.xpose.msra.mxu0 0
  %138 = vmatprep.subr.bf16.mxu0 0
  %139 = vmatpush1.bf16.xpose.msra.mxu0 0
  %140 = vmatprep.subr.bf16.mxu0 0
  %141 = vmatpush1.bf16.xpose.msra.mxu0 0
  %142 = vmatprep.subr.bf16.mxu0 0
  %143 = vmatpush1.bf16.xpose.msra.mxu0 0
  %144 = vmatprep.subr.bf16.mxu0 0
  %145 = vmatpush1.bf16.xpose.msra.mxu0 0
  %146 = vmatprep.mubr.bf16.mxu0 %v83
  %147 = vmatmul.mubr.bf16.gmra.mrb[0].mxu0 %v82
  %v148 = vpop.f32.mrb[0].mxu0
  %v149 = vadd.f32 0.0, %v148
  %v150 = vpop.f32.mrb[0].mxu0
  %v151 = vpop.f32.mrb[0].mxu0
  %v152 = vadd.f32 0.0, %v151
  %v153 = vpop.f32.mrb[0].mxu0
  %154 = vdwg.mxu0
  %155 = vmatprep.subr.bf16.mxu0 %v85
  %156 = vmatpush1.bf16.xpose.msra.mxu0 %v84
  %157 = vmatprep.subr.bf16.mxu0 0
  %158 = vmatpush1.bf16.xpose.msra.mxu0 0
  %159 = vmatprep.subr.bf16.mxu0 0
  %160 = vmatpush1.bf16.xpose.msra.mxu0 0
  %161 = vmatprep.subr.bf16.mxu0 0
  %162 = vmatpush1.bf16.xpose.msra.mxu0 0
  %163 = vmatprep.subr.bf16.mxu0 0
  %164 = vmatpush1.bf16.xpose.msra.mxu0 0
  %165 = vmatprep.subr.bf16.mxu0 0
  %166 = vmatpush1.bf16.xpose.msra.mxu0 0
  %167 = vmatprep.subr.bf16.mxu0 0
  %168 = vmatpush1.bf16.xpose.msra.mxu0 0
  %169 = vmatprep.subr.bf16.mxu0 0
  %170 = vmatpush1.bf16.xpose.msra.mxu0 0
  %171 = vmatprep.subr.bf16.mxu0 0
  %172 = vmatpush1.bf16.xpose.msra.mxu0 0
  %173 = vmatprep.subr.bf16.mxu0 0
  %174 = vmatpush1.bf16.xpose.msra.mxu0 0
  %175 = vmatprep.subr.bf16.mxu0 0
  %176 = vmatpush1.bf16.xpose.msra.mxu0 0
  %177 = vmatprep.subr.bf16.mxu0 0
  %178 = vmatpush1.bf16.xpose.msra.mxu0 0
  %179 = vmatprep.subr.bf16.mxu0 0
  %180 = vmatpush1.bf16.xpose.msra.mxu0 0
  %181 = vmatprep.subr.bf16.mxu0 0
  %182 = vmatpush1.bf16.xpose.msra.mxu0 0
  %183 = vmatprep.subr.bf16.mxu0 0
  %184 = vmatpush1.bf16.xpose.msra.mxu0 0
  %185 = vmatprep.subr.bf16.mxu0 0
  %186 = vmatpush1.bf16.xpose.msra.mxu0 0
  %187 = vmatprep.mubr.bf16.mxu0 %v85
  %188 = vmatmul.mubr.bf16.gmra.mrb[0].mxu0 %v84
  %v189 = vpop.f32.mrb[0].mxu0
  %v190 = vadd.f32 %v149, %v189
  %v191 = vpop.f32.mrb[0].mxu0
  %v192 = vpop.f32.mrb[0].mxu0
  %v193 = vadd.f32 %v152, %v192
  %v194 = vpop.f32.mrb[0].mxu0
  %195 = vdwg.mxu0
  %196 = vmatprep.subr.bf16.mxu0 %v87
  %197 = vmatpush1.bf16.xpose.msra.mxu0 %v86
  %198 = vmatprep.subr.bf16.mxu0 0
  %199 = vmatpush1.bf16.xpose.msra.mxu0 0
  %200 = vmatprep.subr.bf16.mxu0 0
  %201 = vmatpush1.bf16.xpose.msra.mxu0 0
  %202 = vmatprep.subr.bf16.mxu0 0
  %203 = vmatpush1.bf16.xpose.msra.mxu0 0
  %204 = vmatprep.subr.bf16.mxu0 0
  %205 = vmatpush1.bf16.xpose.msra.mxu0 0
  %206 = vmatprep.subr.bf16.mxu0 0
  %207 = vmatpush1.bf16.xpose.msra.mxu0 0
  %208 = vmatprep.subr.bf16.mxu0 0
  %209 = vmatpush1.bf16.xpose.msra.mxu0 0
  %210 = vmatprep.subr.bf16.mxu0 0
  %211 = vmatpush1.bf16.xpose.msra.mxu0 0
  %212 = vmatprep.subr.bf16.mxu0 0
  %213 = vmatpush1.bf16.xpose.msra.mxu0 0
  %214 = vmatprep.subr.bf16.mxu0 0
  %215 = vmatpush1.bf16.xpose.msra.mxu0 0
  %216 = vmatprep.subr.bf16.mxu0 0
  %217 = vmatpush1.bf16.xpose.msra.mxu0 0
  %218 = vmatprep.subr.bf16.mxu0 0
  %219 = vmatpush1.bf16.xpose.msra.mxu0 0
  %220 = vmatprep.subr.bf16.mxu0 0
  %221 = vmatpush1.bf16.xpose.msra.mxu0 0
  %222 = vmatprep.subr.bf16.mxu0 0
  %223 = vmatpush1.bf16.xpose.msra.mxu0 0
  %224 = vmatprep.subr.bf16.mxu0 0
  %225 = vmatpush1.bf16.xpose.msra.mxu0 0
  %226 = vmatprep.subr.bf16.mxu0 0
  %227 = vmatpush1.bf16.xpose.msra.mxu0 0
  %228 = vmatprep.mubr.bf16.mxu0 %v87
  %229 = vmatmul.mubr.bf16.gmra.mrb[0].mxu0 %v86
  %v230 = vpop.f32.mrb[0].mxu0
  %v231 = vadd.f32 %v190, %v230
  %v232 = vpop.f32.mrb[0].mxu0
  %v233 = vpop.f32.mrb[0].mxu0
  %v234 = vadd.f32 %v193, %v233
  %v235 = vpop.f32.mrb[0].mxu0
  %236 = vdwg.mxu0
  %237 = vmatprep.subr.bf16.mxu0 %v89
  %238 = vmatpush1.bf16.xpose.msra.mxu0 %v88
  %239 = vmatprep.subr.bf16.mxu0 0
  %240 = vmatpush1.bf16.xpose.msra.mxu0 0
  %241 = vmatprep.subr.bf16.mxu0 0
  %242 = vmatpush1.bf16.xpose.msra.mxu0 0
  %243 = vmatprep.subr.bf16.mxu0 0
  %244 = vmatpush1.bf16.xpose.msra.mxu0 0
  %245 = vmatprep.subr.bf16.mxu0 0
  %246 = vmatpush1.bf16.xpose.msra.mxu0 0
  %247 = vmatprep.subr.bf16.mxu0 0
  %248 = vmatpush1.bf16.xpose.msra.mxu0 0
  %249 = vmatprep.subr.bf16.mxu0 0
  %250 = vmatpush1.bf16.xpose.msra.mxu0 0
  %251 = vmatprep.subr.bf16.mxu0 0
  %252 = vmatpush1.bf16.xpose.msra.mxu0 0
  %253 = vmatprep.subr.bf16.mxu0 0
  %254 = vmatpush1.bf16.xpose.msra.mxu0 0
  %255 = vmatprep.subr.bf16.mxu0 0
  %256 = vmatpush1.bf16.xpose.msra.mxu0 0
  %257 = vmatprep.subr.bf16.mxu0 0
  %258 = vmatpush1.bf16.xpose.msra.mxu0 0
  %259 = vmatprep.subr.bf16.mxu0 0
  %260 = vmatpush1.bf16.xpose.msra.mxu0 0
  %261 = vmatprep.subr.bf16.mxu0 0
  %262 = vmatpush1.bf16.xpose.msra.mxu0 0
  %263 = vmatprep.subr.bf16.mxu0 0
  %264 = vmatpush1.bf16.xpose.msra.mxu0 0
  %265 = vmatprep.subr.bf16.mxu0 0
  %266 = vmatpush1.bf16.xpose.msra.mxu0 0
  %267 = vmatprep.subr.bf16.mxu0 0
  %268 = vmatpush1.bf16.xpose.msra.mxu0 0
  %269 = vmatprep.mubr.bf16.mxu0 %v89
  %270 = vmatmul.mubr.bf16.gmra.mrb[0].mxu0 %v88
  %v271 = vpop.f32.mrb[0].mxu0
  %v272 = vadd.f32 %v231, %v271
  %v273 = vpop.f32.mrb[0].mxu0
  %v274 = vpop.f32.mrb[0].mxu0
  %v275 = vadd.f32 %v234, %v274
  %v276 = vpop.f32.mrb[0].mxu0
  %277 = vdwg.mxu0
  %278 = vmatprep.subr.bf16.mxu0 %v91
  %279 = vmatpush1.bf16.xpose.msra.mxu0 %v90
  %280 = vmatprep.subr.bf16.mxu0 0
  %281 = vmatpush1.bf16.xpose.msra.mxu0 0
  %282 = vmatprep.subr.bf16.mxu0 0
  %283 = vmatpush1.bf16.xpose.msra.mxu0 0
  %284 = vmatprep.subr.bf16.mxu0 0
  %285 = vmatpush1.bf16.xpose.msra.mxu0 0
  %286 = vmatprep.subr.bf16.mxu0 0
  %287 = vmatpush1.bf16.xpose.msra.mxu0 0
  %288 = vmatprep.subr.bf16.mxu0 0
  %289 = vmatpush1.bf16.xpose.msra.mxu0 0
  %290 = vmatprep.subr.bf16.mxu0 0
  %291 = vmatpush1.bf16.xpose.msra.mxu0 0
  %292 = vmatprep.subr.bf16.mxu0 0
  %293 = vmatpush1.bf16.xpose.msra.mxu0 0
  %294 = vmatprep.subr.bf16.mxu0 0
  %295 = vmatpush1.bf16.xpose.msra.mxu0 0
  %296 = vmatprep.subr.bf16.mxu0 0
  %297 = vmatpush1.bf16.xpose.msra.mxu0 0
  %298 = vmatprep.subr.bf16.mxu0 0
  %299 = vmatpush1.bf16.xpose.msra.mxu0 0
  %300 = vmatprep.subr.bf16.mxu0 0
  %301 = vmatpush1.bf16.xpose.msra.mxu0 0
  %302 = vmatprep.subr.bf16.mxu0 0
  %303 = vmatpush1.bf16.xpose.msra.mxu0 0
  %304 = vmatprep.subr.bf16.mxu0 0
  %305 = vmatpush1.bf16.xpose.msra.mxu0 0
  %306 = vmatprep.subr.bf16.mxu0 0
  %307 = vmatpush1.bf16.xpose.msra.mxu0 0
  %308 = vmatprep.subr.bf16.mxu0 0
  %309 = vmatpush1.bf16.xpose.msra.mxu0 0
  %310 = vmatprep.mubr.bf16.mxu0 %v91
  %311 = vmatmul.mubr.bf16.gmra.mrb[0].mxu0 %v90
  %v312 = vpop.f32.mrb[0].mxu0
  %v313 = vadd.f32 %v272, %v312
  %v314 = vpop.f32.mrb[0].mxu0
  %v315 = vpop.f32.mrb[0].mxu0
  %v316 = vadd.f32 %v275, %v315
  %v317 = vpop.f32.mrb[0].mxu0
  %318 = vdwg.mxu0
  %319 = vmatprep.subr.bf16.mxu0 %v93
  %320 = vmatpush1.bf16.xpose.msra.mxu0 %v92
  %321 = vmatprep.subr.bf16.mxu0 0
  %322 = vmatpush1.bf16.xpose.msra.mxu0 0
  %323 = vmatprep.subr.bf16.mxu0 0
  %324 = vmatpush1.bf16.xpose.msra.mxu0 0
  %325 = vmatprep.subr.bf16.mxu0 0
  %326 = vmatpush1.bf16.xpose.msra.mxu0 0
  %327 = vmatprep.subr.bf16.mxu0 0
  %328 = vmatpush1.bf16.xpose.msra.mxu0 0
  %329 = vmatprep.subr.bf16.mxu0 0
  %330 = vmatpush1.bf16.xpose.msra.mxu0 0
  %331 = vmatprep.subr.bf16.mxu0 0
  %332 = vmatpush1.bf16.xpose.msra.mxu0 0
  %333 = vmatprep.subr.bf16.mxu0 0
  %334 = vmatpush1.bf16.xpose.msra.mxu0 0
  %335 = vmatprep.subr.bf16.mxu0 0
  %336 = vmatpush1.bf16.xpose.msra.mxu0 0
  %337 = vmatprep.subr.bf16.mxu0 0
  %338 = vmatpush1.bf16.xpose.msra.mxu0 0
  %339 = vmatprep.subr.bf16.mxu0 0
  %340 = vmatpush1.bf16.xpose.msra.mxu0 0
  %341 = vmatprep.subr.bf16.mxu0 0
  %342 = vmatpush1.bf16.xpose.msra.mxu0 0
  %343 = vmatprep.subr.bf16.mxu0 0
  %344 = vmatpush1.bf16.xpose.msra.mxu0 0
  %345 = vmatprep.subr.bf16.mxu0 0
  %346 = vmatpush1.bf16.xpose.msra.mxu0 0
  %347 = vmatprep.subr.bf16.mxu0 0
  %348 = vmatpush1.bf16.xpose.msra.mxu0 0
  %349 = vmatprep.subr.bf16.mxu0 0
  %350 = vmatpush1.bf16.xpose.msra.mxu0 0
  %351 = vmatprep.mubr.bf16.mxu0 %v93
  %352 = vmatmul.mubr.bf16.gmra.mrb[0].mxu0 %v92
  %v353 = vpop.f32.mrb[0].mxu0
  %v354 = vadd.f32 %v313, %v353
  %v355 = vpop.f32.mrb[0].mxu0
  %v356 = vpop.f32.mrb[0].mxu0
  %v357 = vadd.f32 %v316, %v356
  %v358 = vpop.f32.mrb[0].mxu0
  %359 = vdwg.mxu0
  %360 = vmatprep.subr.bf16.mxu0 %v95
  %361 = vmatpush1.bf16.xpose.msra.mxu0 %v94
  %362 = vmatprep.subr.bf16.mxu0 0
  %363 = vmatpush1.bf16.xpose.msra.mxu0 0
  %364 = vmatprep.subr.bf16.mxu0 0
  %365 = vmatpush1.bf16.xpose.msra.mxu0 0
  %366 = vmatprep.subr.bf16.mxu0 0
  %367 = vmatpush1.bf16.xpose.msra.mxu0 0
  %368 = vmatprep.subr.bf16.mxu0 0
  %369 = vmatpush1.bf16.xpose.msra.mxu0 0
  %370 = vmatprep.subr.bf16.mxu0 0
  %371 = vmatpush1.bf16.xpose.msra.mxu0 0
  %372 = vmatprep.subr.bf16.mxu0 0
  %373 = vmatpush1.bf16.xpose.msra.mxu0 0
  %374 = vmatprep.subr.bf16.mxu0 0
  %375 = vmatpush1.bf16.xpose.msra.mxu0 0
  %376 = vmatprep.subr.bf16.mxu0 0
  %377 = vmatpush1.bf16.xpose.msra.mxu0 0
  %378 = vmatprep.subr.bf16.mxu0 0
  %379 = vmatpush1.bf16.xpose.msra.mxu0 0
  %380 = vmatprep.subr.bf16.mxu0 0
  %381 = vmatpush1.bf16.xpose.msra.mxu0 0
  %382 = vmatprep.subr.bf16.mxu0 0
  %383 = vmatpush1.bf16.xpose.msra.mxu0 0
  %384 = vmatprep.subr.bf16.mxu0 0
  %385 = vmatpush1.bf16.xpose.msra.mxu0 0
  %386 = vmatprep.subr.bf16.mxu0 0
  %387 = vmatpush1.bf16.xpose.msra.mxu0 0
  %388 = vmatprep.subr.bf16.mxu0 0
  %389 = vmatpush1.bf16.xpose.msra.mxu0 0
  %390 = vmatprep.subr.bf16.mxu0 0
  %391 = vmatpush1.bf16.xpose.msra.mxu0 0
  %392 = vmatprep.mubr.bf16.mxu0 %v95
  %393 = vmatmul.mubr.bf16.gmra.mrb[0].mxu0 %v94
  %v394 = vpop.f32.mrb[0].mxu0
  %v395 = vadd.f32 %v354, %v394
  %v396 = vpop.f32.mrb[0].mxu0
  %v397 = vpop.f32.mrb[0].mxu0
  %v398 = vadd.f32 %v357, %v397
  %v399 = vpop.f32.mrb[0].mxu0
  %400 = vdwg.mxu0
  %401 = vmatprep.subr.bf16.mxu0 %v97
  %402 = vmatpush1.bf16.xpose.msra.mxu0 %v96
  %403 = vmatprep.subr.bf16.mxu0 0
  %404 = vmatpush1.bf16.xpose.msra.mxu0 0
  %405 = vmatprep.subr.bf16.mxu0 0
  %406 = vmatpush1.bf16.xpose.msra.mxu0 0
  %407 = vmatprep.subr.bf16.mxu0 0
  %408 = vmatpush1.bf16.xpose.msra.mxu0 0
  %409 = vmatprep.subr.bf16.mxu0 0
  %410 = vmatpush1.bf16.xpose.msra.mxu0 0
  %411 = vmatprep.subr.bf16.mxu0 0
  %412 = vmatpush1.bf16.xpose.msra.mxu0 0
  %413 = vmatprep.subr.bf16.mxu0 0
  %414 = vmatpush1.bf16.xpose.msra.mxu0 0
  %415 = vmatprep.subr.bf16.mxu0 0
  %416 = vmatpush1.bf16.xpose.msra.mxu0 0
  %417 = vmatprep.subr.bf16.mxu0 0
  %418 = vmatpush1.bf16.xpose.msra.mxu0 0
  %419 = vmatprep.subr.bf16.mxu0 0
  %420 = vmatpush1.bf16.xpose.msra.mxu0 0
  %421 = vmatprep.subr.bf16.mxu0 0
  %422 = vmatpush1.bf16.xpose.msra.mxu0 0
  %423 = vmatprep.subr.bf16.mxu0 0
  %424 = vmatpush1.bf16.xpose.msra.mxu0 0
  %425 = vmatprep.subr.bf16.mxu0 0
  %426 = vmatpush1.bf16.xpose.msra.mxu0 0
  %427 = vmatprep.subr.bf16.mxu0 0
  %428 = vmatpush1.bf16.xpose.msra.mxu0 0
  %429 = vmatprep.subr.bf16.mxu0 0
  %430 = vmatpush1.bf16.xpose.msra.mxu0 0
  %431 = vmatprep.subr.bf16.mxu0 0
  %432 = vmatpush1.bf16.xpose.msra.mxu0 0
  %433 = vmatprep.mubr.bf16.mxu0 %v97
  %434 = vmatmul.mubr.bf16.gmra.mrb[0].mxu0 %v96
  %v435 = vpop.f32.mrb[0].mxu0
  %v436 = vadd.f32 %v395, %v435
  %v437 = vpop.f32.mrb[0].mxu0
  %v438 = vpop.f32.mrb[0].mxu0
  %v439 = vadd.f32 %v398, %v438
  %v440 = vpop.f32.mrb[0].mxu0
  %441 = vdwg.mxu0
  %v442 = vadd.f32 %v32, %v436
  %v443 = vadd.f32 %v33, %v439
  %vm444 = vcmask 130048
  %445 = vst.msk [vmem:[%s1] sm:$0xff] %vm444, %v442
  %446 = vst.msk [vmem:[%s1 + $0x8] sm:$0xff] %vm444, %v443
  // Predicated region
  $region10: #{ssi_forward.17} parent=0 // pred_check
    _
  $region11: #{ssi_forward.17} parent=0 // pred_check_branch
    %448 = sbr.rel (0) target = $region13
  $region12: #{ssi_forward.17} parent=0 // pred_region
    _
  $region13: #{ssi_forward.17} parent=0 // pred_fallthru
    _
  // Predicated region
  $region14: #{ssi_forward.17} parent=0 // pred_check
    _
  $region15: #{ssi_forward.17} parent=0 // pred_check_branch
    %450 = sbr.rel (0) target = $region17
  $region16: #{ssi_forward.17} parent=0 // pred_region
    _
  $region17: #{ssi_forward.17} parent=0 // pred_fallthru
    _

// kernel: ssi_forward.12
$region0: #{ssi_forward.12}
  #allocation0 [shape = 'u32[]', space=smem, size = 0x4, offset = 0x4, fixed_abs, tag = 'smem constant byte address 0x4 - core index']
  #allocation1 [shape = 'u32[144,128]{1,0:T(1,128)}', space=vmem, size = 0x12000, scoped, tag = 'internal scratch']
  %s0 = inlined_call_operand.vmem [shape: bf16[2,8,640], index: 0, kind: input, shape index: {}]
  %s1 = inlined_call_operand.vmem [shape: bf16[8,8], index: 1, kind: input, shape index: {}]
  %s2 = inlined_call_operand.vmem [shape: f32[8,1], index: 2, kind: output, shape index: {0}]
  %s3 = inlined_call_operand.vmem [shape: f32[8,1], index: 3, kind: output, shape index: {1}]
  %4 = xla_tuple %s2, %s3
  %s5 = sld [smem:[#allocation0]]
  $region53: #{ssi_forward.12} parent=0
    _
  %s7 = ssub.s32 1, %s5
  %s8 = scalar_select 0, %s7, %s5
  loop: start=0, step=1, limit=4
  $region2: #{ssi_forward.12} parent=0 // loop_pre_header
    _
  $region3: #{ssi_forward.12} parent=0 // loop_header
    %s10 = sphi 0, %s14
    %p11 = scmp.ge.s32.totalorder %s10, 4
    %s17 = sphi 0, %s29
    %s18 = sphi 0, %s25
    %s19 = sphi 0, %s17
    %s20 = sphi 0, %s18
    %s21 = sphi 0, %s19
    %s22 = sphi 0, %s20
    %s34 = sphi 0, %s36
    %s37 = sphi 0, %s34
    %s38 = sphi 0, %s37
    %s54 = sphi 0, %s38
    %s58 = sphi 0, %s58
    %s60 = sphi 0, %s58
    %s61 = sphi 0, %s60
    %s75 = sphi 0, %s61
    %s79 = sphi 0, %s79
    %s81 = sphi 0, %s79
    %s82 = sphi 0, %s81
    %s96 = sphi 0, %s82
    %s100 = sphi 0, %s100
    %s102 = sphi 0, %s100
    %s103 = sphi 0, %s102
    %s117 = sphi 0, %s103
  $region4: #{ssi_forward.12} parent=0 // loop_header_branch
    %13 = sbr.rel (%p11) target = $region8
  $region5: #{ssi_forward.12} parent=0 // loop_body
    %s15 = ssub.s32 %s10, 1
    %s16 = ssub.s32 %s10, 2
    %s23 = sadd.s32 1, %s18
    %p24 = scmp.ge.s32.totalorder %s23, 1
    %s25 = scalar_select %p24, 0, %s23
    %s26 = sadd.s32 1, %s17
    %s27 = scalar_select %p24, %s26, %s17
    %p28 = scmp.ge.s32.totalorder %s27, 2
    %s29 = scalar_select %p28, 0, %s27
    %s30 = ssub.s32 %s17, %s29
    %s31 = ssub.s32 %s18, %s25
    %s32 = sor.u32 %s30, %s31
    %p33 = scmp.eq.s32.totalorder %s32, 0
    %s35 = sadd.s32 %s34, 1
    %s36 = scalar_select %p33, %s34, %s35
    %p39 = pneg %p33
    %p40 = scmp.eq.s32.totalorder %s10, 1
    %p41 = por %p39, %p40
    %p42 = scmp.ne.s32.totalorder %s34, %s37
    %p43 = scmp.eq.s32.totalorder %s10, 0
    %p44 = por %p42, %p43
    %p45 = scmp.ne.s32.totalorder %s34, %s37
    %p46 = scmp.eq.s32.totalorder %s15, 1
    %p47 = por %p45, %p46
    %p48 = scmp.ne.s32.totalorder %s37, %s38
    %p49 = scmp.eq.s32.totalorder %s15, 0
    %p50 = por %p48, %p49
    %p51 = scmp.ne.s32.totalorder %s37, %s38
    %p52 = scmp.eq.s32.totalorder %s16, 1
    %p53 = por %p51, %p52
    %p55 = scmp.ne.s32.totalorder %s38, %s54
    %p56 = scmp.eq.s32.totalorder %s16, 0
    %p57 = por %p55, %p56
    %s59 = sadd.s32 %s58, 1
    %p62 = scmp.eq.s32.totalorder %s10, 1
    %p63 = scmp.ne.s32.totalorder %s58, %s60
    %p64 = scmp.eq.s32.totalorder %s10, 0
    %p65 = por %p63, %p64
    %p66 = scmp.ne.s32.totalorder %s58, %s60
    %p67 = scmp.eq.s32.totalorder %s15, 1
    %p68 = por %p66, %p67
    %p69 = scmp.ne.s32.totalorder %s60, %s61
    %p70 = scmp.eq.s32.totalorder %s15, 0
    %p71 = por %p69, %p70
    %p72 = scmp.ne.s32.totalorder %s60, %s61
    %p73 = scmp.eq.s32.totalorder %s16, 1
    %p74 = por %p72, %p73
    %p76 = scmp.ne.s32.totalorder %s61, %s75
    %p77 = scmp.eq.s32.totalorder %s16, 0
    %p78 = por %p76, %p77
    %s80 = sadd.s32 %s79, 1
    %p83 = scmp.eq.s32.totalorder %s10, 1
    %p84 = scmp.ne.s32.totalorder %s79, %s81
    %p85 = scmp.eq.s32.totalorder %s10, 0
    %p86 = por %p84, %p85
    %p87 = scmp.ne.s32.totalorder %s79, %s81
    %p88 = scmp.eq.s32.totalorder %s15, 1
    %p89 = por %p87, %p88
    %p90 = scmp.ne.s32.totalorder %s81, %s82
    %p91 = scmp.eq.s32.totalorder %s15, 0
    %p92 = por %p90, %p91
    %p93 = scmp.ne.s32.totalorder %s81, %s82
    %p94 = scmp.eq.s32.totalorder %s16, 1
    %p95 = por %p93, %p94
    %p97 = scmp.ne.s32.totalorder %s82, %s96
    %p98 = scmp.eq.s32.totalorder %s16, 0
    %p99 = por %p97, %p98
    %s101 = sadd.s32 %s100, 1
    %p104 = scmp.eq.s32.totalorder %s10, 1
    %p105 = scmp.ne.s32.totalorder %s100, %s102
    %p106 = scmp.eq.s32.totalorder %s10, 0
    %p107 = por %p105, %p106
    %p108 = scmp.ne.s32.totalorder %s100, %s102
    %p109 = scmp.eq.s32.totalorder %s15, 1
    %p110 = por %p108, %p109
    %p111 = scmp.ne.s32.totalorder %s102, %s103
    %p112 = scmp.eq.s32.totalorder %s15, 0
    %p113 = por %p111, %p112
    %p114 = scmp.ne.s32.totalorder %s102, %s103
    %p115 = scmp.eq.s32.totalorder %s16, 1
    %p116 = por %p114, %p115
    %p118 = scmp.ne.s32.totalorder %s103, %s117
    %p119 = scmp.eq.s32.totalorder %s16, 0
    %p120 = por %p118, %p119
    %p121 = scmp.le.s32.totalorder 1, %s10
    %p122 = scmp.lt.s32.totalorder %s10, 3
    %p123 = pnand %p121, %p122
    %p124 = pneg %p123
    // Predicated region
    $region9: #{ssi_forward.12} parent=5 // pred_check
      _
    $region10: #{ssi_forward.12} parent=5 // pred_check_branch
      %126 = sbr.rel (%p123) target = $region12
    $region11: #{ssi_forward.12} parent=5 // pred_region
      %s127 = ssub.s32 %s10, 1
      // Predicated region
      $region13: #{ssi_forward.12} parent=11 // pred_check
        %p128 = pneg %p71
      $region14: #{ssi_forward.12} parent=11 // pred_check_branch
        %130 = sbr.rel (%p128) target = $region16
      $region15: #{ssi_forward.12} parent=11 // pred_region
        _
      $region16: #{ssi_forward.12} parent=11 // pred_fallthru
        _
    $region12: #{ssi_forward.12} parent=5 // pred_fallthru
      _
    %p131 = scmp.lt.s32.totalorder %s10, 2
    // Predicated region
    $region17: #{ssi_forward.12} parent=5 // pred_check
      %p132 = pneg %p131
    $region18: #{ssi_forward.12} parent=5 // pred_check_branch
      %134 = sbr.rel (%p132) target = $region20
    $region19: #{ssi_forward.12} parent=5 // pred_region
      // Predicated region
      $region21: #{ssi_forward.12} parent=19 // pred_check
        %p135 = pneg %p44
      $region22: #{ssi_forward.12} parent=19 // pred_check_branch
        %137 = sbr.rel (%p135) target = $region24
      $region23: #{ssi_forward.12} parent=19 // pred_region
        %s138 = smul.u32 5, %s18
        %p139 = scmp.lt.s32.totalorder %s17, 1
        %s140 = scalar_select %p139, %s17, 1
        %p141 = scmp.lt.s32.totalorder %s138, 4
        %s142 = scalar_select %p141, %s138, 4
        %s143 = smul.addr %s140, 5
        %s144 = sadd.s32 %s142, %s143
        %s145 = smul.addr %s144, 4
        %s146 = scalar_lea.vmem %s0, %s145
        %s147 = smul.u32 5, %s18
      $region24: #{ssi_forward.12} parent=19 // pred_fallthru
        _
    $region20: #{ssi_forward.12} parent=5 // pred_fallthru
      _
    %p148 = scmp.le.s32.totalorder 1, %s10
    %p149 = scmp.lt.s32.totalorder %s10, 3
    %p150 = pnand %p148, %p149
    %p151 = pneg %p150
    // Predicated region
    $region25: #{ssi_forward.12} parent=5 // pred_check
      _
    $region26: #{ssi_forward.12} parent=5 // pred_check_branch
      %153 = sbr.rel (%p150) target = $region28
    $region27: #{ssi_forward.12} parent=5 // pred_region
      %s154 = ssub.s32 %s10, 1
      %s155 = smul.u32 5, %s20
      %p156 = scmp.lt.s32.totalorder %s19, 1
      %s157 = scalar_select %p156, %s19, 1
      %p158 = scmp.lt.s32.totalorder %s155, 4
      %s159 = scalar_select %p158, %s155, 4
      %s160 = smul.addr %s157, 5
      %s161 = sadd.s32 %s159, %s160
      %s162 = smul.addr %s161, 4
      %s163 = scalar_lea.vmem %s0, %s162
      %p164 = pneg %p50
      %p165 = pneg %p47
      %p166 = pneg %p71
      %p167 = pneg %p68
      %p168 = pneg %p92
      %p169 = pneg %p89
      %p170 = pneg %p113
      %p171 = pneg %p110
      %s172 = smul.u32 5, %s20
      %p173 = scmp.lt.s32.totalorder %s19, 1
      %s174 = scalar_select %p173, %s19, 1
      %p175 = scmp.lt.s32.totalorder %s172, 4
      %s176 = scalar_select %p175, %s172, 4
      %s177 = smul.addr %s174, 5
      %s178 = sadd.s32 %s176, %s177
      %s179 = smul.addr %s178, 4
      %s180 = scalar_lea.vmem %s0, %s179
      %s181 = smul.u32 5, %s20
      %p183 = scmp.eq.s32.totalorder %s19, 0
      %p184 = scmp.eq.s32.totalorder %s20, 0
      %p185 = pnand %p183, %p184
      %p186 = pneg %p185
      // Predicated region
      $region29: #{ssi_forward.12} parent=27 // pred_check
        _
      $region30: #{ssi_forward.12} parent=27 // pred_check_branch
        %188 = sbr.rel (%p185) target = $region32
      $region31: #{ssi_forward.12} parent=27 // pred_region
        %vm189 = vcmask 7168
        %190 = vst.msk [vmem:[%s2] sm:$0xff] %vm189, 0.0
        %191 = vst.msk [vmem:[%s3] sm:$0xff] %vm189, 0.0
      $region32: #{ssi_forward.12} parent=27 // pred_fallthru
        _
      %v192 = vld [vmem:[%s1] sm:$0xf]
      %v193 = vld [vmem:[%s180] sm:$0xff]
      %v194 = vld [vmem:[%s180 + $0x8] sm:$0xff]
      %v195 = vld [vmem:[%s180 + $0x10] sm:$0xf]
      %v199 = vunpack.c.l.b16 %v193
      %v200 = vunpack.c.h.b16 %v193
      %v201 = vunpack.c.l.b16 %v194
      %v202 = vunpack.c.h.b16 %v194
      %v203 = vunpack.c.l.b16 %v195
      %v204 = vpack.c.b16 %v199, %v199
      %v205 = vpack.c.b16 %v200, %v200
      %v206 = vpack.c.b16 %v201, %v201
      %v207 = vpack.c.b16 %v202, %v202
      %v208 = vpack.c.b16 %v203, %v203
      %vm209 = vcmask 64512
      %v211 = vsel %vm209, %v192, 0
      %vm213 = vcmask 1043456
      %v215 = vsel %vm213, %v204, 0
      %v218 = vsel %vm213, %v205, 0
      %v221 = vsel %vm213, %v206, 0
      %v224 = vsel %vm213, %v207, 0
      %v227 = vsel %vm213, %v208, 0
      %229 = vmatprep.subr.bf16.mxu0 %v218
      %230 = vmatpush1.bf16.msra.mxu0 %v215
      %231 = vmatprep.subr.bf16.mxu0 0
      %232 = vmatpush1.bf16.msra.mxu0 0
      %233 = vmatprep.subr.bf16.mxu0 0
      %234 = vmatpush1.bf16.msra.mxu0 0
      %235 = vmatprep.subr.bf16.mxu0 0
      %236 = vmatpush1.bf16.msra.mxu0 0
      %237 = vmatprep.subr.bf16.mxu0 0
      %238 = vmatpush1.bf16.msra.mxu0 0
      %239 = vmatprep.subr.bf16.mxu0 0
      %240 = vmatpush1.bf16.msra.mxu0 0
      %241 = vmatprep.subr.bf16.mxu0 0
      %242 = vmatpush1.bf16.msra.mxu0 0
      %243 = vmatprep.subr.bf16.mxu0 0
      %244 = vmatpush1.bf16.msra.mxu0 0
      %245 = vmatprep.subr.bf16.mxu0 0
      %246 = vmatpush1.bf16.msra.mxu0 0
      %247 = vmatprep.subr.bf16.mxu0 0
      %248 = vmatpush1.bf16.msra.mxu0 0
      %249 = vmatprep.subr.bf16.mxu0 0
      %250 = vmatpush1.bf16.msra.mxu0 0
      %251 = vmatprep.subr.bf16.mxu0 0
      %252 = vmatpush1.bf16.msra.mxu0 0
      %253 = vmatprep.subr.bf16.mxu0 0
      %254 = vmatpush1.bf16.msra.mxu0 0
      %255 = vmatprep.subr.bf16.mxu0 0
      %256 = vmatpush1.bf16.msra.mxu0 0
      %257 = vmatprep.subr.bf16.mxu0 0
      %258 = vmatpush1.bf16.msra.mxu0 0
      %259 = vmatprep.subr.bf16.mxu0 0
      %260 = vmatpush1.bf16.msra.mxu0 0
      %261 = vmatprep.mubr.bf16.mxu0 0
      %262 = vmatmul.mubr.bf16.gmra.mrb[0].mxu0 %v211
      %v263 = vpop.f32.mrb[0].mxu0
      %v264 = vadd.f32 0.0, %v263
      %v265 = vpop.f32.mrb[0].mxu0
      %v266 = vadd.f32 0.0, %v265
      %v267 = vpop.f32.mrb[0].mxu0
      %v268 = vpop.f32.mrb[0].mxu0
      %269 = vdwg.mxu0
      %270 = vmatprep.subr.bf16.mxu0 %v224
      %271 = vmatpush1.bf16.msra.mxu0 %v221
      %272 = vmatprep.subr.bf16.mxu0 0
      %273 = vmatpush1.bf16.msra.mxu0 0
      %274 = vmatprep.subr.bf16.mxu0 0
      %275 = vmatpush1.bf16.msra.mxu0 0
      %276 = vmatprep.subr.bf16.mxu0 0
      %277 = vmatpush1.bf16.msra.mxu0 0
      %278 = vmatprep.subr.bf16.mxu0 0
      %279 = vmatpush1.bf16.msra.mxu0 0
      %280 = vmatprep.subr.bf16.mxu0 0
      %281 = vmatpush1.bf16.msra.mxu0 0
      %282 = vmatprep.subr.bf16.mxu0 0
      %283 = vmatpush1.bf16.msra.mxu0 0
      %284 = vmatprep.subr.bf16.mxu0 0
      %285 = vmatpush1.bf16.msra.mxu0 0
      %286 = vmatprep.subr.bf16.mxu0 0
      %287 = vmatpush1.bf16.msra.mxu0 0
      %288 = vmatprep.subr.bf16.mxu0 0
      %289 = vmatpush1.bf16.msra.mxu0 0
      %290 = vmatprep.subr.bf16.mxu0 0
      %291 = vmatpush1.bf16.msra.mxu0 0
      %292 = vmatprep.subr.bf16.mxu0 0
      %293 = vmatpush1.bf16.msra.mxu0 0
      %294 = vmatprep.subr.bf16.mxu0 0
      %295 = vmatpush1.bf16.msra.mxu0 0
      %296 = vmatprep.subr.bf16.mxu0 0
      %297 = vmatpush1.bf16.msra.mxu0 0
      %298 = vmatprep.subr.bf16.mxu0 0
      %299 = vmatpush1.bf16.msra.mxu0 0
      %300 = vmatprep.subr.bf16.mxu0 0
      %301 = vmatpush1.bf16.msra.mxu0 0
      %302 = vmatprep.mubr.bf16.mxu0 0
      %303 = vmatmul.mubr.bf16.gmra.mrb[0].mxu0 %v211
      %v304 = vpop.f32.mrb[0].mxu0
      %v305 = vadd.f32 0.0, %v304
      %v306 = vpop.f32.mrb[0].mxu0
      %v307 = vadd.f32 0.0, %v306
      %v308 = vpop.f32.mrb[0].mxu0
      %v309 = vpop.f32.mrb[0].mxu0
      %310 = vdwg.mxu0
      %311 = vmatprep.subr.bf16.mxu0 0
      %312 = vmatpush1.bf16.msra.mxu0 %v227
      %313 = vmatprep.subr.bf16.mxu0 0
      %314 = vmatpush1.bf16.msra.mxu0 0
      %315 = vmatprep.subr.bf16.mxu0 0
      %316 = vmatpush1.bf16.msra.mxu0 0
      %317 = vmatprep.subr.bf16.mxu0 0
      %318 = vmatpush1.bf16.msra.mxu0 0
      %319 = vmatprep.subr.bf16.mxu0 0
      %320 = vmatpush1.bf16.msra.mxu0 0
      %321 = vmatprep.subr.bf16.mxu0 0
      %322 = vmatpush1.bf16.msra.mxu0 0
      %323 = vmatprep.subr.bf16.mxu0 0
      %324 = vmatpush1.bf16.msra.mxu0 0
      %325 = vmatprep.subr.bf16.mxu0 0
      %326 = vmatpush1.bf16.msra.mxu0 0
      %327 = vmatprep.subr.bf16.mxu0 0
      %328 = vmatpush1.bf16.msra.mxu0 0
      %329 = vmatprep.subr.bf16.mxu0 0
      %330 = vmatpush1.bf16.msra.mxu0 0
      %331 = vmatprep.subr.bf16.mxu0 0
      %332 = vmatpush1.bf16.msra.mxu0 0
      %333 = vmatprep.subr.bf16.mxu0 0
      %334 = vmatpush1.bf16.msra.mxu0 0
      %335 = vmatprep.subr.bf16.mxu0 0
      %336 = vmatpush1.bf16.msra.mxu0 0
      %337 = vmatprep.subr.bf16.mxu0 0
      %338 = vmatpush1.bf16.msra.mxu0 0
      %339 = vmatprep.subr.bf16.mxu0 0
      %340 = vmatpush1.bf16.msra.mxu0 0
      %341 = vmatprep.subr.bf16.mxu0 0
      %342 = vmatpush1.bf16.msra.mxu0 0
      %343 = vmatprep.mubr.bf16.mxu0 0
      %344 = vmatmul.mubr.bf16.gmra.mrb[0].mxu0 %v211
      %v345 = vpop.f32.mrb[0].mxu0
      %v346 = vadd.f32 0.0, %v345
      %v347 = vpop.f32.mrb[0].mxu0
      %v348 = vpop.f32.mrb[0].mxu0
      %v349 = vpop.f32.mrb[0].mxu0
      %350 = vdwg.mxu0
      %v351 = vld [vmem:[%s2] sm:$0xff]
      %v352 = vadd.f32 %v264, %v266
      %v353 = vadd.f32 %v352, %v305
      %v354 = vadd.f32 %v353, %v307
      %v355 = vadd.f32 %v354, %v346
      %356 = vadd.xlane.f32.xlu0 %v355
      %v357 = vpop.xlane.xlu0 %356
      %v358 = vadd.f32 %v351, %v357
      %vm359 = vcmask 7168
      %360 = vst.msk [vmem:[%s2] sm:$0xff] %vm359, %v358
      %v361 = vld [vmem:[%s3] sm:$0xff]
      %v362 = vmul.f32 %v264, %v264
      %v363 = vmul.f32 %v266, %v266
      %v364 = vmul.f32 %v305, %v305
      %v365 = vmul.f32 %v307, %v307
      %v366 = vmul.f32 %v346, %v346
      %v367 = vadd.f32 %v362, %v363
      %v368 = vadd.f32 %v367, %v364
      %v369 = vadd.f32 %v368, %v365
      %v370 = vadd.f32 %v369, %v366
      %371 = vadd.xlane.f32.xlu0 %v370
      %v372 = vpop.xlane.xlu0 %371
      %v373 = vadd.f32 %v361, %v372
      %374 = vst.msk [vmem:[%s3] sm:$0xff] %vm359, %v373
      // Predicated region
      $region33: #{ssi_forward.12} parent=27 // pred_check
        %p375 = pneg %p89
      $region34: #{ssi_forward.12} parent=27 // pred_check_branch
        %377 = sbr.rel (%p375) target = $region36
      $region35: #{ssi_forward.12} parent=27 // pred_region
        _
      $region36: #{ssi_forward.12} parent=27 // pred_fallthru
        _
      // Predicated region
      $region37: #{ssi_forward.12} parent=27 // pred_check
        %p378 = pneg %p110
      $region38: #{ssi_forward.12} parent=27 // pred_check_branch
        %380 = sbr.rel (%p378) target = $region40
      $region39: #{ssi_forward.12} parent=27 // pred_region
        _
      $region40: #{ssi_forward.12} parent=27 // pred_fallthru
        _
      // Predicated region
      $region41: #{ssi_forward.12} parent=27 // pred_check
        %p381 = pneg %p89
      $region42: #{ssi_forward.12} parent=27 // pred_check_branch
        %383 = sbr.rel (%p381) target = $region44
      $region43: #{ssi_forward.12} parent=27 // pred_region
        _
      $region44: #{ssi_forward.12} parent=27 // pred_fallthru
        _
      // Predicated region
      $region45: #{ssi_forward.12} parent=27 // pred_check
        %p384 = pneg %p110
      $region46: #{ssi_forward.12} parent=27 // pred_check_branch
        %386 = sbr.rel (%p384) target = $region48
      $region47: #{ssi_forward.12} parent=27 // pred_region
        _
      $region48: #{ssi_forward.12} parent=27 // pred_fallthru
        _
    $region28: #{ssi_forward.12} parent=5 // pred_fallthru
      _
    %p387 = scmp.le.s32.totalorder 2, %s10
    // Predicated region
    $region49: #{ssi_forward.12} parent=5 // pred_check
      %p388 = pneg %p387
    $region50: #{ssi_forward.12} parent=5 // pred_check_branch
      %390 = sbr.rel (%p388) target = $region52
    $region51: #{ssi_forward.12} parent=5 // pred_region
      %s391 = ssub.s32 %s10, 2
    $region52: #{ssi_forward.12} parent=5 // pred_fallthru
      _
  $region6: #{ssi_forward.12} parent=0 // loop_footer
    %s14 = sadd.s32 1, %s10
  $region7: #{ssi_forward.12} parent=0 // loop_footer_branch
    %9 = sbr.rel target = $region3
  $region8: #{ssi_forward.12} parent=0 // loop_exit
    _

// kernel: ssi_forward.13
$region0: #{ssi_forward.13}
  #allocation0 [shape = 'u32[]', space=smem, size = 0x4, offset = 0x4, fixed_abs, tag = 'smem constant byte address 0x4 - core index']
  #allocation1 [shape = 'u32[144,128]{1,0:T(1,128)}', space=vmem, size = 0x12000, scoped, tag = 'internal scratch']
  %s0 = inlined_call_operand.vmem [shape: bf16[2,8,640], index: 0, kind: input, shape index: {}]
  %s1 = inlined_call_operand.vmem [shape: bf16[8,8], index: 1, kind: input, shape index: {}]
  %s2 = inlined_call_operand.vmem [shape: f32[8,1], index: 2, kind: input, shape index: {}]
  %s3 = inlined_call_operand.vmem [shape: f32[8,1], index: 3, kind: input, shape index: {}]
  %s4 = inlined_call_operand.vmem [shape: bf16[2,8,640], index: 4, kind: output, shape index: {}]
  %s5 = sld [smem:[#allocation0]]
  $region49: #{ssi_forward.13} parent=0
    _
  %s7 = ssub.s32 1, %s5
  %s8 = scalar_select 0, %s7, %s5
  loop: start=0, step=1, limit=4
  $region2: #{ssi_forward.13} parent=0 // loop_pre_header
    _
  $region3: #{ssi_forward.13} parent=0 // loop_header
    %s10 = sphi 0, %s14
    %p11 = scmp.ge.s32.totalorder %s10, 4
    %s17 = sphi 0, %s29
    %s18 = sphi 0, %s25
    %s19 = sphi 0, %s17
    %s20 = sphi 0, %s18
    %s21 = sphi 0, %s19
    %s22 = sphi 0, %s20
    %s34 = sphi 0, %s36
    %s37 = sphi 0, %s34
    %s38 = sphi 0, %s37
    %s54 = sphi 0, %s38
    %s58 = sphi 0, %s58
    %s60 = sphi 0, %s58
    %s61 = sphi 0, %s60
    %s75 = sphi 0, %s61
    %s79 = sphi 0, %s79
    %s81 = sphi 0, %s79
    %s82 = sphi 0, %s81
    %s96 = sphi 0, %s82
    %s100 = sphi 0, %s100
    %s102 = sphi 0, %s100
    %s103 = sphi 0, %s102
    %s117 = sphi 0, %s103
    %s125 = sphi 0, %s127
    %s128 = sphi 0, %s125
    %s129 = sphi 0, %s128
    %s145 = sphi 0, %s129
  $region4: #{ssi_forward.13} parent=0 // loop_header_branch
    %13 = sbr.rel (%p11) target = $region8
  $region5: #{ssi_forward.13} parent=0 // loop_body
    %s15 = ssub.s32 %s10, 1
    %s16 = ssub.s32 %s10, 2
    %s23 = sadd.s32 1, %s18
    %p24 = scmp.ge.s32.totalorder %s23, 1
    %s25 = scalar_select %p24, 0, %s23
    %s26 = sadd.s32 1, %s17
    %s27 = scalar_select %p24, %s26, %s17
    %p28 = scmp.ge.s32.totalorder %s27, 2
    %s29 = scalar_select %p28, 0, %s27
    %s30 = ssub.s32 %s17, %s29
    %s31 = ssub.s32 %s18, %s25
    %s32 = sor.u32 %s30, %s31
    %p33 = scmp.eq.s32.totalorder %s32, 0
    %s35 = sadd.s32 %s34, 1
    %s36 = scalar_select %p33, %s34, %s35
    %p39 = pneg %p33
    %p40 = scmp.eq.s32.totalorder %s10, 1
    %p41 = por %p39, %p40
    %p42 = scmp.ne.s32.totalorder %s34, %s37
    %p43 = scmp.eq.s32.totalorder %s10, 0
    %p44 = por %p42, %p43
    %p45 = scmp.ne.s32.totalorder %s34, %s37
    %p46 = scmp.eq.s32.totalorder %s15, 1
    %p47 = por %p45, %p46
    %p48 = scmp.ne.s32.totalorder %s37, %s38
    %p49 = scmp.eq.s32.totalorder %s15, 0
    %p50 = por %p48, %p49
    %p51 = scmp.ne.s32.totalorder %s37, %s38
    %p52 = scmp.eq.s32.totalorder %s16, 1
    %p53 = por %p51, %p52
    %p55 = scmp.ne.s32.totalorder %s38, %s54
    %p56 = scmp.eq.s32.totalorder %s16, 0
    %p57 = por %p55, %p56
    %s59 = sadd.s32 %s58, 1
    %p62 = scmp.eq.s32.totalorder %s10, 1
    %p63 = scmp.ne.s32.totalorder %s58, %s60
    %p64 = scmp.eq.s32.totalorder %s10, 0
    %p65 = por %p63, %p64
    %p66 = scmp.ne.s32.totalorder %s58, %s60
    %p67 = scmp.eq.s32.totalorder %s15, 1
    %p68 = por %p66, %p67
    %p69 = scmp.ne.s32.totalorder %s60, %s61
    %p70 = scmp.eq.s32.totalorder %s15, 0
    %p71 = por %p69, %p70
    %p72 = scmp.ne.s32.totalorder %s60, %s61
    %p73 = scmp.eq.s32.totalorder %s16, 1
    %p74 = por %p72, %p73
    %p76 = scmp.ne.s32.totalorder %s61, %s75
    %p77 = scmp.eq.s32.totalorder %s16, 0
    %p78 = por %p76, %p77
    %s80 = sadd.s32 %s79, 1
    %p83 = scmp.eq.s32.totalorder %s10, 1
    %p84 = scmp.ne.s32.totalorder %s79, %s81
    %p85 = scmp.eq.s32.totalorder %s10, 0
    %p86 = por %p84, %p85
    %p87 = scmp.ne.s32.totalorder %s79, %s81
    %p88 = scmp.eq.s32.totalorder %s15, 1
    %p89 = por %p87, %p88
    %p90 = scmp.ne.s32.totalorder %s81, %s82
    %p91 = scmp.eq.s32.totalorder %s15, 0
    %p92 = por %p90, %p91
    %p93 = scmp.ne.s32.totalorder %s81, %s82
    %p94 = scmp.eq.s32.totalorder %s16, 1
    %p95 = por %p93, %p94
    %p97 = scmp.ne.s32.totalorder %s82, %s96
    %p98 = scmp.eq.s32.totalorder %s16, 0
    %p99 = por %p97, %p98
    %s101 = sadd.s32 %s100, 1
    %p104 = scmp.eq.s32.totalorder %s10, 1
    %p105 = scmp.ne.s32.totalorder %s100, %s102
    %p106 = scmp.eq.s32.totalorder %s10, 0
    %p107 = por %p105, %p106
    %p108 = scmp.ne.s32.totalorder %s100, %s102
    %p109 = scmp.eq.s32.totalorder %s15, 1
    %p110 = por %p108, %p109
    %p111 = scmp.ne.s32.totalorder %s102, %s103
    %p112 = scmp.eq.s32.totalorder %s15, 0
    %p113 = por %p111, %p112
    %p114 = scmp.ne.s32.totalorder %s102, %s103
    %p115 = scmp.eq.s32.totalorder %s16, 1
    %p116 = por %p114, %p115
    %p118 = scmp.ne.s32.totalorder %s103, %s117
    %p119 = scmp.eq.s32.totalorder %s16, 0
    %p120 = por %p118, %p119
    %s121 = ssub.s32 %s17, %s29
    %s122 = ssub.s32 %s18, %s25
    %s123 = sor.u32 %s121, %s122
    %p124 = scmp.eq.s32.totalorder %s123, 0
    %s126 = sadd.s32 %s125, 1
    %s127 = scalar_select %p124, %s125, %s126
    %p130 = pneg %p124
    %p131 = scmp.eq.s32.totalorder %s10, 1
    %p132 = por %p130, %p131
    %p133 = scmp.ne.s32.totalorder %s125, %s128
    %p134 = scmp.eq.s32.totalorder %s10, 0
    %p135 = por %p133, %p134
    %p136 = scmp.ne.s32.totalorder %s125, %s128
    %p137 = scmp.eq.s32.totalorder %s15, 1
    %p138 = por %p136, %p137
    %p139 = scmp.ne.s32.totalorder %s128, %s129
    %p140 = scmp.eq.s32.totalorder %s15, 0
    %p141 = por %p139, %p140
    %p142 = scmp.ne.s32.totalorder %s128, %s129
    %p143 = scmp.eq.s32.totalorder %s16, 1
    %p144 = por %p142, %p143
    %p146 = scmp.ne.s32.totalorder %s129, %s145
    %p147 = scmp.eq.s32.totalorder %s16, 0
    %p148 = por %p146, %p147
    %p149 = scmp.le.s32.totalorder 1, %s10
    %p150 = scmp.lt.s32.totalorder %s10, 3
    %p151 = pnand %p149, %p150
    %p152 = pneg %p151
    // Predicated region
    $region9: #{ssi_forward.13} parent=5 // pred_check
      _
    $region10: #{ssi_forward.13} parent=5 // pred_check_branch
      %154 = sbr.rel (%p151) target = $region12
    $region11: #{ssi_forward.13} parent=5 // pred_region
      %s155 = ssub.s32 %s10, 1
      // Predicated region
      $region13: #{ssi_forward.13} parent=11 // pred_check
        %p156 = pneg %p71
      $region14: #{ssi_forward.13} parent=11 // pred_check_branch
        %158 = sbr.rel (%p156) target = $region16
      $region15: #{ssi_forward.13} parent=11 // pred_region
        _
      $region16: #{ssi_forward.13} parent=11 // pred_fallthru
        _
      // Predicated region
      $region17: #{ssi_forward.13} parent=11 // pred_check
        %p159 = pneg %p92
      $region18: #{ssi_forward.13} parent=11 // pred_check_branch
        %161 = sbr.rel (%p159) target = $region20
      $region19: #{ssi_forward.13} parent=11 // pred_region
        _
      $region20: #{ssi_forward.13} parent=11 // pred_fallthru
        _
      // Predicated region
      $region21: #{ssi_forward.13} parent=11 // pred_check
        %p162 = pneg %p113
      $region22: #{ssi_forward.13} parent=11 // pred_check_branch
        %164 = sbr.rel (%p162) target = $region24
      $region23: #{ssi_forward.13} parent=11 // pred_region
        _
      $region24: #{ssi_forward.13} parent=11 // pred_fallthru
        _
    $region12: #{ssi_forward.13} parent=5 // pred_fallthru
      _
    %p165 = scmp.lt.s32.totalorder %s10, 2
    // Predicated region
    $region25: #{ssi_forward.13} parent=5 // pred_check
      %p166 = pneg %p165
    $region26: #{ssi_forward.13} parent=5 // pred_check_branch
      %168 = sbr.rel (%p166) target = $region28
    $region27: #{ssi_forward.13} parent=5 // pred_region
      // Predicated region
      $region29: #{ssi_forward.13} parent=27 // pred_check
        %p169 = pneg %p44
      $region30: #{ssi_forward.13} parent=27 // pred_check_branch
        %171 = sbr.rel (%p169) target = $region32
      $region31: #{ssi_forward.13} parent=27 // pred_region
        %s172 = smul.u32 5, %s18
        %p173 = scmp.lt.s32.totalorder %s17, 1
        %s174 = scalar_select %p173, %s17, 1
        %p175 = scmp.lt.s32.totalorder %s172, 4
        %s176 = scalar_select %p175, %s172, 4
        %s177 = smul.addr %s174, 5
        %s178 = sadd.s32 %s176, %s177
        %s179 = smul.addr %s178, 4
        %s180 = scalar_lea.vmem %s0, %s179
        %s181 = smul.u32 5, %s18
      $region32: #{ssi_forward.13} parent=27 // pred_fallthru
        _
    $region28: #{ssi_forward.13} parent=5 // pred_fallthru
      _
    %p182 = scmp.le.s32.totalorder 1, %s10
    %p183 = scmp.lt.s32.totalorder %s10, 3
    %p184 = pnand %p182, %p183
    %p185 = pneg %p184
    // Predicated region
    $region33: #{ssi_forward.13} parent=5 // pred_check
      _
    $region34: #{ssi_forward.13} parent=5 // pred_check_branch
      %187 = sbr.rel (%p184) target = $region36
    $region35: #{ssi_forward.13} parent=5 // pred_region
      %s188 = ssub.s32 %s10, 1
      %s189 = smul.u32 5, %s20
      %p190 = scmp.lt.s32.totalorder %s19, 1
      %s191 = scalar_select %p190, %s19, 1
      %p192 = scmp.lt.s32.totalorder %s189, 4
      %s193 = scalar_select %p192, %s189, 4
      %s194 = smul.addr %s191, 5
      %s195 = sadd.s32 %s193, %s194
      %s196 = smul.addr %s195, 4
      %s197 = scalar_lea.vmem %s0, %s196
      %p198 = pneg %p50
      %p199 = pneg %p47
      %p200 = pneg %p71
      %p201 = pneg %p68
      %p202 = pneg %p92
      %p203 = pneg %p89
      %p204 = pneg %p113
      %p205 = pneg %p110
      %p206 = pneg %p141
      %p207 = pneg %p138
      %s208 = smul.u32 5, %s20
      %p209 = scmp.lt.s32.totalorder %s19, 1
      %s210 = scalar_select %p209, %s19, 1
      %p211 = scmp.lt.s32.totalorder %s208, 4
      %s212 = scalar_select %p211, %s208, 4
      %s213 = smul.addr %s210, 5
      %s214 = sadd.s32 %s212, %s213
      %s215 = smul.addr %s214, 4
      %s216 = scalar_lea.vmem %s4, %s215
      %s217 = smul.u32 5, %s20
      %p218 = scmp.lt.s32.totalorder %s19, 1
      %s219 = scalar_select %p218, %s19, 1
      %p220 = scmp.lt.s32.totalorder %s217, 4
      %s221 = scalar_select %p220, %s217, 4
      %s222 = smul.addr %s219, 5
      %s223 = sadd.s32 %s221, %s222
      %s224 = smul.addr %s223, 4
      %s225 = scalar_lea.vmem %s0, %s224
      %s226 = smul.u32 5, %s20
      %s227 = smul.u32 5, %s20
      %p228 = scmp.lt.s32.totalorder %s19, 1
      %s229 = scalar_select %p228, %s19, 1
      %p230 = scmp.lt.s32.totalorder %s227, 4
      %s231 = scalar_select %p230, %s227, 4
      %s232 = smul.addr %s229, 5
      %s233 = sadd.s32 %s231, %s232
      %s234 = smul.addr %s233, 4
      %s235 = scalar_lea.vmem %s4, %s234
      %s236 = smul.u32 5, %s20
      %v238 = vld [vmem:[%s1] sm:$0xf]
      %v239 = vld [vmem:[%s225] sm:$0xff]
      %v240 = vld [vmem:[%s225 + $0x8] sm:$0xff]
      %v241 = vld [vmem:[%s225 + $0x10] sm:$0xf]
      %v245 = vunpack.c.l.b16 %v239
      %v246 = vunpack.c.h.b16 %v239
      %v247 = vunpack.c.l.b16 %v240
      %v248 = vunpack.c.h.b16 %v240
      %v249 = vunpack.c.l.b16 %v241
      %v250 = vpack.c.b16 %v245, %v245
      %v251 = vpack.c.b16 %v246, %v246
      %v252 = vpack.c.b16 %v247, %v247
      %v253 = vpack.c.b16 %v248, %v248
      %v254 = vpack.c.b16 %v249, %v249
      %vm255 = vcmask 64512
      %v257 = vsel %vm255, %v238, 0
      %vm259 = vcmask 1043456
      %v261 = vsel %vm259, %v250, 0
      %v264 = vsel %vm259, %v251, 0
      %v267 = vsel %vm259, %v252, 0
      %v270 = vsel %vm259, %v253, 0
      %v273 = vsel %vm259, %v254, 0
      %275 = vmatprep.subr.bf16.mxu0 %v264
      %276 = vmatpush1.bf16.msra.mxu0 %v261
      %277 = vmatprep.subr.bf16.mxu0 0
      %278 = vmatpush1.bf16.msra.mxu0 0
      %279 = vmatprep.subr.bf16.mxu0 0
      %280 = vmatpush1.bf16.msra.mxu0 0
      %281 = vmatprep.subr.bf16.mxu0 0
      %282 = vmatpush1.bf16.msra.mxu0 0
      %283 = vmatprep.subr.bf16.mxu0 0
      %284 = vmatpush1.bf16.msra.mxu0 0
      %285 = vmatprep.subr.bf16.mxu0 0
      %286 = vmatpush1.bf16.msra.mxu0 0
      %287 = vmatprep.subr.bf16.mxu0 0
      %288 = vmatpush1.bf16.msra.mxu0 0
      %289 = vmatprep.subr.bf16.mxu0 0
      %290 = vmatpush1.bf16.msra.mxu0 0
      %291 = vmatprep.subr.bf16.mxu0 0
      %292 = vmatpush1.bf16.msra.mxu0 0
      %293 = vmatprep.subr.bf16.mxu0 0
      %294 = vmatpush1.bf16.msra.mxu0 0
      %295 = vmatprep.subr.bf16.mxu0 0
      %296 = vmatpush1.bf16.msra.mxu0 0
      %297 = vmatprep.subr.bf16.mxu0 0
      %298 = vmatpush1.bf16.msra.mxu0 0
      %299 = vmatprep.subr.bf16.mxu0 0
      %300 = vmatpush1.bf16.msra.mxu0 0
      %301 = vmatprep.subr.bf16.mxu0 0
      %302 = vmatpush1.bf16.msra.mxu0 0
      %303 = vmatprep.subr.bf16.mxu0 0
      %304 = vmatpush1.bf16.msra.mxu0 0
      %305 = vmatprep.subr.bf16.mxu0 0
      %306 = vmatpush1.bf16.msra.mxu0 0
      %307 = vmatprep.mubr.bf16.mxu0 0
      %308 = vmatmul.mubr.bf16.gmra.mrb[0].mxu0 %v257
      %v309 = vpop.f32.mrb[0].mxu0
      %v310 = vadd.f32 0.0, %v309
      %v311 = vpop.f32.mrb[0].mxu0
      %v312 = vadd.f32 0.0, %v311
      %v313 = vpop.f32.mrb[0].mxu0
      %v314 = vpop.f32.mrb[0].mxu0
      %315 = vdwg.mxu0
      %316 = vmatprep.subr.bf16.mxu0 %v270
      %317 = vmatpush1.bf16.msra.mxu0 %v267
      %318 = vmatprep.subr.bf16.mxu0 0
      %319 = vmatpush1.bf16.msra.mxu0 0
      %320 = vmatprep.subr.bf16.mxu0 0
      %321 = vmatpush1.bf16.msra.mxu0 0
      %322 = vmatprep.subr.bf16.mxu0 0
      %323 = vmatpush1.bf16.msra.mxu0 0
      %324 = vmatprep.subr.bf16.mxu0 0
      %325 = vmatpush1.bf16.msra.mxu0 0
      %326 = vmatprep.subr.bf16.mxu0 0
      %327 = vmatpush1.bf16.msra.mxu0 0
      %328 = vmatprep.subr.bf16.mxu0 0
      %329 = vmatpush1.bf16.msra.mxu0 0
      %330 = vmatprep.subr.bf16.mxu0 0
      %331 = vmatpush1.bf16.msra.mxu0 0
      %332 = vmatprep.subr.bf16.mxu0 0
      %333 = vmatpush1.bf16.msra.mxu0 0
      %334 = vmatprep.subr.bf16.mxu0 0
      %335 = vmatpush1.bf16.msra.mxu0 0
      %336 = vmatprep.subr.bf16.mxu0 0
      %337 = vmatpush1.bf16.msra.mxu0 0
      %338 = vmatprep.subr.bf16.mxu0 0
      %339 = vmatpush1.bf16.msra.mxu0 0
      %340 = vmatprep.subr.bf16.mxu0 0
      %341 = vmatpush1.bf16.msra.mxu0 0
      %342 = vmatprep.subr.bf16.mxu0 0
      %343 = vmatpush1.bf16.msra.mxu0 0
      %344 = vmatprep.subr.bf16.mxu0 0
      %345 = vmatpush1.bf16.msra.mxu0 0
      %346 = vmatprep.subr.bf16.mxu0 0
      %347 = vmatpush1.bf16.msra.mxu0 0
      %348 = vmatprep.mubr.bf16.mxu0 0
      %349 = vmatmul.mubr.bf16.gmra.mrb[0].mxu0 %v257
      %v350 = vpop.f32.mrb[0].mxu0
      %v351 = vadd.f32 0.0, %v350
      %v352 = vpop.f32.mrb[0].mxu0
      %v353 = vadd.f32 0.0, %v352
      %v354 = vpop.f32.mrb[0].mxu0
      %v355 = vpop.f32.mrb[0].mxu0
      %356 = vdwg.mxu0
      %357 = vmatprep.subr.bf16.mxu0 0
      %358 = vmatpush1.bf16.msra.mxu0 %v273
      %359 = vmatprep.subr.bf16.mxu0 0
      %360 = vmatpush1.bf16.msra.mxu0 0
      %361 = vmatprep.subr.bf16.mxu0 0
      %362 = vmatpush1.bf16.msra.mxu0 0
      %363 = vmatprep.subr.bf16.mxu0 0
      %364 = vmatpush1.bf16.msra.mxu0 0
      %365 = vmatprep.subr.bf16.mxu0 0
      %366 = vmatpush1.bf16.msra.mxu0 0
      %367 = vmatprep.subr.bf16.mxu0 0
      %368 = vmatpush1.bf16.msra.mxu0 0
      %369 = vmatprep.subr.bf16.mxu0 0
      %370 = vmatpush1.bf16.msra.mxu0 0
      %371 = vmatprep.subr.bf16.mxu0 0
      %372 = vmatpush1.bf16.msra.mxu0 0
      %373 = vmatprep.subr.bf16.mxu0 0
      %374 = vmatpush1.bf16.msra.mxu0 0
      %375 = vmatprep.subr.bf16.mxu0 0
      %376 = vmatpush1.bf16.msra.mxu0 0
      %377 = vmatprep.subr.bf16.mxu0 0
      %378 = vmatpush1.bf16.msra.mxu0 0
      %379 = vmatprep.subr.bf16.mxu0 0
      %380 = vmatpush1.bf16.msra.mxu0 0
      %381 = vmatprep.subr.bf16.mxu0 0
      %382 = vmatpush1.bf16.msra.mxu0 0
      %383 = vmatprep.subr.bf16.mxu0 0
      %384 = vmatpush1.bf16.msra.mxu0 0
      %385 = vmatprep.subr.bf16.mxu0 0
      %386 = vmatpush1.bf16.msra.mxu0 0
      %387 = vmatprep.subr.bf16.mxu0 0
      %388 = vmatpush1.bf16.msra.mxu0 0
      %389 = vmatprep.mubr.bf16.mxu0 0
      %390 = vmatmul.mubr.bf16.gmra.mrb[0].mxu0 %v257
      %v391 = vpop.f32.mrb[0].mxu0
      %v392 = vadd.f32 0.0, %v391
      %v393 = vpop.f32.mrb[0].mxu0
      %v394 = vpop.f32.mrb[0].mxu0
      %v395 = vpop.f32.mrb[0].mxu0
      %396 = vdwg.mxu0
      %v397 = vld [vmem:[%s2] sm:$0xff]
      %399 = vset.pattern.permute.xlu0 0
      %400 = vperm.xlu0 %399, %v397
      %v401 = vpop.permute.xlu0 %400
      %v403 = vmul.f32 %v310, %v401
      %v404 = vmul.f32 %v312, %v401
      %v405 = vmul.f32 %v351, %v401
      %v406 = vmul.f32 %v353, %v401
      %v407 = vmul.f32 %v392, %v401
      %v408 = vld [vmem:[%s3] sm:$0xff]
      %410 = vset.pattern.permute.xlu0 0
      %411 = vperm.xlu0 %410, %v408
      %v412 = vpop.permute.xlu0 %411
      %v414 = vadd.f32 %v403, %v412
      %v415 = vadd.f32 %v404, %v412
      %v416 = vadd.f32 %v405, %v412
      %v417 = vadd.f32 %v406, %v412
      %v418 = vadd.f32 %v407, %v412
      %s419 = smul.u32 %s20, 640
      %v420 = vlaneseq
      %v421 = vand.u32 %v420, 127
      %v422 = vadd.s32 %v421, 128
      %v423 = vadd.s32 %v421, 256
      %v424 = vadd.s32 %v421, 384
      %v425 = vadd.s32 %v421, 512
      %v426 = vstv %s419
      %v427 = vadd.s32 %v426, %v421
      %v428 = vadd.s32 %v426, %v422
      %v429 = vadd.s32 %v426, %v423
      %v430 = vadd.s32 %v426, %v424
      %v431 = vadd.s32 %v426, %v425
      %vm432 = vcmp.lt.s32.totalorder %v427, 576
      %vm433 = vcmp.lt.s32.totalorder %v428, 576
      %vm434 = vcmp.lt.s32.totalorder %v429, 576
      %vm435 = vcmp.lt.s32.totalorder %v430, 576
      %vm436 = vcmp.lt.s32.totalorder %v431, 576
      %v437 = vsel %vm432, %v414, 0.0
      %v438 = vsel %vm433, %v415, 0.0
      %v439 = vsel %vm434, %v416, 0.0
      %v440 = vsel %vm435, %v417, 0.0
      %v441 = vsel %vm436, %v418, 0.0
      %v442 = vpack.c.bf16 %v437, %v437
      %v443 = vpack.c.bf16 %v438, %v438
      %v444 = vpack.c.bf16 %v439, %v439
      %v445 = vpack.c.bf16 %v440, %v440
      %v446 = vpack.c.bf16 %v441, %v441
      %v452 = vunpack.c.l.b16 %v442
      %v453 = vunpack.c.l.b16 %v443
      %v454 = vunpack.c.l.b16 %v444
      %v455 = vunpack.c.l.b16 %v445
      %v456 = vunpack.c.l.b16 %v446
      %v457 = vpack.c.b16 %v453, %v452
      %v458 = vpack.c.b16 %v455, %v454
      %v459 = vpack.c.b16 %v456, %v456
      %463 = vst [vmem:[%s235] sm:$0xff] %v457
      %464 = vst [vmem:[%s235 + $0x8] sm:$0xff] %v458
      %465 = vst [vmem:[%s235 + $0x10] sm:$0xf] %v459
      %s466 = smul.u32 5, %s20
      %p467 = scmp.lt.s32.totalorder %s19, 1
      %s468 = scalar_select %p467, %s19, 1
      %p469 = scmp.lt.s32.totalorder %s466, 4
      %s470 = scalar_select %p469, %s466, 4
      %s471 = smul.addr %s468, 5
      %s472 = sadd.s32 %s470, %s471
      %s473 = smul.addr %s472, 4
      %s474 = scalar_lea.vmem %s4, %s473
      // Predicated region
      $region37: #{ssi_forward.13} parent=35 // pred_check
        %p475 = pneg %p138
      $region38: #{ssi_forward.13} parent=35 // pred_check_branch
        %477 = sbr.rel (%p475) target = $region40
      $region39: #{ssi_forward.13} parent=35 // pred_region
        %s478 = smul.u32 5, %s20
      $region40: #{ssi_forward.13} parent=35 // pred_fallthru
        _
    $region36: #{ssi_forward.13} parent=5 // pred_fallthru
      _
    %p479 = scmp.le.s32.totalorder 2, %s10
    // Predicated region
    $region41: #{ssi_forward.13} parent=5 // pred_check
      %p480 = pneg %p479
    $region42: #{ssi_forward.13} parent=5 // pred_check_branch
      %482 = sbr.rel (%p480) target = $region44
    $region43: #{ssi_forward.13} parent=5 // pred_region
      %s483 = ssub.s32 %s10, 2
      // Predicated region
      $region45: #{ssi_forward.13} parent=43 // pred_check
        %p484 = pneg %p144
      $region46: #{ssi_forward.13} parent=43 // pred_check_branch
        %486 = sbr.rel (%p484) target = $region48
      $region47: #{ssi_forward.13} parent=43 // pred_region
        %s487 = smul.u32 5, %s22
        %p488 = scmp.lt.s32.totalorder %s21, 1
        %s489 = scalar_select %p488, %s21, 1
        %p490 = scmp.lt.s32.totalorder %s487, 4
        %s491 = scalar_select %p490, %s487, 4
        %s492 = smul.addr %s489, 5
        %s493 = sadd.s32 %s491, %s492
        %s494 = smul.addr %s493, 4
        %s495 = scalar_lea.vmem %s4, %s494
      $region48: #{ssi_forward.13} parent=43 // pred_fallthru
        _
    $region44: #{ssi_forward.13} parent=5 // pred_fallthru
      _
  $region6: #{ssi_forward.13} parent=0 // loop_footer
    %s14 = sadd.s32 1, %s10
  $region7: #{ssi_forward.13} parent=0 // loop_footer_branch
    %9 = sbr.rel target = $region3
  $region8: #{ssi_forward.13} parent=0 // loop_exit
    _

// kernel: ssi_forward.16
$region0: #{ssi_forward.16}
  #allocation0 [shape = 'u32[]', space=smem, size = 0x4, offset = 0x4, fixed_abs, tag = 'smem constant byte address 0x4 - core index']
  #allocation1 [shape = 'u32[144,128]{1,0:T(1,128)}', space=vmem, size = 0x12000, scoped, tag = 'internal scratch']
  %s0 = inlined_call_operand.vmem [shape: bf16[16,5120], index: 0, kind: input, shape index: {}]
  %s1 = inlined_call_operand.vmem [shape: f32[2,16,16], index: 1, kind: output, shape index: {}]
  %s2 = sld [smem:[#allocation0]]
  $region64: #{ssi_forward.16} parent=0
    _
  %s4 = ssub.s32 1, %s2
  %s5 = scalar_select 0, %s4, %s2
  $region1: #{ssi_forward.16} parent=0
    #allocation2 [shape = 'u8[163840]{0}', space=vmem, size = 0x28000, scoped, tag = 'input window, operand 0']
    loop: start=0, step=1, limit=4
    $region2: #{ssi_forward.16} parent=1 // loop_pre_header
      _
    $region3: #{ssi_forward.16} parent=1 // loop_header
      %s7 = sphi 0, %s11
      %p8 = scmp.ge.s32.totalorder %s7, 4
      %s14 = sphi 0, %s26
      %s15 = sphi 0, %s22
      %s16 = sphi 0, %s14
      %s17 = sphi 0, %s15
      %s18 = sphi 0, %s16
      %s19 = sphi 0, %s17
      %s31 = sphi 0, %s33
      %s34 = sphi 0, %s31
      %s35 = sphi 0, %s34
      %s51 = sphi 0, %s35
      %s57 = sphi 0, %s59
      %s60 = sphi 0, %s57
      %s61 = sphi 0, %s60
      %s77 = sphi 0, %s61
    $region4: #{ssi_forward.16} parent=1 // loop_header_branch
      %10 = sbr.rel (%p8) target = $region8
    $region5: #{ssi_forward.16} parent=1 // loop_body
      %s12 = ssub.s32 %s7, 1
      %s13 = ssub.s32 %s7, 2
      %s20 = sadd.s32 1, %s15
      %p21 = scmp.ge.s32.totalorder %s20, 1
      %s22 = scalar_select %p21, 0, %s20
      %s23 = sadd.s32 1, %s14
      %s24 = scalar_select %p21, %s23, %s14
      %p25 = scmp.ge.s32.totalorder %s24, 2
      %s26 = scalar_select %p25, 0, %s24
      %s27 = sadd.s32 %s14, %s15
      %s28 = sadd.s32 %s26, %s22
      %s29 = ssub.s32 %s27, %s28
      %p30 = scmp.eq.s32.totalorder %s29, 0
      %s32 = sadd.s32 %s31, 1
      %s33 = scalar_select %p30, %s31, %s32
      %p36 = pneg %p30
      %p37 = scmp.eq.s32.totalorder %s7, 1
      %p38 = por %p36, %p37
      %p39 = scmp.ne.s32.totalorder %s31, %s34
      %p40 = scmp.eq.s32.totalorder %s7, 0
      %p41 = por %p39, %p40
      %p42 = scmp.ne.s32.totalorder %s31, %s34
      %p43 = scmp.eq.s32.totalorder %s12, 1
      %p44 = por %p42, %p43
      %p45 = scmp.ne.s32.totalorder %s34, %s35
      %p46 = scmp.eq.s32.totalorder %s12, 0
      %p47 = por %p45, %p46
      %p48 = scmp.ne.s32.totalorder %s34, %s35
      %p49 = scmp.eq.s32.totalorder %s13, 1
      %p50 = por %p48, %p49
      %p52 = scmp.ne.s32.totalorder %s35, %s51
      %p53 = scmp.eq.s32.totalorder %s13, 0
      %p54 = por %p52, %p53
      %s55 = ssub.s32 %s14, %s26
      %p56 = scmp.eq.s32.totalorder %s55, 0
      %s58 = sadd.s32 %s57, 1
      %s59 = scalar_select %p56, %s57, %s58
      %p62 = pneg %p56
      %p63 = scmp.eq.s32.totalorder %s7, 1
      %p64 = por %p62, %p63
      %p65 = scmp.ne.s32.totalorder %s57, %s60
      %p66 = scmp.eq.s32.totalorder %s7, 0
      %p67 = por %p65, %p66
      %p68 = scmp.ne.s32.totalorder %s57, %s60
      %p69 = scmp.eq.s32.totalorder %s12, 1
      %p70 = por %p68, %p69
      %p71 = scmp.ne.s32.totalorder %s60, %s61
      %p72 = scmp.eq.s32.totalorder %s12, 0
      %p73 = por %p71, %p72
      %p74 = scmp.ne.s32.totalorder %s60, %s61
      %p75 = scmp.eq.s32.totalorder %s13, 1
      %p76 = por %p74, %p75
      %p78 = scmp.ne.s32.totalorder %s61, %s77
      %p79 = scmp.eq.s32.totalorder %s13, 0
      %p80 = por %p78, %p79
      %p81 = scmp.le.s32.totalorder 1, %s7
      %p82 = scmp.lt.s32.totalorder %s7, 3
      %p83 = pnand %p81, %p82
      %p84 = pneg %p83
      // Predicated region
      $region9: #{ssi_forward.16} parent=5 // pred_check
        _
      $region10: #{ssi_forward.16} parent=5 // pred_check_branch
        %86 = sbr.rel (%p83) target = $region12
      $region11: #{ssi_forward.16} parent=5 // pred_region
        %s87 = ssub.s32 %s7, 1
      $region12: #{ssi_forward.16} parent=5 // pred_fallthru
        _
      %p88 = scmp.lt.s32.totalorder %s7, 2
      // Predicated region
      $region13: #{ssi_forward.16} parent=5 // pred_check
        %p89 = pneg %p88
      $region14: #{ssi_forward.16} parent=5 // pred_check_branch
        %91 = sbr.rel (%p89) target = $region16
      $region15: #{ssi_forward.16} parent=5 // pred_region
        // Predicated region
        $region17: #{ssi_forward.16} parent=15 // pred_check
          %p92 = pneg %p41
        $region18: #{ssi_forward.16} parent=15 // pred_check_branch
          %94 = sbr.rel (%p92) target = $region20
        $region19: #{ssi_forward.16} parent=15 // pred_region
          %s95 = sand.u32 %s31, 1
          %s96 = sand.u32 %s31, 1
          %s97 = smul.addr %s96, 160
          %s98 = scalar_lea.vmem [#allocation2], %s97
          %s99 = sadd.s32 %s14, %s15
          %s100 = smul.u32 20, %s99
          %s101 = smul.addr %s100, 4
          %s102 = scalar_lea.vmem %s0, %s101
          // Predicated region
          $region21: #{ssi_forward.16} parent=19 // pred_check
            _
          $region22: #{ssi_forward.16} parent=19 // pred_check_branch
            %104 = sbr.rel (0) target = $region24
          $region23: #{ssi_forward.16} parent=19 // pred_region
            // Predicated region
            $region25: #{ssi_forward.16} parent=23 // pred_check
              _
            $region26: #{ssi_forward.16} parent=23 // pred_check_branch
              %106 = sbr.rel (0) target = $region28
            $region27: #{ssi_forward.16} parent=23 // pred_region
              loop: start=0, step=1, limit=1
              $region29: #{ssi_forward.16} parent=27 // loop_pre_header
                _
              $region30: #{ssi_forward.16} parent=27 // loop_header
                %s108 = sphi 0, %s112
                %p109 = scmp.ge.s32.totalorder %s108, 1
                %s113 = sphi %s102, %s102
                %s114 = sphi %s98, %s98
              $region31: #{ssi_forward.16} parent=27 // loop_header_branch
                %111 = sbr.rel (%p109) target = $region35
              $region32: #{ssi_forward.16} parent=27 // loop_body
                %v115 = vld [vmem:[%s113] sm:$0xff]
                %116 = vst [vmem:[%s114] sm:$0xff] %v115
                %v117 = vld [vmem:[%s113 + $0x8] sm:$0xff]
                %118 = vst [vmem:[%s114 + $0x8] sm:$0xff] %v117
                %v119 = vld [vmem:[%s113 + $0x10] sm:$0xff]
                %120 = vst [vmem:[%s114 + $0x10] sm:$0xff] %v119
                %v121 = vld [vmem:[%s113 + $0x18] sm:$0xff]
                %122 = vst [vmem:[%s114 + $0x18] sm:$0xff] %v121
                %v123 = vld [vmem:[%s113 + $0x20] sm:$0xff]
                %124 = vst [vmem:[%s114 + $0x20] sm:$0xff] %v123
                %v125 = vld [vmem:[%s113 + $0x28] sm:$0xff]
                %126 = vst [vmem:[%s114 + $0x28] sm:$0xff] %v125
                %v127 = vld [vmem:[%s113 + $0x30] sm:$0xff]
                %128 = vst [vmem:[%s114 + $0x30] sm:$0xff] %v127
                %v129 = vld [vmem:[%s113 + $0x38] sm:$0xff]
                %130 = vst [vmem:[%s114 + $0x38] sm:$0xff] %v129
                %v131 = vld [vmem:[%s113 + $0x40] sm:$0xff]
                %132 = vst [vmem:[%s114 + $0x40] sm:$0xff] %v131
                %v133 = vld [vmem:[%s113 + $0x48] sm:$0xff]
                %134 = vst [vmem:[%s114 + $0x48] sm:$0xff] %v133
                %v135 = vld [vmem:[%s113 + $0xa0] sm:$0xff]
                %136 = vst [vmem:[%s114 + $0x50] sm:$0xff] %v135
                %v137 = vld [vmem:[%s113 + $0xa8] sm:$0xff]
                %138 = vst [vmem:[%s114 + $0x58] sm:$0xff] %v137
                %v139 = vld [vmem:[%s113 + $0xb0] sm:$0xff]
                %140 = vst [vmem:[%s114 + $0x60] sm:$0xff] %v139
                %v141 = vld [vmem:[%s113 + $0xb8] sm:$0xff]
                %142 = vst [vmem:[%s114 + $0x68] sm:$0xff] %v141
                %v143 = vld [vmem:[%s113 + $0xc0] sm:$0xff]
                %144 = vst [vmem:[%s114 + $0x70] sm:$0xff] %v143
                %v145 = vld [vmem:[%s113 + $0xc8] sm:$0xff]
                %146 = vst [vmem:[%s114 + $0x78] sm:$0xff] %v145
                %v147 = vld [vmem:[%s113 + $0xd0] sm:$0xff]
                %148 = vst [vmem:[%s114 + $0x80] sm:$0xff] %v147
                %v149 = vld [vmem:[%s113 + $0xd8] sm:$0xff]
                %150 = vst [vmem:[%s114 + $0x88] sm:$0xff] %v149
                %v151 = vld [vmem:[%s113 + $0xe0] sm:$0xff]
                %152 = vst [vmem:[%s114 + $0x90] sm:$0xff] %v151
                %v153 = vld [vmem:[%s113 + $0xe8] sm:$0xff]
                %154 = vst [vmem:[%s114 + $0x98] sm:$0xff] %v153
              $region33: #{ssi_forward.16} parent=27 // loop_footer
                %s112 = sadd.s32 1, %s108
              $region34: #{ssi_forward.16} parent=27 // loop_footer_branch
                %107 = sbr.rel target = $region30
              $region35: #{ssi_forward.16} parent=27 // loop_exit
                _
            $region28: #{ssi_forward.16} parent=23 // pred_fallthru
              _
            // Predicated region
            $region36: #{ssi_forward.16} parent=23 // pred_check
              _
            $region37: #{ssi_forward.16} parent=23 // pred_check_branch
              %156 = sbr.rel target = $region39
            $region38: #{ssi_forward.16} parent=23 // pred_region
              _
            $region39: #{ssi_forward.16} parent=23 // pred_fallthru
              _
          $region24: #{ssi_forward.16} parent=19 // pred_fallthru
            _
          %157 = vnop
        $region20: #{ssi_forward.16} parent=15 // pred_fallthru
          _
      $region16: #{ssi_forward.16} parent=5 // pred_fallthru
        _
      %p158 = scmp.le.s32.totalorder 1, %s7
      %p159 = scmp.lt.s32.totalorder %s7, 3
      %p160 = pnand %p158, %p159
      %p161 = pneg %p160
      // Predicated region
      $region40: #{ssi_forward.16} parent=5 // pred_check
        _
      $region41: #{ssi_forward.16} parent=5 // pred_check_branch
        %163 = sbr.rel (%p160) target = $region43
      $region42: #{ssi_forward.16} parent=5 // pred_region
        %s164 = ssub.s32 %s7, 1
        %s165 = sand.u32 %s34, 1
        %s166 = sand.u32 %s34, 1
        %s167 = smul.addr %s166, 160
        %s168 = scalar_lea.vmem [#allocation2], %s167
        // Predicated region
        $region44: #{ssi_forward.16} parent=42 // pred_check
          %p169 = pneg %p47
        $region45: #{ssi_forward.16} parent=42 // pred_check_branch
          %171 = sbr.rel (%p169) target = $region47
        $region46: #{ssi_forward.16} parent=42 // pred_region
          _
        $region47: #{ssi_forward.16} parent=42 // pred_fallthru
          _
        %s172 = sand.u32 %s34, 1
        %s173 = sand.u32 %s34, 1
        %s174 = smul.addr %s173, 160
        %s175 = scalar_lea.vmem [#allocation2], %s174
        %p176 = pneg %p47
        %p177 = pneg %p44
        %p178 = pneg %p73
        %p179 = pneg %p70
        %p180 = scmp.lt.s32.totalorder %s16, 1
        %s181 = scalar_select %p180, %s16, 1
        %s182 = smul.addr %s181, 2
        %s183 = smul.addr %s182, 8
        %s184 = scalar_lea.vmem %s1, %s183
        %s185 = sadd.s32 %s16, %s17
        %s186 = smul.u32 20, %s185
        %p187 = scmp.lt.s32.totalorder %s16, 1
        %s188 = scalar_select %p187, %s16, 1
        %s189 = smul.addr %s188, 2
        %s190 = smul.addr %s189, 8
        %s191 = scalar_lea.vmem %s1, %s190
        %p193 = scmp.eq.s32.totalorder %s17, 0
        // Predicated region
        $region48: #{ssi_forward.16} parent=42 // pred_check
          %p194 = pneg %p193
        $region49: #{ssi_forward.16} parent=42 // pred_check_branch
          %196 = sbr.rel (%p194) target = $region51
        $region50: #{ssi_forward.16} parent=42 // pred_region
          %vm197 = vcmask 130048
          %198 = vst.msk [vmem:[%s191] sm:$0xff] %vm197, 0.0
          %199 = vst.msk [vmem:[%s191 + $0x8] sm:$0xff] %vm197, 0.0
        $region51: #{ssi_forward.16} parent=42 // pred_fallthru
          _
        %v200 = vld [vmem:[%s168] sm:$0xff]
        %v201 = vld [vmem:[%s168 + $0x8] sm:$0xff]
        %v202 = vld [vmem:[%s168 + $0x10] sm:$0xff]
        %v203 = vld [vmem:[%s168 + $0x18] sm:$0xff]
        %v204 = vld [vmem:[%s168 + $0x20] sm:$0xff]
        %v205 = vld [vmem:[%s168 + $0x28] sm:$0xff]
        %v206 = vld [vmem:[%s168 + $0x30] sm:$0xff]
        %v207 = vld [vmem:[%s168 + $0x38] sm:$0xff]
        %v208 = vld [vmem:[%s168 + $0x40] sm:$0xff]
        %v209 = vld [vmem:[%s168 + $0x48] sm:$0xff]
        %v210 = vld [vmem:[%s168 + $0x50] sm:$0xff]
        %v211 = vld [vmem:[%s168 + $0x58] sm:$0xff]
        %v212 = vld [vmem:[%s168 + $0x60] sm:$0xff]
        %v213 = vld [vmem:[%s168 + $0x68] sm:$0xff]
        %v214 = vld [vmem:[%s168 + $0x70] sm:$0xff]
        %v215 = vld [vmem:[%s168 + $0x78] sm:$0xff]
        %v216 = vld [vmem:[%s168 + $0x80] sm:$0xff]
        %v217 = vld [vmem:[%s168 + $0x88] sm:$0xff]
        %v218 = vld [vmem:[%s168 + $0x90] sm:$0xff]
        %v219 = vld [vmem:[%s168 + $0x98] sm:$0xff]
        %v220 = vld [vmem:[%s191] sm:$0xff]
        %v221 = vld [vmem:[%s191 + $0x8] sm:$0xff]
        %v242 = vunpack.c.l.b16 %v200
        %v243 = vunpack.c.h.b16 %v200
        %v244 = vunpack.c.l.b16 %v201
        %v245 = vunpack.c.h.b16 %v201
        %v246 = vunpack.c.l.b16 %v202
        %v247 = vunpack.c.h.b16 %v202
        %v248 = vunpack.c.l.b16 %v203
        %v249 = vunpack.c.h.b16 %v203
        %v250 = vunpack.c.l.b16 %v204
        %v251 = vunpack.c.h.b16 %v204
        %v252 = vunpack.c.l.b16 %v205
        %v253 = vunpack.c.h.b16 %v205
        %v254 = vunpack.c.l.b16 %v206
        %v255 = vunpack.c.h.b16 %v206
        %v256 = vunpack.c.l.b16 %v207
        %v257 = vunpack.c.h.b16 %v207
        %v258 = vunpack.c.l.b16 %v208
        %v259 = vunpack.c.h.b16 %v208
        %v260 = vunpack.c.l.b16 %v209
        %v261 = vunpack.c.h.b16 %v209
        %v262 = vunpack.c.l.b16 %v210
        %v263 = vunpack.c.h.b16 %v210
        %v264 = vunpack.c.l.b16 %v211
        %v265 = vunpack.c.h.b16 %v211
        %v266 = vunpack.c.l.b16 %v212
        %v267 = vunpack.c.h.b16 %v212
        %v268 = vunpack.c.l.b16 %v213
        %v269 = vunpack.c.h.b16 %v213
        %v270 = vunpack.c.l.b16 %v214
        %v271 = vunpack.c.h.b16 %v214
        %v272 = vunpack.c.l.b16 %v215
        %v273 = vunpack.c.h.b16 %v215
        %v274 = vunpack.c.l.b16 %v216
        %v275 = vunpack.c.h.b16 %v216
        %v276 = vunpack.c.l.b16 %v217
        %v277 = vunpack.c.h.b16 %v217
        %v278 = vunpack.c.l.b16 %v218
        %v279 = vunpack.c.h.b16 %v218
        %v280 = vunpack.c.l.b16 %v219
        %v281 = vunpack.c.h.b16 %v219
        %v282 = vpack.c.b16 %v262, %v242
        %v283 = vpack.c.b16 %v263, %v243
        %v284 = vpack.c.b16 %v264, %v244
        %v285 = vpack.c.b16 %v265, %v245
        %v286 = vpack.c.b16 %v266, %v246
        %v287 = vpack.c.b16 %v267, %v247
        %v288 = vpack.c.b16 %v268, %v248
        %v289 = vpack.c.b16 %v269, %v249
        %v290 = vpack.c.b16 %v270, %v250
        %v291 = vpack.c.b16 %v271, %v251
        %v292 = vpack.c.b16 %v272, %v252
        %v293 = vpack.c.b16 %v273, %v253
        %v294 = vpack.c.b16 %v274, %v254
        %v295 = vpack.c.b16 %v275, %v255
        %v296 = vpack.c.b16 %v276, %v256
        %v297 = vpack.c.b16 %v277, %v257
        %v298 = vpack.c.b16 %v278, %v258
        %v299 = vpack.c.b16 %v279, %v259
        %v300 = vpack.c.b16 %v280, %v260
        %v301 = vpack.c.b16 %v281, %v261
        %322 = vmatprep.subr.bf16.mxu0 %v283
        %323 = vmatpush1.bf16.xpose.msra.mxu0 %v282
        %324 = vmatprep.subr.bf16.mxu0 0
        %325 = vmatpush1.bf16.xpose.msra.mxu0 0
        %326 = vmatprep.subr.bf16.mxu0 0
        %327 = vmatpush1.bf16.xpose.msra.mxu0 0
        %328 = vmatprep.subr.bf16.mxu0 0
        %329 = vmatpush1.bf16.xpose.msra.mxu0 0
        %330 = vmatprep.subr.bf16.mxu0 0
        %331 = vmatpush1.bf16.xpose.msra.mxu0 0
        %332 = vmatprep.subr.bf16.mxu0 0
        %333 = vmatpush1.bf16.xpose.msra.mxu0 0
        %334 = vmatprep.subr.bf16.mxu0 0
        %335 = vmatpush1.bf16.xpose.msra.mxu0 0
        %336 = vmatprep.subr.bf16.mxu0 0
        %337 = vmatpush1.bf16.xpose.msra.mxu0 0
        %338 = vmatprep.subr.bf16.mxu0 0
        %339 = vmatpush1.bf16.xpose.msra.mxu0 0
        %340 = vmatprep.subr.bf16.mxu0 0
        %341 = vmatpush1.bf16.xpose.msra.mxu0 0
        %342 = vmatprep.subr.bf16.mxu0 0
        %343 = vmatpush1.bf16.xpose.msra.mxu0 0
        %344 = vmatprep.subr.bf16.mxu0 0
        %345 = vmatpush1.bf16.xpose.msra.mxu0 0
        %346 = vmatprep.subr.bf16.mxu0 0
        %347 = vmatpush1.bf16.xpose.msra.mxu0 0
        %348 = vmatprep.subr.bf16.mxu0 0
        %349 = vmatpush1.bf16.xpose.msra.mxu0 0
        %350 = vmatprep.subr.bf16.mxu0 0
        %351 = vmatpush1.bf16.xpose.msra.mxu0 0
        %352 = vmatprep.subr.bf16.mxu0 0
        %353 = vmatpush1.bf16.xpose.msra.mxu0 0
        %354 = vmatprep.mubr.bf16.mxu0 %v283
        %355 = vmatmul.mubr.bf16.gmra.mrb[0].mxu0 %v282
        %v356 = vpop.f32.mrb[0].mxu0
        %v357 = vadd.f32 0.0, %v356
        %v358 = vpop.f32.mrb[0].mxu0
        %v359 = vpop.f32.mrb[0].mxu0
        %v360 = vadd.f32 0.0, %v359
        %v361 = vpop.f32.mrb[0].mxu0
        %362 = vdwg.mxu0
        %363 = vmatprep.subr.bf16.mxu0 %v285
        %364 = vmatpush1.bf16.xpose.msra.mxu0 %v284
        %365 = vmatprep.subr.bf16.mxu0 0
        %366 = vmatpush1.bf16.xpose.msra.mxu0 0
        %367 = vmatprep.subr.bf16.mxu0 0
        %368 = vmatpush1.bf16.xpose.msra.mxu0 0
        %369 = vmatprep.subr.bf16.mxu0 0
        %370 = vmatpush1.bf16.xpose.msra.mxu0 0
        %371 = vmatprep.subr.bf16.mxu0 0
        %372 = vmatpush1.bf16.xpose.msra.mxu0 0
        %373 = vmatprep.subr.bf16.mxu0 0
        %374 = vmatpush1.bf16.xpose.msra.mxu0 0
        %375 = vmatprep.subr.bf16.mxu0 0
        %376 = vmatpush1.bf16.xpose.msra.mxu0 0
        %377 = vmatprep.subr.bf16.mxu0 0
        %378 = vmatpush1.bf16.xpose.msra.mxu0 0
        %379 = vmatprep.subr.bf16.mxu0 0
        %380 = vmatpush1.bf16.xpose.msra.mxu0 0
        %381 = vmatprep.subr.bf16.mxu0 0
        %382 = vmatpush1.bf16.xpose.msra.mxu0 0
        %383 = vmatprep.subr.bf16.mxu0 0
        %384 = vmatpush1.bf16.xpose.msra.mxu0 0
        %385 = vmatprep.subr.bf16.mxu0 0
        %386 = vmatpush1.bf16.xpose.msra.mxu0 0
        %387 = vmatprep.subr.bf16.mxu0 0
        %388 = vmatpush1.bf16.xpose.msra.mxu0 0
        %389 = vmatprep.subr.bf16.mxu0 0
        %390 = vmatpush1.bf16.xpose.msra.mxu0 0
        %391 = vmatprep.subr.bf16.mxu0 0
        %392 = vmatpush1.bf16.xpose.msra.mxu0 0
        %393 = vmatprep.subr.bf16.mxu0 0
        %394 = vmatpush1.bf16.xpose.msra.mxu0 0
        %395 = vmatprep.mubr.bf16.mxu0 %v285
        %396 = vmatmul.mubr.bf16.gmra.mrb[0].mxu0 %v284
        %v397 = vpop.f32.mrb[0].mxu0
        %v398 = vadd.f32 %v357, %v397
        %v399 = vpop.f32.mrb[0].mxu0
        %v400 = vpop.f32.mrb[0].mxu0
        %v401 = vadd.f32 %v360, %v400
        %v402 = vpop.f32.mrb[0].mxu0
        %403 = vdwg.mxu0
        %404 = vmatprep.subr.bf16.mxu0 %v287
        %405 = vmatpush1.bf16.xpose.msra.mxu0 %v286
        %406 = vmatprep.subr.bf16.mxu0 0
        %407 = vmatpush1.bf16.xpose.msra.mxu0 0
        %408 = vmatprep.subr.bf16.mxu0 0
        %409 = vmatpush1.bf16.xpose.msra.mxu0 0
        %410 = vmatprep.subr.bf16.mxu0 0
        %411 = vmatpush1.bf16.xpose.msra.mxu0 0
        %412 = vmatprep.subr.bf16.mxu0 0
        %413 = vmatpush1.bf16.xpose.msra.mxu0 0
        %414 = vmatprep.subr.bf16.mxu0 0
        %415 = vmatpush1.bf16.xpose.msra.mxu0 0
        %416 = vmatprep.subr.bf16.mxu0 0
        %417 = vmatpush1.bf16.xpose.msra.mxu0 0
        %418 = vmatprep.subr.bf16.mxu0 0
        %419 = vmatpush1.bf16.xpose.msra.mxu0 0
        %420 = vmatprep.subr.bf16.mxu0 0
        %421 = vmatpush1.bf16.xpose.msra.mxu0 0
        %422 = vmatprep.subr.bf16.mxu0 0
        %423 = vmatpush1.bf16.xpose.msra.mxu0 0
        %424 = vmatprep.subr.bf16.mxu0 0
        %425 = vmatpush1.bf16.xpose.msra.mxu0 0
        %426 = vmatprep.subr.bf16.mxu0 0
        %427 = vmatpush1.bf16.xpose.msra.mxu0 0
        %428 = vmatprep.subr.bf16.mxu0 0
        %429 = vmatpush1.bf16.xpose.msra.mxu0 0
        %430 = vmatprep.subr.bf16.mxu0 0
        %431 = vmatpush1.bf16.xpose.msra.mxu0 0
        %432 = vmatprep.subr.bf16.mxu0 0
        %433 = vmatpush1.bf16.xpose.msra.mxu0 0
        %434 = vmatprep.subr.bf16.mxu0 0
        %435 = vmatpush1.bf16.xpose.msra.mxu0 0
        %436 = vmatprep.mubr.bf16.mxu0 %v287
        %437 = vmatmul.mubr.bf16.gmra.mrb[0].mxu0 %v286
        %v438 = vpop.f32.mrb[0].mxu0
        %v439 = vadd.f32 %v398, %v438
        %v440 = vpop.f32.mrb[0].mxu0
        %v441 = vpop.f32.mrb[0].mxu0
        %v442 = vadd.f32 %v401, %v441
        %v443 = vpop.f32.mrb[0].mxu0
        %444 = vdwg.mxu0
        %445 = vmatprep.subr.bf16.mxu0 %v289
        %446 = vmatpush1.bf16.xpose.msra.mxu0 %v288
        %447 = vmatprep.subr.bf16.mxu0 0
        %448 = vmatpush1.bf16.xpose.msra.mxu0 0
        %449 = vmatprep.subr.bf16.mxu0 0
        %450 = vmatpush1.bf16.xpose.msra.mxu0 0
        %451 = vmatprep.subr.bf16.mxu0 0
        %452 = vmatpush1.bf16.xpose.msra.mxu0 0
        %453 = vmatprep.subr.bf16.mxu0 0
        %454 = vmatpush1.bf16.xpose.msra.mxu0 0
        %455 = vmatprep.subr.bf16.mxu0 0
        %456 = vmatpush1.bf16.xpose.msra.mxu0 0
        %457 = vmatprep.subr.bf16.mxu0 0
        %458 = vmatpush1.bf16.xpose.msra.mxu0 0
        %459 = vmatprep.subr.bf16.mxu0 0
        %460 = vmatpush1.bf16.xpose.msra.mxu0 0
        %461 = vmatprep.subr.bf16.mxu0 0
        %462 = vmatpush1.bf16.xpose.msra.mxu0 0
        %463 = vmatprep.subr.bf16.mxu0 0
        %464 = vmatpush1.bf16.xpose.msra.mxu0 0
        %465 = vmatprep.subr.bf16.mxu0 0
        %466 = vmatpush1.bf16.xpose.msra.mxu0 0
        %467 = vmatprep.subr.bf16.mxu0 0
        %468 = vmatpush1.bf16.xpose.msra.mxu0 0
        %469 = vmatprep.subr.bf16.mxu0 0
        %470 = vmatpush1.bf16.xpose.msra.mxu0 0
        %471 = vmatprep.subr.bf16.mxu0 0
        %472 = vmatpush1.bf16.xpose.msra.mxu0 0
        %473 = vmatprep.subr.bf16.mxu0 0
        %474 = vmatpush1.bf16.xpose.msra.mxu0 0
        %475 = vmatprep.subr.bf16.mxu0 0
        %476 = vmatpush1.bf16.xpose.msra.mxu0 0
        %477 = vmatprep.mubr.bf16.mxu0 %v289
        %478 = vmatmul.mubr.bf16.gmra.mrb[0].mxu0 %v288
        %v479 = vpop.f32.mrb[0].mxu0
        %v480 = vadd.f32 %v439, %v479
        %v481 = vpop.f32.mrb[0].mxu0
        %v482 = vpop.f32.mrb[0].mxu0
        %v483 = vadd.f32 %v442, %v482
        %v484 = vpop.f32.mrb[0].mxu0
        %485 = vdwg.mxu0
        %486 = vmatprep.subr.bf16.mxu0 %v291
        %487 = vmatpush1.bf16.xpose.msra.mxu0 %v290
        %488 = vmatprep.subr.bf16.mxu0 0
        %489 = vmatpush1.bf16.xpose.msra.mxu0 0
        %490 = vmatprep.subr.bf16.mxu0 0
        %491 = vmatpush1.bf16.xpose.msra.mxu0 0
        %492 = vmatprep.subr.bf16.mxu0 0
        %493 = vmatpush1.bf16.xpose.msra.mxu0 0
        %494 = vmatprep.subr.bf16.mxu0 0
        %495 = vmatpush1.bf16.xpose.msra.mxu0 0
        %496 = vmatprep.subr.bf16.mxu0 0
        %497 = vmatpush1.bf16.xpose.msra.mxu0 0
        %498 = vmatprep.subr.bf16.mxu0 0
        %499 = vmatpush1.bf16.xpose.msra.mxu0 0
        %500 = vmatprep.subr.bf16.mxu0 0
        %501 = vmatpush1.bf16.xpose.msra.mxu0 0
        %502 = vmatprep.subr.bf16.mxu0 0
        %503 = vmatpush1.bf16.xpose.msra.mxu0 0
        %504 = vmatprep.subr.bf16.mxu0 0
        %505 = vmatpush1.bf16.xpose.msra.mxu0 0
        %506 = vmatprep.subr.bf16.mxu0 0
        %507 = vmatpush1.bf16.xpose.msra.mxu0 0
        %508 = vmatprep.subr.bf16.mxu0 0
        %509 = vmatpush1.bf16.xpose.msra.mxu0 0
        %510 = vmatprep.subr.bf16.mxu0 0
        %511 = vmatpush1.bf16.xpose.msra.mxu0 0
        %512 = vmatprep.subr.bf16.mxu0 0
        %513 = vmatpush1.bf16.xpose.msra.mxu0 0
        %514 = vmatprep.subr.bf16.mxu0 0
        %515 = vmatpush1.bf16.xpose.msra.mxu0 0
        %516 = vmatprep.subr.bf16.mxu0 0
        %517 = vmatpush1.bf16.xpose.msra.mxu0 0
        %518 = vmatprep.mubr.bf16.mxu0 %v291
        %519 = vmatmul.mubr.bf16.gmra.mrb[0].mxu0 %v290
        %v520 = vpop.f32.mrb[0].mxu0
        %v521 = vadd.f32 %v480, %v520
        %v522 = vpop.f32.mrb[0].mxu0
        %v523 = vpop.f32.mrb[0].mxu0
        %v524 = vadd.f32 %v483, %v523
        %v525 = vpop.f32.mrb[0].mxu0
        %526 = vdwg.mxu0
        %527 = vmatprep.subr.bf16.mxu0 %v293
        %528 = vmatpush1.bf16.xpose.msra.mxu0 %v292
        %529 = vmatprep.subr.bf16.mxu0 0
        %530 = vmatpush1.bf16.xpose.msra.mxu0 0
        %531 = vmatprep.subr.bf16.mxu0 0
        %532 = vmatpush1.bf16.xpose.msra.mxu0 0
        %533 = vmatprep.subr.bf16.mxu0 0
        %534 = vmatpush1.bf16.xpose.msra.mxu0 0
        %535 = vmatprep.subr.bf16.mxu0 0
        %536 = vmatpush1.bf16.xpose.msra.mxu0 0
        %537 = vmatprep.subr.bf16.mxu0 0
        %538 = vmatpush1.bf16.xpose.msra.mxu0 0
        %539 = vmatprep.subr.bf16.mxu0 0
        %540 = vmatpush1.bf16.xpose.msra.mxu0 0
        %541 = vmatprep.subr.bf16.mxu0 0
        %542 = vmatpush1.bf16.xpose.msra.mxu0 0
        %543 = vmatprep.subr.bf16.mxu0 0
        %544 = vmatpush1.bf16.xpose.msra.mxu0 0
        %545 = vmatprep.subr.bf16.mxu0 0
        %546 = vmatpush1.bf16.xpose.msra.mxu0 0
        %547 = vmatprep.subr.bf16.mxu0 0
        %548 = vmatpush1.bf16.xpose.msra.mxu0 0
        %549 = vmatprep.subr.bf16.mxu0 0
        %550 = vmatpush1.bf16.xpose.msra.mxu0 0
        %551 = vmatprep.subr.bf16.mxu0 0
        %552 = vmatpush1.bf16.xpose.msra.mxu0 0
        %553 = vmatprep.subr.bf16.mxu0 0
        %554 = vmatpush1.bf16.xpose.msra.mxu0 0
        %555 = vmatprep.subr.bf16.mxu0 0
        %556 = vmatpush1.bf16.xpose.msra.mxu0 0
        %557 = vmatprep.subr.bf16.mxu0 0
        %558 = vmatpush1.bf16.xpose.msra.mxu0 0
        %559 = vmatprep.mubr.bf16.mxu0 %v293
        %560 = vmatmul.mubr.bf16.gmra.mrb[0].mxu0 %v292
        %v561 = vpop.f32.mrb[0].mxu0
        %v562 = vadd.f32 %v521, %v561
        %v563 = vpop.f32.mrb[0].mxu0
        %v564 = vpop.f32.mrb[0].mxu0
        %v565 = vadd.f32 %v524, %v564
        %v566 = vpop.f32.mrb[0].mxu0
        %567 = vdwg.mxu0
        %568 = vmatprep.subr.bf16.mxu0 %v295
        %569 = vmatpush1.bf16.xpose.msra.mxu0 %v294
        %570 = vmatprep.subr.bf16.mxu0 0
        %571 = vmatpush1.bf16.xpose.msra.mxu0 0
        %572 = vmatprep.subr.bf16.mxu0 0
        %573 = vmatpush1.bf16.xpose.msra.mxu0 0
        %574 = vmatprep.subr.bf16.mxu0 0
        %575 = vmatpush1.bf16.xpose.msra.mxu0 0
        %576 = vmatprep.subr.bf16.mxu0 0
        %577 = vmatpush1.bf16.xpose.msra.mxu0 0
        %578 = vmatprep.subr.bf16.mxu0 0
        %579 = vmatpush1.bf16.xpose.msra.mxu0 0
        %580 = vmatprep.subr.bf16.mxu0 0
        %581 = vmatpush1.bf16.xpose.msra.mxu0 0
        %582 = vmatprep.subr.bf16.mxu0 0
        %583 = vmatpush1.bf16.xpose.msra.mxu0 0
        %584 = vmatprep.subr.bf16.mxu0 0
        %585 = vmatpush1.bf16.xpose.msra.mxu0 0
        %586 = vmatprep.subr.bf16.mxu0 0
        %587 = vmatpush1.bf16.xpose.msra.mxu0 0
        %588 = vmatprep.subr.bf16.mxu0 0
        %589 = vmatpush1.bf16.xpose.msra.mxu0 0
        %590 = vmatprep.subr.bf16.mxu0 0
        %591 = vmatpush1.bf16.xpose.msra.mxu0 0
        %592 = vmatprep.subr.bf16.mxu0 0
        %593 = vmatpush1.bf16.xpose.msra.mxu0 0
        %594 = vmatprep.subr.bf16.mxu0 0
        %595 = vmatpush1.bf16.xpose.msra.mxu0 0
        %596 = vmatprep.subr.bf16.mxu0 0
        %597 = vmatpush1.bf16.xpose.msra.mxu0 0
        %598 = vmatprep.subr.bf16.mxu0 0
        %599 = vmatpush1.bf16.xpose.msra.mxu0 0
        %600 = vmatprep.mubr.bf16.mxu0 %v295
        %601 = vmatmul.mubr.bf16.gmra.mrb[0].mxu0 %v294
        %v602 = vpop.f32.mrb[0].mxu0
        %v603 = vadd.f32 %v562, %v602
        %v604 = vpop.f32.mrb[0].mxu0
        %v605 = vpop.f32.mrb[0].mxu0
        %v606 = vadd.f32 %v565, %v605
        %v607 = vpop.f32.mrb[0].mxu0
        %608 = vdwg.mxu0
        %609 = vmatprep.subr.bf16.mxu0 %v297
        %610 = vmatpush1.bf16.xpose.msra.mxu0 %v296
        %611 = vmatprep.subr.bf16.mxu0 0
        %612 = vmatpush1.bf16.xpose.msra.mxu0 0
        %613 = vmatprep.subr.bf16.mxu0 0
        %614 = vmatpush1.bf16.xpose.msra.mxu0 0
        %615 = vmatprep.subr.bf16.mxu0 0
        %616 = vmatpush1.bf16.xpose.msra.mxu0 0
        %617 = vmatprep.subr.bf16.mxu0 0
        %618 = vmatpush1.bf16.xpose.msra.mxu0 0
        %619 = vmatprep.subr.bf16.mxu0 0
        %620 = vmatpush1.bf16.xpose.msra.mxu0 0
        %621 = vmatprep.subr.bf16.mxu0 0
        %622 = vmatpush1.bf16.xpose.msra.mxu0 0
        %623 = vmatprep.subr.bf16.mxu0 0
        %624 = vmatpush1.bf16.xpose.msra.mxu0 0
        %625 = vmatprep.subr.bf16.mxu0 0
        %626 = vmatpush1.bf16.xpose.msra.mxu0 0
        %627 = vmatprep.subr.bf16.mxu0 0
        %628 = vmatpush1.bf16.xpose.msra.mxu0 0
        %629 = vmatprep.subr.bf16.mxu0 0
        %630 = vmatpush1.bf16.xpose.msra.mxu0 0
        %631 = vmatprep.subr.bf16.mxu0 0
        %632 = vmatpush1.bf16.xpose.msra.mxu0 0
        %633 = vmatprep.subr.bf16.mxu0 0
        %634 = vmatpush1.bf16.xpose.msra.mxu0 0
        %635 = vmatprep.subr.bf16.mxu0 0
        %636 = vmatpush1.bf16.xpose.msra.mxu0 0
        %637 = vmatprep.subr.bf16.mxu0 0
        %638 = vmatpush1.bf16.xpose.msra.mxu0 0
        %639 = vmatprep.subr.bf16.mxu0 0
        %640 = vmatpush1.bf16.xpose.msra.mxu0 0
        %641 = vmatprep.mubr.bf16.mxu0 %v297
        %642 = vmatmul.mubr.bf16.gmra.mrb[0].mxu0 %v296
        %v643 = vpop.f32.mrb[0].mxu0
        %v644 = vadd.f32 %v603, %v643
        %v645 = vpop.f32.mrb[0].mxu0
        %v646 = vpop.f32.mrb[0].mxu0
        %v647 = vadd.f32 %v606, %v646
        %v648 = vpop.f32.mrb[0].mxu0
        %649 = vdwg.mxu0
        %650 = vmatprep.subr.bf16.mxu0 %v299
        %651 = vmatpush1.bf16.xpose.msra.mxu0 %v298
        %652 = vmatprep.subr.bf16.mxu0 0
        %653 = vmatpush1.bf16.xpose.msra.mxu0 0
        %654 = vmatprep.subr.bf16.mxu0 0
        %655 = vmatpush1.bf16.xpose.msra.mxu0 0
        %656 = vmatprep.subr.bf16.mxu0 0
        %657 = vmatpush1.bf16.xpose.msra.mxu0 0
        %658 = vmatprep.subr.bf16.mxu0 0
        %659 = vmatpush1.bf16.xpose.msra.mxu0 0
        %660 = vmatprep.subr.bf16.mxu0 0
        %661 = vmatpush1.bf16.xpose.msra.mxu0 0
        %662 = vmatprep.subr.bf16.mxu0 0
        %663 = vmatpush1.bf16.xpose.msra.mxu0 0
        %664 = vmatprep.subr.bf16.mxu0 0
        %665 = vmatpush1.bf16.xpose.msra.mxu0 0
        %666 = vmatprep.subr.bf16.mxu0 0
        %667 = vmatpush1.bf16.xpose.msra.mxu0 0
        %668 = vmatprep.subr.bf16.mxu0 0
        %669 = vmatpush1.bf16.xpose.msra.mxu0 0
        %670 = vmatprep.subr.bf16.mxu0 0
        %671 = vmatpush1.bf16.xpose.msra.mxu0 0
        %672 = vmatprep.subr.bf16.mxu0 0
        %673 = vmatpush1.bf16.xpose.msra.mxu0 0
        %674 = vmatprep.subr.bf16.mxu0 0
        %675 = vmatpush1.bf16.xpose.msra.mxu0 0
        %676 = vmatprep.subr.bf16.mxu0 0
        %677 = vmatpush1.bf16.xpose.msra.mxu0 0
        %678 = vmatprep.subr.bf16.mxu0 0
        %679 = vmatpush1.bf16.xpose.msra.mxu0 0
        %680 = vmatprep.subr.bf16.mxu0 0
        %681 = vmatpush1.bf16.xpose.msra.mxu0 0
        %682 = vmatprep.mubr.bf16.mxu0 %v299
        %683 = vmatmul.mubr.bf16.gmra.mrb[0].mxu0 %v298
        %v684 = vpop.f32.mrb[0].mxu0
        %v685 = vadd.f32 %v644, %v684
        %v686 = vpop.f32.mrb[0].mxu0
        %v687 = vpop.f32.mrb[0].mxu0
        %v688 = vadd.f32 %v647, %v687
        %v689 = vpop.f32.mrb[0].mxu0
        %690 = vdwg.mxu0
        %691 = vmatprep.subr.bf16.mxu0 %v301
        %692 = vmatpush1.bf16.xpose.msra.mxu0 %v300
        %693 = vmatprep.subr.bf16.mxu0 0
        %694 = vmatpush1.bf16.xpose.msra.mxu0 0
        %695 = vmatprep.subr.bf16.mxu0 0
        %696 = vmatpush1.bf16.xpose.msra.mxu0 0
        %697 = vmatprep.subr.bf16.mxu0 0
        %698 = vmatpush1.bf16.xpose.msra.mxu0 0
        %699 = vmatprep.subr.bf16.mxu0 0
        %700 = vmatpush1.bf16.xpose.msra.mxu0 0
        %701 = vmatprep.subr.bf16.mxu0 0
        %702 = vmatpush1.bf16.xpose.msra.mxu0 0
        %703 = vmatprep.subr.bf16.mxu0 0
        %704 = vmatpush1.bf16.xpose.msra.mxu0 0
        %705 = vmatprep.subr.bf16.mxu0 0
        %706 = vmatpush1.bf16.xpose.msra.mxu0 0
        %707 = vmatprep.subr.bf16.mxu0 0
        %708 = vmatpush1.bf16.xpose.msra.mxu0 0
        %709 = vmatprep.subr.bf16.mxu0 0
        %710 = vmatpush1.bf16.xpose.msra.mxu0 0
        %711 = vmatprep.subr.bf16.mxu0 0
        %712 = vmatpush1.bf16.xpose.msra.mxu0 0
        %713 = vmatprep.subr.bf16.mxu0 0
        %714 = vmatpush1.bf16.xpose.msra.mxu0 0
        %715 = vmatprep.subr.bf16.mxu0 0
        %716 = vmatpush1.bf16.xpose.msra.mxu0 0
        %717 = vmatprep.subr.bf16.mxu0 0
        %718 = vmatpush1.bf16.xpose.msra.mxu0 0
        %719 = vmatprep.subr.bf16.mxu0 0
        %720 = vmatpush1.bf16.xpose.msra.mxu0 0
        %721 = vmatprep.subr.bf16.mxu0 0
        %722 = vmatpush1.bf16.xpose.msra.mxu0 0
        %723 = vmatprep.mubr.bf16.mxu0 %v301
        %724 = vmatmul.mubr.bf16.gmra.mrb[0].mxu0 %v300
        %v725 = vpop.f32.mrb[0].mxu0
        %v726 = vadd.f32 %v685, %v725
        %v727 = vpop.f32.mrb[0].mxu0
        %v728 = vpop.f32.mrb[0].mxu0
        %v729 = vadd.f32 %v688, %v728
        %v730 = vpop.f32.mrb[0].mxu0
        %731 = vdwg.mxu0
        %v732 = vadd.f32 %v220, %v726
        %v733 = vadd.f32 %v221, %v729
        %vm734 = vcmask 130048
        %735 = vst.msk [vmem:[%s191] sm:$0xff] %vm734, %v732
        %736 = vst.msk [vmem:[%s191 + $0x8] sm:$0xff] %vm734, %v733
        %p737 = scmp.lt.s32.totalorder %s16, 1
        %s738 = scalar_select %p737, %s16, 1
        %s739 = smul.addr %s738, 2
        %s740 = smul.addr %s739, 8
        %s741 = scalar_lea.vmem %s1, %s740
        // Predicated region
        $region52: #{ssi_forward.16} parent=42 // pred_check
          %p742 = pneg %p70
        $region53: #{ssi_forward.16} parent=42 // pred_check_branch
          %744 = sbr.rel (%p742) target = $region55
        $region54: #{ssi_forward.16} parent=42 // pred_region
          _
        $region55: #{ssi_forward.16} parent=42 // pred_fallthru
          _
      $region43: #{ssi_forward.16} parent=5 // pred_fallthru
        _
      %p745 = scmp.le.s32.totalorder 2, %s7
      // Predicated region
      $region56: #{ssi_forward.16} parent=5 // pred_check
        %p746 = pneg %p745
      $region57: #{ssi_forward.16} parent=5 // pred_check_branch
        %748 = sbr.rel (%p746) target = $region59
      $region58: #{ssi_forward.16} parent=5 // pred_region
        %s749 = ssub.s32 %s7, 2
        // Predicated region
        $region60: #{ssi_forward.16} parent=58 // pred_check
          %p750 = pneg %p76
        $region61: #{ssi_forward.16} parent=58 // pred_check_branch
          %752 = sbr.rel (%p750) target = $region63
        $region62: #{ssi_forward.16} parent=58 // pred_region
          %p753 = scmp.lt.s32.totalorder %s18, 1
          %s754 = scalar_select %p753, %s18, 1
          %s755 = smul.addr %s754, 2
          %s756 = smul.addr %s755, 8
          %s757 = scalar_lea.vmem %s1, %s756
        $region63: #{ssi_forward.16} parent=58 // pred_fallthru
          _
      $region59: #{ssi_forward.16} parent=5 // pred_fallthru
        _
    $region6: #{ssi_forward.16} parent=1 // loop_footer
      %s11 = sadd.s32 1, %s7
    $region7: #{ssi_forward.16} parent=1 // loop_footer_branch
      %6 = sbr.rel target = $region3
    $region8: #{ssi_forward.16} parent=1 // loop_exit
      _

// kernel: ssi_forward.23
$region0: #{ssi_forward.23}
  #allocation0 [shape = 'u32[]', space=smem, size = 0x4, offset = 0x4, fixed_abs, tag = 'smem constant byte address 0x4 - core index']
  #allocation1 [shape = 'u32[144,128]{1,0:T(1,128)}', space=vmem, size = 0x12000, scoped, tag = 'internal scratch']
  %s0 = inlined_call_operand.vmem [shape: bf16[2,8,640], index: 0, kind: input, shape index: {}]
  %s1 = inlined_call_operand.vmem [shape: bf16[8,8], index: 1, kind: input, shape index: {}]
  %s2 = inlined_call_operand.vmem [shape: f32[8,1], index: 2, kind: input, shape index: {}]
  %s3 = inlined_call_operand.vmem [shape: f32[8,1], index: 3, kind: input, shape index: {}]
  %s4 = inlined_call_operand.vmem [shape: f32[2,8,640], index: 4, kind: output, shape index: {}]
  %s5 = sld [smem:[#allocation0]]
  $region49: #{ssi_forward.23} parent=0
    _
  %s7 = ssub.s32 1, %s5
  %s8 = scalar_select 0, %s7, %s5
  loop: start=0, step=1, limit=4
  $region2: #{ssi_forward.23} parent=0 // loop_pre_header
    _
  $region3: #{ssi_forward.23} parent=0 // loop_header
    %s10 = sphi 0, %s14
    %p11 = scmp.ge.s32.totalorder %s10, 4
    %s17 = sphi 0, %s29
    %s18 = sphi 0, %s25
    %s19 = sphi 0, %s17
    %s20 = sphi 0, %s18
    %s21 = sphi 0, %s19
    %s22 = sphi 0, %s20
    %s34 = sphi 0, %s36
    %s37 = sphi 0, %s34
    %s38 = sphi 0, %s37
    %s54 = sphi 0, %s38
    %s58 = sphi 0, %s58
    %s60 = sphi 0, %s58
    %s61 = sphi 0, %s60
    %s75 = sphi 0, %s61
    %s79 = sphi 0, %s79
    %s81 = sphi 0, %s79
    %s82 = sphi 0, %s81
    %s96 = sphi 0, %s82
    %s100 = sphi 0, %s100
    %s102 = sphi 0, %s100
    %s103 = sphi 0, %s102
    %s117 = sphi 0, %s103
    %s125 = sphi 0, %s127
    %s128 = sphi 0, %s125
    %s129 = sphi 0, %s128
    %s145 = sphi 0, %s129
  $region4: #{ssi_forward.23} parent=0 // loop_header_branch
    %13 = sbr.rel (%p11) target = $region8
  $region5: #{ssi_forward.23} parent=0 // loop_body
    %s15 = ssub.s32 %s10, 1
    %s16 = ssub.s32 %s10, 2
    %s23 = sadd.s32 1, %s18
    %p24 = scmp.ge.s32.totalorder %s23, 1
    %s25 = scalar_select %p24, 0, %s23
    %s26 = sadd.s32 1, %s17
    %s27 = scalar_select %p24, %s26, %s17
    %p28 = scmp.ge.s32.totalorder %s27, 2
    %s29 = scalar_select %p28, 0, %s27
    %s30 = ssub.s32 %s17, %s29
    %s31 = ssub.s32 %s18, %s25
    %s32 = sor.u32 %s30, %s31
    %p33 = scmp.eq.s32.totalorder %s32, 0
    %s35 = sadd.s32 %s34, 1
    %s36 = scalar_select %p33, %s34, %s35
    %p39 = pneg %p33
    %p40 = scmp.eq.s32.totalorder %s10, 1
    %p41 = por %p39, %p40
    %p42 = scmp.ne.s32.totalorder %s34, %s37
    %p43 = scmp.eq.s32.totalorder %s10, 0
    %p44 = por %p42, %p43
    %p45 = scmp.ne.s32.totalorder %s34, %s37
    %p46 = scmp.eq.s32.totalorder %s15, 1
    %p47 = por %p45, %p46
    %p48 = scmp.ne.s32.totalorder %s37, %s38
    %p49 = scmp.eq.s32.totalorder %s15, 0
    %p50 = por %p48, %p49
    %p51 = scmp.ne.s32.totalorder %s37, %s38
    %p52 = scmp.eq.s32.totalorder %s16, 1
    %p53 = por %p51, %p52
    %p55 = scmp.ne.s32.totalorder %s38, %s54
    %p56 = scmp.eq.s32.totalorder %s16, 0
    %p57 = por %p55, %p56
    %s59 = sadd.s32 %s58, 1
    %p62 = scmp.eq.s32.totalorder %s10, 1
    %p63 = scmp.ne.s32.totalorder %s58, %s60
    %p64 = scmp.eq.s32.totalorder %s10, 0
    %p65 = por %p63, %p64
    %p66 = scmp.ne.s32.totalorder %s58, %s60
    %p67 = scmp.eq.s32.totalorder %s15, 1
    %p68 = por %p66, %p67
    %p69 = scmp.ne.s32.totalorder %s60, %s61
    %p70 = scmp.eq.s32.totalorder %s15, 0
    %p71 = por %p69, %p70
    %p72 = scmp.ne.s32.totalorder %s60, %s61
    %p73 = scmp.eq.s32.totalorder %s16, 1
    %p74 = por %p72, %p73
    %p76 = scmp.ne.s32.totalorder %s61, %s75
    %p77 = scmp.eq.s32.totalorder %s16, 0
    %p78 = por %p76, %p77
    %s80 = sadd.s32 %s79, 1
    %p83 = scmp.eq.s32.totalorder %s10, 1
    %p84 = scmp.ne.s32.totalorder %s79, %s81
    %p85 = scmp.eq.s32.totalorder %s10, 0
    %p86 = por %p84, %p85
    %p87 = scmp.ne.s32.totalorder %s79, %s81
    %p88 = scmp.eq.s32.totalorder %s15, 1
    %p89 = por %p87, %p88
    %p90 = scmp.ne.s32.totalorder %s81, %s82
    %p91 = scmp.eq.s32.totalorder %s15, 0
    %p92 = por %p90, %p91
    %p93 = scmp.ne.s32.totalorder %s81, %s82
    %p94 = scmp.eq.s32.totalorder %s16, 1
    %p95 = por %p93, %p94
    %p97 = scmp.ne.s32.totalorder %s82, %s96
    %p98 = scmp.eq.s32.totalorder %s16, 0
    %p99 = por %p97, %p98
    %s101 = sadd.s32 %s100, 1
    %p104 = scmp.eq.s32.totalorder %s10, 1
    %p105 = scmp.ne.s32.totalorder %s100, %s102
    %p106 = scmp.eq.s32.totalorder %s10, 0
    %p107 = por %p105, %p106
    %p108 = scmp.ne.s32.totalorder %s100, %s102
    %p109 = scmp.eq.s32.totalorder %s15, 1
    %p110 = por %p108, %p109
    %p111 = scmp.ne.s32.totalorder %s102, %s103
    %p112 = scmp.eq.s32.totalorder %s15, 0
    %p113 = por %p111, %p112
    %p114 = scmp.ne.s32.totalorder %s102, %s103
    %p115 = scmp.eq.s32.totalorder %s16, 1
    %p116 = por %p114, %p115
    %p118 = scmp.ne.s32.totalorder %s103, %s117
    %p119 = scmp.eq.s32.totalorder %s16, 0
    %p120 = por %p118, %p119
    %s121 = ssub.s32 %s17, %s29
    %s122 = ssub.s32 %s18, %s25
    %s123 = sor.u32 %s121, %s122
    %p124 = scmp.eq.s32.totalorder %s123, 0
    %s126 = sadd.s32 %s125, 1
    %s127 = scalar_select %p124, %s125, %s126
    %p130 = pneg %p124
    %p131 = scmp.eq.s32.totalorder %s10, 1
    %p132 = por %p130, %p131
    %p133 = scmp.ne.s32.totalorder %s125, %s128
    %p134 = scmp.eq.s32.totalorder %s10, 0
    %p135 = por %p133, %p134
    %p136 = scmp.ne.s32.totalorder %s125, %s128
    %p137 = scmp.eq.s32.totalorder %s15, 1
    %p138 = por %p136, %p137
    %p139 = scmp.ne.s32.totalorder %s128, %s129
    %p140 = scmp.eq.s32.totalorder %s15, 0
    %p141 = por %p139, %p140
    %p142 = scmp.ne.s32.totalorder %s128, %s129
    %p143 = scmp.eq.s32.totalorder %s16, 1
    %p144 = por %p142, %p143
    %p146 = scmp.ne.s32.totalorder %s129, %s145
    %p147 = scmp.eq.s32.totalorder %s16, 0
    %p148 = por %p146, %p147
    %p149 = scmp.le.s32.totalorder 1, %s10
    %p150 = scmp.lt.s32.totalorder %s10, 3
    %p151 = pnand %p149, %p150
    %p152 = pneg %p151
    // Predicated region
    $region9: #{ssi_forward.23} parent=5 // pred_check
      _
    $region10: #{ssi_forward.23} parent=5 // pred_check_branch
      %154 = sbr.rel (%p151) target = $region12
    $region11: #{ssi_forward.23} parent=5 // pred_region
      %s155 = ssub.s32 %s10, 1
      // Predicated region
      $region13: #{ssi_forward.23} parent=11 // pred_check
        %p156 = pneg %p71
      $region14: #{ssi_forward.23} parent=11 // pred_check_branch
        %158 = sbr.rel (%p156) target = $region16
      $region15: #{ssi_forward.23} parent=11 // pred_region
        _
      $region16: #{ssi_forward.23} parent=11 // pred_fallthru
        _
      // Predicated region
      $region17: #{ssi_forward.23} parent=11 // pred_check
        %p159 = pneg %p92
      $region18: #{ssi_forward.23} parent=11 // pred_check_branch
        %161 = sbr.rel (%p159) target = $region20
      $region19: #{ssi_forward.23} parent=11 // pred_region
        _
      $region20: #{ssi_forward.23} parent=11 // pred_fallthru
        _
      // Predicated region
      $region21: #{ssi_forward.23} parent=11 // pred_check
        %p162 = pneg %p113
      $region22: #{ssi_forward.23} parent=11 // pred_check_branch
        %164 = sbr.rel (%p162) target = $region24
      $region23: #{ssi_forward.23} parent=11 // pred_region
        _
      $region24: #{ssi_forward.23} parent=11 // pred_fallthru
        _
    $region12: #{ssi_forward.23} parent=5 // pred_fallthru
      _
    %p165 = scmp.lt.s32.totalorder %s10, 2
    // Predicated region
    $region25: #{ssi_forward.23} parent=5 // pred_check
      %p166 = pneg %p165
    $region26: #{ssi_forward.23} parent=5 // pred_check_branch
      %168 = sbr.rel (%p166) target = $region28
    $region27: #{ssi_forward.23} parent=5 // pred_region
      // Predicated region
      $region29: #{ssi_forward.23} parent=27 // pred_check
        %p169 = pneg %p44
      $region30: #{ssi_forward.23} parent=27 // pred_check_branch
        %171 = sbr.rel (%p169) target = $region32
      $region31: #{ssi_forward.23} parent=27 // pred_region
        %s172 = smul.u32 5, %s18
        %p173 = scmp.lt.s32.totalorder %s17, 1
        %s174 = scalar_select %p173, %s17, 1
        %p175 = scmp.lt.s32.totalorder %s172, 4
        %s176 = scalar_select %p175, %s172, 4
        %s177 = smul.addr %s174, 5
        %s178 = sadd.s32 %s176, %s177
        %s179 = smul.addr %s178, 4
        %s180 = scalar_lea.vmem %s0, %s179
        %s181 = smul.u32 5, %s18
      $region32: #{ssi_forward.23} parent=27 // pred_fallthru
        _
    $region28: #{ssi_forward.23} parent=5 // pred_fallthru
      _
    %p182 = scmp.le.s32.totalorder 1, %s10
    %p183 = scmp.lt.s32.totalorder %s10, 3
    %p184 = pnand %p182, %p183
    %p185 = pneg %p184
    // Predicated region
    $region33: #{ssi_forward.23} parent=5 // pred_check
      _
    $region34: #{ssi_forward.23} parent=5 // pred_check_branch
      %187 = sbr.rel (%p184) target = $region36
    $region35: #{ssi_forward.23} parent=5 // pred_region
      %s188 = ssub.s32 %s10, 1
      %s189 = smul.u32 5, %s20
      %p190 = scmp.lt.s32.totalorder %s19, 1
      %s191 = scalar_select %p190, %s19, 1
      %p192 = scmp.lt.s32.totalorder %s189, 4
      %s193 = scalar_select %p192, %s189, 4
      %s194 = smul.addr %s191, 5
      %s195 = sadd.s32 %s193, %s194
      %s196 = smul.addr %s195, 4
      %s197 = scalar_lea.vmem %s0, %s196
      %p198 = pneg %p50
      %p199 = pneg %p47
      %p200 = pneg %p71
      %p201 = pneg %p68
      %p202 = pneg %p92
      %p203 = pneg %p89
      %p204 = pneg %p113
      %p205 = pneg %p110
      %p206 = pneg %p141
      %p207 = pneg %p138
      %s208 = smul.u32 5, %s20
      %p209 = scmp.lt.s32.totalorder %s19, 1
      %s210 = scalar_select %p209, %s19, 1
      %p211 = scmp.lt.s32.totalorder %s208, 4
      %s212 = scalar_select %p211, %s208, 4
      %s213 = smul.addr %s210, 5
      %s214 = sadd.s32 %s212, %s213
      %s215 = smul.addr %s214, 8
      %s216 = scalar_lea.vmem %s4, %s215
      %s217 = smul.u32 5, %s20
      %p218 = scmp.lt.s32.totalorder %s19, 1
      %s219 = scalar_select %p218, %s19, 1
      %p220 = scmp.lt.s32.totalorder %s217, 4
      %s221 = scalar_select %p220, %s217, 4
      %s222 = smul.addr %s219, 5
      %s223 = sadd.s32 %s221, %s222
      %s224 = smul.addr %s223, 4
      %s225 = scalar_lea.vmem %s0, %s224
      %s226 = smul.u32 5, %s20
      %s227 = smul.u32 5, %s20
      %p228 = scmp.lt.s32.totalorder %s19, 1
      %s229 = scalar_select %p228, %s19, 1
      %p230 = scmp.lt.s32.totalorder %s227, 4
      %s231 = scalar_select %p230, %s227, 4
      %s232 = smul.addr %s229, 5
      %s233 = sadd.s32 %s231, %s232
      %s234 = smul.addr %s233, 8
      %s235 = scalar_lea.vmem %s4, %s234
      %s236 = smul.u32 5, %s20
      %v238 = vld [vmem:[%s1] sm:$0xf]
      %v239 = vld [vmem:[%s225] sm:$0xff]
      %v240 = vld [vmem:[%s225 + $0x8] sm:$0xff]
      %v241 = vld [vmem:[%s225 + $0x10] sm:$0xf]
      %v245 = vunpack.c.l.b16 %v239
      %v246 = vunpack.c.h.b16 %v239
      %v247 = vunpack.c.l.b16 %v240
      %v248 = vunpack.c.h.b16 %v240
      %v249 = vunpack.c.l.b16 %v241
      %v250 = vpack.c.b16 %v245, %v245
      %v251 = vpack.c.b16 %v246, %v246
      %v252 = vpack.c.b16 %v247, %v247
      %v253 = vpack.c.b16 %v248, %v248
      %v254 = vpack.c.b16 %v249, %v249
      %vm255 = vcmask 64512
      %v257 = vsel %vm255, %v238, 0
      %vm259 = vcmask 1043456
      %v261 = vsel %vm259, %v250, 0
      %v264 = vsel %vm259, %v251, 0
      %v267 = vsel %vm259, %v252, 0
      %v270 = vsel %vm259, %v253, 0
      %v273 = vsel %vm259, %v254, 0
      %275 = vmatprep.subr.bf16.mxu0 %v264
      %276 = vmatpush1.bf16.msra.mxu0 %v261
      %277 = vmatprep.subr.bf16.mxu0 0
      %278 = vmatpush1.bf16.msra.mxu0 0
      %279 = vmatprep.subr.bf16.mxu0 0
      %280 = vmatpush1.bf16.msra.mxu0 0
      %281 = vmatprep.subr.bf16.mxu0 0
      %282 = vmatpush1.bf16.msra.mxu0 0
      %283 = vmatprep.subr.bf16.mxu0 0
      %284 = vmatpush1.bf16.msra.mxu0 0
      %285 = vmatprep.subr.bf16.mxu0 0
      %286 = vmatpush1.bf16.msra.mxu0 0
      %287 = vmatprep.subr.bf16.mxu0 0
      %288 = vmatpush1.bf16.msra.mxu0 0
      %289 = vmatprep.subr.bf16.mxu0 0
      %290 = vmatpush1.bf16.msra.mxu0 0
      %291 = vmatprep.subr.bf16.mxu0 0
      %292 = vmatpush1.bf16.msra.mxu0 0
      %293 = vmatprep.subr.bf16.mxu0 0
      %294 = vmatpush1.bf16.msra.mxu0 0
      %295 = vmatprep.subr.bf16.mxu0 0
      %296 = vmatpush1.bf16.msra.mxu0 0
      %297 = vmatprep.subr.bf16.mxu0 0
      %298 = vmatpush1.bf16.msra.mxu0 0
      %299 = vmatprep.subr.bf16.mxu0 0
      %300 = vmatpush1.bf16.msra.mxu0 0
      %301 = vmatprep.subr.bf16.mxu0 0
      %302 = vmatpush1.bf16.msra.mxu0 0
      %303 = vmatprep.subr.bf16.mxu0 0
      %304 = vmatpush1.bf16.msra.mxu0 0
      %305 = vmatprep.subr.bf16.mxu0 0
      %306 = vmatpush1.bf16.msra.mxu0 0
      %307 = vmatprep.mubr.bf16.mxu0 0
      %308 = vmatmul.mubr.bf16.gmra.mrb[0].mxu0 %v257
      %v309 = vpop.f32.mrb[0].mxu0
      %v310 = vadd.f32 0.0, %v309
      %v311 = vpop.f32.mrb[0].mxu0
      %v312 = vadd.f32 0.0, %v311
      %v313 = vpop.f32.mrb[0].mxu0
      %v314 = vpop.f32.mrb[0].mxu0
      %315 = vdwg.mxu0
      %316 = vmatprep.subr.bf16.mxu0 %v270
      %317 = vmatpush1.bf16.msra.mxu0 %v267
      %318 = vmatprep.subr.bf16.mxu0 0
      %319 = vmatpush1.bf16.msra.mxu0 0
      %320 = vmatprep.subr.bf16.mxu0 0
      %321 = vmatpush1.bf16.msra.mxu0 0
      %322 = vmatprep.subr.bf16.mxu0 0
      %323 = vmatpush1.bf16.msra.mxu0 0
      %324 = vmatprep.subr.bf16.mxu0 0
      %325 = vmatpush1.bf16.msra.mxu0 0
      %326 = vmatprep.subr.bf16.mxu0 0
      %327 = vmatpush1.bf16.msra.mxu0 0
      %328 = vmatprep.subr.bf16.mxu0 0
      %329 = vmatpush1.bf16.msra.mxu0 0
      %330 = vmatprep.subr.bf16.mxu0 0
      %331 = vmatpush1.bf16.msra.mxu0 0
      %332 = vmatprep.subr.bf16.mxu0 0
      %333 = vmatpush1.bf16.msra.mxu0 0
      %334 = vmatprep.subr.bf16.mxu0 0
      %335 = vmatpush1.bf16.msra.mxu0 0
      %336 = vmatprep.subr.bf16.mxu0 0
      %337 = vmatpush1.bf16.msra.mxu0 0
      %338 = vmatprep.subr.bf16.mxu0 0
      %339 = vmatpush1.bf16.msra.mxu0 0
      %340 = vmatprep.subr.bf16.mxu0 0
      %341 = vmatpush1.bf16.msra.mxu0 0
      %342 = vmatprep.subr.bf16.mxu0 0
      %343 = vmatpush1.bf16.msra.mxu0 0
      %344 = vmatprep.subr.bf16.mxu0 0
      %345 = vmatpush1.bf16.msra.mxu0 0
      %346 = vmatprep.subr.bf16.mxu0 0
      %347 = vmatpush1.bf16.msra.mxu0 0
      %348 = vmatprep.mubr.bf16.mxu0 0
      %349 = vmatmul.mubr.bf16.gmra.mrb[0].mxu0 %v257
      %v350 = vpop.f32.mrb[0].mxu0
      %v351 = vadd.f32 0.0, %v350
      %v352 = vpop.f32.mrb[0].mxu0
      %v353 = vadd.f32 0.0, %v352
      %v354 = vpop.f32.mrb[0].mxu0
      %v355 = vpop.f32.mrb[0].mxu0
      %356 = vdwg.mxu0
      %357 = vmatprep.subr.bf16.mxu0 0
      %358 = vmatpush1.bf16.msra.mxu0 %v273
      %359 = vmatprep.subr.bf16.mxu0 0
      %360 = vmatpush1.bf16.msra.mxu0 0
      %361 = vmatprep.subr.bf16.mxu0 0
      %362 = vmatpush1.bf16.msra.mxu0 0
      %363 = vmatprep.subr.bf16.mxu0 0
      %364 = vmatpush1.bf16.msra.mxu0 0
      %365 = vmatprep.subr.bf16.mxu0 0
      %366 = vmatpush1.bf16.msra.mxu0 0
      %367 = vmatprep.subr.bf16.mxu0 0
      %368 = vmatpush1.bf16.msra.mxu0 0
      %369 = vmatprep.subr.bf16.mxu0 0
      %370 = vmatpush1.bf16.msra.mxu0 0
      %371 = vmatprep.subr.bf16.mxu0 0
      %372 = vmatpush1.bf16.msra.mxu0 0
      %373 = vmatprep.subr.bf16.mxu0 0
      %374 = vmatpush1.bf16.msra.mxu0 0
      %375 = vmatprep.subr.bf16.mxu0 0
      %376 = vmatpush1.bf16.msra.mxu0 0
      %377 = vmatprep.subr.bf16.mxu0 0
      %378 = vmatpush1.bf16.msra.mxu0 0
      %379 = vmatprep.subr.bf16.mxu0 0
      %380 = vmatpush1.bf16.msra.mxu0 0
      %381 = vmatprep.subr.bf16.mxu0 0
      %382 = vmatpush1.bf16.msra.mxu0 0
      %383 = vmatprep.subr.bf16.mxu0 0
      %384 = vmatpush1.bf16.msra.mxu0 0
      %385 = vmatprep.subr.bf16.mxu0 0
      %386 = vmatpush1.bf16.msra.mxu0 0
      %387 = vmatprep.subr.bf16.mxu0 0
      %388 = vmatpush1.bf16.msra.mxu0 0
      %389 = vmatprep.mubr.bf16.mxu0 0
      %390 = vmatmul.mubr.bf16.gmra.mrb[0].mxu0 %v257
      %v391 = vpop.f32.mrb[0].mxu0
      %v392 = vadd.f32 0.0, %v391
      %v393 = vpop.f32.mrb[0].mxu0
      %v394 = vpop.f32.mrb[0].mxu0
      %v395 = vpop.f32.mrb[0].mxu0
      %396 = vdwg.mxu0
      %v397 = vld [vmem:[%s2] sm:$0xff]
      %399 = vset.pattern.permute.xlu0 0
      %400 = vperm.xlu0 %399, %v397
      %v401 = vpop.permute.xlu0 %400
      %v403 = vmul.f32 %v310, %v401
      %v404 = vmul.f32 %v312, %v401
      %v405 = vmul.f32 %v351, %v401
      %v406 = vmul.f32 %v353, %v401
      %v407 = vmul.f32 %v392, %v401
      %v408 = vld [vmem:[%s3] sm:$0xff]
      %410 = vset.pattern.permute.xlu0 0
      %411 = vperm.xlu0 %410, %v408
      %v412 = vpop.permute.xlu0 %411
      %v414 = vadd.f32 %v403, %v412
      %v415 = vadd.f32 %v404, %v412
      %v416 = vadd.f32 %v405, %v412
      %v417 = vadd.f32 %v406, %v412
      %v418 = vadd.f32 %v407, %v412
      %s419 = smul.u32 %s20, 640
      %v420 = vlaneseq
      %v421 = vand.u32 %v420, 127
      %v422 = vadd.s32 %v421, 128
      %v423 = vadd.s32 %v421, 256
      %v424 = vadd.s32 %v421, 384
      %v425 = vadd.s32 %v421, 512
      %v426 = vstv %s419
      %v427 = vadd.s32 %v426, %v421
      %v428 = vadd.s32 %v426, %v422
      %v429 = vadd.s32 %v426, %v423
      %v430 = vadd.s32 %v426, %v424
      %v431 = vadd.s32 %v426, %v425
      %vm432 = vcmp.lt.s32.totalorder %v427, 576
      %vm433 = vcmp.lt.s32.totalorder %v428, 576
      %vm434 = vcmp.lt.s32.totalorder %v429, 576
      %vm435 = vcmp.lt.s32.totalorder %v430, 576
      %vm436 = vcmp.lt.s32.totalorder %v431, 576
      %v437 = vsel %vm432, %v414, 0.0
      %v438 = vsel %vm433, %v415, 0.0
      %v439 = vsel %vm434, %v416, 0.0
      %v440 = vsel %vm435, %v417, 0.0
      %v441 = vsel %vm436, %v418, 0.0
      %442 = vst [vmem:[%s235] sm:$0xff] %v437
      %443 = vst [vmem:[%s235 + $0x8] sm:$0xff] %v438
      %444 = vst [vmem:[%s235 + $0x10] sm:$0xff] %v439
      %445 = vst [vmem:[%s235 + $0x18] sm:$0xff] %v440
      %446 = vst [vmem:[%s235 + $0x20] sm:$0xff] %v441
      %s447 = smul.u32 5, %s20
      %p448 = scmp.lt.s32.totalorder %s19, 1
      %s449 = scalar_select %p448, %s19, 1
      %p450 = scmp.lt.s32.totalorder %s447, 4
      %s451 = scalar_select %p450, %s447, 4
      %s452 = smul.addr %s449, 5
      %s453 = sadd.s32 %s451, %s452
      %s454 = smul.addr %s453, 8
      %s455 = scalar_lea.vmem %s4, %s454
      // Predicated region
      $region37: #{ssi_forward.23} parent=35 // pred_check
        %p456 = pneg %p138
      $region38: #{ssi_forward.23} parent=35 // pred_check_branch
        %458 = sbr.rel (%p456) target = $region40
      $region39: #{ssi_forward.23} parent=35 // pred_region
        %s459 = smul.u32 5, %s20
      $region40: #{ssi_forward.23} parent=35 // pred_fallthru
        _
    $region36: #{ssi_forward.23} parent=5 // pred_fallthru
      _
    %p460 = scmp.le.s32.totalorder 2, %s10
    // Predicated region
    $region41: #{ssi_forward.23} parent=5 // pred_check
      %p461 = pneg %p460
    $region42: #{ssi_forward.23} parent=5 // pred_check_branch
      %463 = sbr.rel (%p461) target = $region44
    $region43: #{ssi_forward.23} parent=5 // pred_region
      %s464 = ssub.s32 %s10, 2
      // Predicated region
      $region45: #{ssi_forward.23} parent=43 // pred_check
        %p465 = pneg %p144
      $region46: #{ssi_forward.23} parent=43 // pred_check_branch
        %467 = sbr.rel (%p465) target = $region48
      $region47: #{ssi_forward.23} parent=43 // pred_region
        %s468 = smul.u32 5, %s22
        %p469 = scmp.lt.s32.totalorder %s21, 1
        %s470 = scalar_select %p469, %s21, 1
        %p471 = scmp.lt.s32.totalorder %s468, 4
        %s472 = scalar_select %p471, %s468, 4
        %s473 = smul.addr %s470, 5
        %s474 = sadd.s32 %s472, %s473
        %s475 = smul.addr %s474, 8
        %s476 = scalar_lea.vmem %s4, %s475
      $region48: #{ssi_forward.23} parent=43 // pred_fallthru
        _
    $region44: #{ssi_forward.23} parent=5 // pred_fallthru
      _
  $region6: #{ssi_forward.23} parent=0 // loop_footer
    %s14 = sadd.s32 1, %s10
  $region7: #{ssi_forward.23} parent=0 // loop_footer_branch
    %9 = sbr.rel target = $region3
  $region8: #{ssi_forward.23} parent=0 // loop_exit
    _

// kernel: ssi_forward.19
$region0: #{ssi_forward.19}
  #allocation0 [shape = 'u32[]', space=smem, size = 0x4, offset = 0x4, fixed_abs, tag = 'smem constant byte address 0x4 - core index']
  #allocation1 [shape = 'u32[144,128]{1,0:T(1,128)}', space=vmem, size = 0x12000, scoped, tag = 'internal scratch']
  %s0 = inlined_call_operand.vmem [shape: bf16[16,16], index: 0, kind: input, shape index: {}]
  %s1 = inlined_call_operand.vmem [shape: bf16[16,5120], index: 1, kind: input, shape index: {}]
  %s2 = inlined_call_operand.vmem [shape: bf16[16,5120], index: 2, kind: output, shape index: {}]
  %s3 = sld [smem:[#allocation0]]
  $region83: #{ssi_forward.19} parent=0
    _
  %s5 = ssub.s32 1, %s3
  %s6 = scalar_select 0, %s5, %s3
  $region1: #{ssi_forward.19} parent=0
    #allocation2 [shape = 'u8[163840]{0}', space=vmem, size = 0x28000, scoped, tag = 'input window, operand 1']
    #allocation3 [shape = 'u8[163840]{0}', space=vmem, size = 0x28000, scoped, tag = 'output window, operand 0']
    loop: start=0, step=1, limit=4
    $region2: #{ssi_forward.19} parent=1 // loop_pre_header
      _
    $region3: #{ssi_forward.19} parent=1 // loop_header
      %s8 = sphi 0, %s12
      %p9 = scmp.ge.s32.totalorder %s8, 4
      %s16 = sphi 0, %s16
      %s18 = sphi 0, %s16
      %s19 = sphi 0, %s18
      %s33 = sphi 0, %s19
      %s39 = sphi 0, %s41
      %s42 = sphi 0, %s39
      %s43 = sphi 0, %s42
      %s59 = sphi 0, %s43
      %s65 = sphi 0, %s67
      %s68 = sphi 0, %s65
      %s69 = sphi 0, %s68
      %s85 = sphi 0, %s69
    $region4: #{ssi_forward.19} parent=1 // loop_header_branch
      %11 = sbr.rel (%p9) target = $region8
    $region5: #{ssi_forward.19} parent=1 // loop_body
      %s13 = ssub.s32 %s8, 1
      %s14 = ssub.s32 %s8, 2
      %s15 = sadd.s32 %s8, 1
      %s17 = sadd.s32 %s16, 1
      %p20 = scmp.eq.s32.totalorder %s8, 1
      %p21 = scmp.ne.s32.totalorder %s16, %s18
      %p22 = scmp.eq.s32.totalorder %s8, 0
      %p23 = por %p21, %p22
      %p24 = scmp.ne.s32.totalorder %s16, %s18
      %p25 = scmp.eq.s32.totalorder %s13, 1
      %p26 = por %p24, %p25
      %p27 = scmp.ne.s32.totalorder %s18, %s19
      %p28 = scmp.eq.s32.totalorder %s13, 0
      %p29 = por %p27, %p28
      %p30 = scmp.ne.s32.totalorder %s18, %s19
      %p31 = scmp.eq.s32.totalorder %s14, 1
      %p32 = por %p30, %p31
      %p34 = scmp.ne.s32.totalorder %s19, %s33
      %p35 = scmp.eq.s32.totalorder %s14, 0
      %p36 = por %p34, %p35
      %s37 = ssub.s32 %s8, %s15
      %p38 = scmp.eq.s32.totalorder %s37, 0
      %s40 = sadd.s32 %s39, 1
      %s41 = scalar_select %p38, %s39, %s40
      %p44 = pneg %p38
      %p45 = scmp.eq.s32.totalorder %s8, 1
      %p46 = por %p44, %p45
      %p47 = scmp.ne.s32.totalorder %s39, %s42
      %p48 = scmp.eq.s32.totalorder %s8, 0
      %p49 = por %p47, %p48
      %p50 = scmp.ne.s32.totalorder %s39, %s42
      %p51 = scmp.eq.s32.totalorder %s13, 1
      %p52 = por %p50, %p51
      %p53 = scmp.ne.s32.totalorder %s42, %s43
      %p54 = scmp.eq.s32.totalorder %s13, 0
      %p55 = por %p53, %p54
      %p56 = scmp.ne.s32.totalorder %s42, %s43
      %p57 = scmp.eq.s32.totalorder %s14, 1
      %p58 = por %p56, %p57
      %p60 = scmp.ne.s32.totalorder %s43, %s59
      %p61 = scmp.eq.s32.totalorder %s14, 0
      %p62 = por %p60, %p61
      %s63 = ssub.s32 %s8, %s15
      %p64 = scmp.eq.s32.totalorder %s63, 0
      %s66 = sadd.s32 %s65, 1
      %s67 = scalar_select %p64, %s65, %s66
      %p70 = pneg %p64
      %p71 = scmp.eq.s32.totalorder %s8, 1
      %p72 = por %p70, %p71
      %p73 = scmp.ne.s32.totalorder %s65, %s68
      %p74 = scmp.eq.s32.totalorder %s8, 0
      %p75 = por %p73, %p74
      %p76 = scmp.ne.s32.totalorder %s65, %s68
      %p77 = scmp.eq.s32.totalorder %s13, 1
      %p78 = por %p76, %p77
      %p79 = scmp.ne.s32.totalorder %s68, %s69
      %p80 = scmp.eq.s32.totalorder %s13, 0
      %p81 = por %p79, %p80
      %p82 = scmp.ne.s32.totalorder %s68, %s69
      %p83 = scmp.eq.s32.totalorder %s14, 1
      %p84 = por %p82, %p83
      %p86 = scmp.ne.s32.totalorder %s69, %s85
      %p87 = scmp.eq.s32.totalorder %s14, 0
      %p88 = por %p86, %p87
      %p89 = scmp.le.s32.totalorder 1, %s8
      %p90 = scmp.lt.s32.totalorder %s8, 3
      %p91 = pnand %p89, %p90
      %p92 = pneg %p91
      // Predicated region
      $region9: #{ssi_forward.19} parent=5 // pred_check
        _
      $region10: #{ssi_forward.19} parent=5 // pred_check_branch
        %94 = sbr.rel (%p91) target = $region12
      $region11: #{ssi_forward.19} parent=5 // pred_region
        %s95 = ssub.s32 %s8, 1
        // Predicated region
        $region13: #{ssi_forward.19} parent=11 // pred_check
          %p96 = pneg %p29
        $region14: #{ssi_forward.19} parent=11 // pred_check_branch
          %98 = sbr.rel (%p96) target = $region16
        $region15: #{ssi_forward.19} parent=11 // pred_region
          _
        $region16: #{ssi_forward.19} parent=11 // pred_fallthru
          _
      $region12: #{ssi_forward.19} parent=5 // pred_fallthru
        _
      %p99 = scmp.lt.s32.totalorder %s8, 2
      // Predicated region
      $region17: #{ssi_forward.19} parent=5 // pred_check
        %p100 = pneg %p99
      $region18: #{ssi_forward.19} parent=5 // pred_check_branch
        %102 = sbr.rel (%p100) target = $region20
      $region19: #{ssi_forward.19} parent=5 // pred_region
        // Predicated region
        $region21: #{ssi_forward.19} parent=19 // pred_check
          %p103 = pneg %p49
        $region22: #{ssi_forward.19} parent=19 // pred_check_branch
          %105 = sbr.rel (%p103) target = $region24
        $region23: #{ssi_forward.19} parent=19 // pred_region
          %s106 = sand.u32 %s39, 1
          %s107 = sand.u32 %s39, 1
          %s108 = smul.addr %s107, 160
          %s109 = scalar_lea.vmem [#allocation2], %s108
          %s110 = smul.u32 20, %s8
          %s111 = smul.addr %s110, 4
          %s112 = scalar_lea.vmem %s1, %s111
          // Predicated region
          $region25: #{ssi_forward.19} parent=23 // pred_check
            _
          $region26: #{ssi_forward.19} parent=23 // pred_check_branch
            %114 = sbr.rel (0) target = $region28
          $region27: #{ssi_forward.19} parent=23 // pred_region
            // Predicated region
            $region29: #{ssi_forward.19} parent=27 // pred_check
              _
            $region30: #{ssi_forward.19} parent=27 // pred_check_branch
              %116 = sbr.rel (0) target = $region32
            $region31: #{ssi_forward.19} parent=27 // pred_region
              loop: start=0, step=1, limit=1
              $region33: #{ssi_forward.19} parent=31 // loop_pre_header
                _
              $region34: #{ssi_forward.19} parent=31 // loop_header
                %s118 = sphi 0, %s122
                %p119 = scmp.ge.s32.totalorder %s118, 1
                %s123 = sphi %s112, %s112
                %s124 = sphi %s109, %s109
              $region35: #{ssi_forward.19} parent=31 // loop_header_branch
                %121 = sbr.rel (%p119) target = $region39
              $region36: #{ssi_forward.19} parent=31 // loop_body
                %v125 = vld [vmem:[%s123] sm:$0xff]
                %126 = vst [vmem:[%s124] sm:$0xff] %v125
                %v127 = vld [vmem:[%s123 + $0x8] sm:$0xff]
                %128 = vst [vmem:[%s124 + $0x8] sm:$0xff] %v127
                %v129 = vld [vmem:[%s123 + $0x10] sm:$0xff]
                %130 = vst [vmem:[%s124 + $0x10] sm:$0xff] %v129
                %v131 = vld [vmem:[%s123 + $0x18] sm:$0xff]
                %132 = vst [vmem:[%s124 + $0x18] sm:$0xff] %v131
                %v133 = vld [vmem:[%s123 + $0x20] sm:$0xff]
                %134 = vst [vmem:[%s124 + $0x20] sm:$0xff] %v133
                %v135 = vld [vmem:[%s123 + $0x28] sm:$0xff]
                %136 = vst [vmem:[%s124 + $0x28] sm:$0xff] %v135
                %v137 = vld [vmem:[%s123 + $0x30] sm:$0xff]
                %138 = vst [vmem:[%s124 + $0x30] sm:$0xff] %v137
                %v139 = vld [vmem:[%s123 + $0x38] sm:$0xff]
                %140 = vst [vmem:[%s124 + $0x38] sm:$0xff] %v139
                %v141 = vld [vmem:[%s123 + $0x40] sm:$0xff]
                %142 = vst [vmem:[%s124 + $0x40] sm:$0xff] %v141
                %v143 = vld [vmem:[%s123 + $0x48] sm:$0xff]
                %144 = vst [vmem:[%s124 + $0x48] sm:$0xff] %v143
                %v145 = vld [vmem:[%s123 + $0xa0] sm:$0xff]
                %146 = vst [vmem:[%s124 + $0x50] sm:$0xff] %v145
                %v147 = vld [vmem:[%s123 + $0xa8] sm:$0xff]
                %148 = vst [vmem:[%s124 + $0x58] sm:$0xff] %v147
                %v149 = vld [vmem:[%s123 + $0xb0] sm:$0xff]
                %150 = vst [vmem:[%s124 + $0x60] sm:$0xff] %v149
                %v151 = vld [vmem:[%s123 + $0xb8] sm:$0xff]
                %152 = vst [vmem:[%s124 + $0x68] sm:$0xff] %v151
                %v153 = vld [vmem:[%s123 + $0xc0] sm:$0xff]
                %154 = vst [vmem:[%s124 + $0x70] sm:$0xff] %v153
                %v155 = vld [vmem:[%s123 + $0xc8] sm:$0xff]
                %156 = vst [vmem:[%s124 + $0x78] sm:$0xff] %v155
                %v157 = vld [vmem:[%s123 + $0xd0] sm:$0xff]
                %158 = vst [vmem:[%s124 + $0x80] sm:$0xff] %v157
                %v159 = vld [vmem:[%s123 + $0xd8] sm:$0xff]
                %160 = vst [vmem:[%s124 + $0x88] sm:$0xff] %v159
                %v161 = vld [vmem:[%s123 + $0xe0] sm:$0xff]
                %162 = vst [vmem:[%s124 + $0x90] sm:$0xff] %v161
                %v163 = vld [vmem:[%s123 + $0xe8] sm:$0xff]
                %164 = vst [vmem:[%s124 + $0x98] sm:$0xff] %v163
              $region37: #{ssi_forward.19} parent=31 // loop_footer
                %s122 = sadd.s32 1, %s118
              $region38: #{ssi_forward.19} parent=31 // loop_footer_branch
                %117 = sbr.rel target = $region34
              $region39: #{ssi_forward.19} parent=31 // loop_exit
                _
            $region32: #{ssi_forward.19} parent=27 // pred_fallthru
              _
            // Predicated region
            $region40: #{ssi_forward.19} parent=27 // pred_check
              _
            $region41: #{ssi_forward.19} parent=27 // pred_check_branch
              %166 = sbr.rel target = $region43
            $region42: #{ssi_forward.19} parent=27 // pred_region
              _
            $region43: #{ssi_forward.19} parent=27 // pred_fallthru
              _
          $region28: #{ssi_forward.19} parent=23 // pred_fallthru
            _
          %167 = vnop
        $region24: #{ssi_forward.19} parent=19 // pred_fallthru
          _
      $region20: #{ssi_forward.19} parent=5 // pred_fallthru
        _
      %p168 = scmp.le.s32.totalorder 1, %s8
      %p169 = scmp.lt.s32.totalorder %s8, 3
      %p170 = pnand %p168, %p169
      %p171 = pneg %p170
      // Predicated region
      $region44: #{ssi_forward.19} parent=5 // pred_check
        _
      $region45: #{ssi_forward.19} parent=5 // pred_check_branch
        %173 = sbr.rel (%p170) target = $region47
      $region46: #{ssi_forward.19} parent=5 // pred_region
        %s174 = ssub.s32 %s8, 1
        %s175 = sand.u32 %s42, 1
        %s176 = sand.u32 %s42, 1
        %s177 = smul.addr %s176, 160
        %s178 = scalar_lea.vmem [#allocation2], %s177
        // Predicated region
        $region48: #{ssi_forward.19} parent=46 // pred_check
          %p179 = pneg %p55
        $region49: #{ssi_forward.19} parent=46 // pred_check_branch
          %181 = sbr.rel (%p179) target = $region51
        $region50: #{ssi_forward.19} parent=46 // pred_region
          _
        $region51: #{ssi_forward.19} parent=46 // pred_fallthru
          _
        %p182 = pneg %p29
        %p183 = pneg %p26
        %s184 = sand.u32 %s42, 1
        %s185 = sand.u32 %s42, 1
        %s186 = smul.addr %s185, 160
        %s187 = scalar_lea.vmem [#allocation2], %s186
        %p188 = pneg %p55
        %p189 = pneg %p52
        %p190 = pneg %p81
        %p191 = pneg %p78
        %s192 = sand.u32 %s68, 1
        %s193 = sand.u32 %s68, 1
        %s194 = smul.addr %s193, 160
        %s195 = scalar_lea.vmem [#allocation3], %s194
        %s196 = smul.u32 20, %s13
        %s197 = smul.u32 20, %s13
        %v199 = vld [vmem:[%s0] sm:$0xf]
        %v200 = vld [vmem:[%s0 + $0x4] sm:$0xf]
        %v201 = vld [vmem:[%s178] sm:$0xff]
        %v202 = vld [vmem:[%s178 + $0x8] sm:$0xff]
        %v203 = vld [vmem:[%s178 + $0x10] sm:$0xff]
        %v204 = vld [vmem:[%s178 + $0x18] sm:$0xff]
        %v205 = vld [vmem:[%s178 + $0x20] sm:$0xff]
        %v206 = vld [vmem:[%s178 + $0x28] sm:$0xff]
        %v207 = vld [vmem:[%s178 + $0x30] sm:$0xff]
        %v208 = vld [vmem:[%s178 + $0x38] sm:$0xff]
        %v209 = vld [vmem:[%s178 + $0x40] sm:$0xff]
        %v210 = vld [vmem:[%s178 + $0x48] sm:$0xff]
        %v211 = vld [vmem:[%s178 + $0x50] sm:$0xff]
        %v212 = vld [vmem:[%s178 + $0x58] sm:$0xff]
        %v213 = vld [vmem:[%s178 + $0x60] sm:$0xff]
        %v214 = vld [vmem:[%s178 + $0x68] sm:$0xff]
        %v215 = vld [vmem:[%s178 + $0x70] sm:$0xff]
        %v216 = vld [vmem:[%s178 + $0x78] sm:$0xff]
        %v217 = vld [vmem:[%s178 + $0x80] sm:$0xff]
        %v218 = vld [vmem:[%s178 + $0x88] sm:$0xff]
        %v219 = vld [vmem:[%s178 + $0x90] sm:$0xff]
        %v220 = vld [vmem:[%s178 + $0x98] sm:$0xff]
        %v223 = vunpack.c.l.b16 %v199
        %v224 = vunpack.c.l.b16 %v200
        %v225 = vpack.c.b16 %v224, %v223
        %v246 = vunpack.c.l.b16 %v201
        %v247 = vunpack.c.h.b16 %v201
        %v248 = vunpack.c.l.b16 %v202
        %v249 = vunpack.c.h.b16 %v202
        %v250 = vunpack.c.l.b16 %v203
        %v251 = vunpack.c.h.b16 %v203
        %v252 = vunpack.c.l.b16 %v204
        %v253 = vunpack.c.h.b16 %v204
        %v254 = vunpack.c.l.b16 %v205
        %v255 = vunpack.c.h.b16 %v205
        %v256 = vunpack.c.l.b16 %v206
        %v257 = vunpack.c.h.b16 %v206
        %v258 = vunpack.c.l.b16 %v207
        %v259 = vunpack.c.h.b16 %v207
        %v260 = vunpack.c.l.b16 %v208
        %v261 = vunpack.c.h.b16 %v208
        %v262 = vunpack.c.l.b16 %v209
        %v263 = vunpack.c.h.b16 %v209
        %v264 = vunpack.c.l.b16 %v210
        %v265 = vunpack.c.h.b16 %v210
        %v266 = vunpack.c.l.b16 %v211
        %v267 = vunpack.c.h.b16 %v211
        %v268 = vunpack.c.l.b16 %v212
        %v269 = vunpack.c.h.b16 %v212
        %v270 = vunpack.c.l.b16 %v213
        %v271 = vunpack.c.h.b16 %v213
        %v272 = vunpack.c.l.b16 %v214
        %v273 = vunpack.c.h.b16 %v214
        %v274 = vunpack.c.l.b16 %v215
        %v275 = vunpack.c.h.b16 %v215
        %v276 = vunpack.c.l.b16 %v216
        %v277 = vunpack.c.h.b16 %v216
        %v278 = vunpack.c.l.b16 %v217
        %v279 = vunpack.c.h.b16 %v217
        %v280 = vunpack.c.l.b16 %v218
        %v281 = vunpack.c.h.b16 %v218
        %v282 = vunpack.c.l.b16 %v219
        %v283 = vunpack.c.h.b16 %v219
        %v284 = vunpack.c.l.b16 %v220
        %v285 = vunpack.c.h.b16 %v220
        %v286 = vpack.c.b16 %v266, %v246
        %v287 = vpack.c.b16 %v267, %v247
        %v288 = vpack.c.b16 %v268, %v248
        %v289 = vpack.c.b16 %v269, %v249
        %v290 = vpack.c.b16 %v270, %v250
        %v291 = vpack.c.b16 %v271, %v251
        %v292 = vpack.c.b16 %v272, %v252
        %v293 = vpack.c.b16 %v273, %v253
        %v294 = vpack.c.b16 %v274, %v254
        %v295 = vpack.c.b16 %v275, %v255
        %v296 = vpack.c.b16 %v276, %v256
        %v297 = vpack.c.b16 %v277, %v257
        %v298 = vpack.c.b16 %v278, %v258
        %v299 = vpack.c.b16 %v279, %v259
        %v300 = vpack.c.b16 %v280, %v260
        %v301 = vpack.c.b16 %v281, %v261
        %v302 = vpack.c.b16 %v282, %v262
        %v303 = vpack.c.b16 %v283, %v263
        %v304 = vpack.c.b16 %v284, %v264
        %v305 = vpack.c.b16 %v285, %v265
        %vm326 = vcmask 130048
        %v328 = vsel %vm326, %v225, 0
        %330 = vmatprep.subr.bf16.mxu0 %v287
        %331 = vmatpush1.bf16.msra.mxu0 %v286
        %332 = vmatprep.subr.bf16.mxu0 0
        %333 = vmatpush1.bf16.msra.mxu0 0
        %334 = vmatprep.subr.bf16.mxu0 0
        %335 = vmatpush1.bf16.msra.mxu0 0
        %336 = vmatprep.subr.bf16.mxu0 0
        %337 = vmatpush1.bf16.msra.mxu0 0
        %338 = vmatprep.subr.bf16.mxu0 0
        %339 = vmatpush1.bf16.msra.mxu0 0
        %340 = vmatprep.subr.bf16.mxu0 0
        %341 = vmatpush1.bf16.msra.mxu0 0
        %342 = vmatprep.subr.bf16.mxu0 0
        %343 = vmatpush1.bf16.msra.mxu0 0
        %344 = vmatprep.subr.bf16.mxu0 0
        %345 = vmatpush1.bf16.msra.mxu0 0
        %346 = vmatprep.subr.bf16.mxu0 0
        %347 = vmatpush1.bf16.msra.mxu0 0
        %348 = vmatprep.subr.bf16.mxu0 0
        %349 = vmatpush1.bf16.msra.mxu0 0
        %350 = vmatprep.subr.bf16.mxu0 0
        %351 = vmatpush1.bf16.msra.mxu0 0
        %352 = vmatprep.subr.bf16.mxu0 0
        %353 = vmatpush1.bf16.msra.mxu0 0
        %354 = vmatprep.subr.bf16.mxu0 0
        %355 = vmatpush1.bf16.msra.mxu0 0
        %356 = vmatprep.subr.bf16.mxu0 0
        %357 = vmatpush1.bf16.msra.mxu0 0
        %358 = vmatprep.subr.bf16.mxu0 0
        %359 = vmatpush1.bf16.msra.mxu0 0
        %360 = vmatprep.subr.bf16.mxu0 0
        %361 = vmatpush1.bf16.msra.mxu0 0
        %362 = vmatprep.mubr.bf16.mxu0 0
        %363 = vmatmul.mubr.bf16.gmra.mrb[0].mxu0 %v328
        %v364 = vpop.f32.mrb[0].mxu0
        %v365 = vadd.f32 0.0, %v364
        %v366 = vpop.f32.mrb[0].mxu0
        %v367 = vadd.f32 0.0, %v366
        %v368 = vpop.f32.mrb[0].mxu0
        %v369 = vadd.f32 0.0, %v368
        %v370 = vpop.f32.mrb[0].mxu0
        %v371 = vadd.f32 0.0, %v370
        %372 = vdwg.mxu0
        %373 = vmatprep.subr.bf16.mxu0 %v289
        %374 = vmatpush1.bf16.msra.mxu0 %v288
        %375 = vmatprep.subr.bf16.mxu0 0
        %376 = vmatpush1.bf16.msra.mxu0 0
        %377 = vmatprep.subr.bf16.mxu0 0
        %378 = vmatpush1.bf16.msra.mxu0 0
        %379 = vmatprep.subr.bf16.mxu0 0
        %380 = vmatpush1.bf16.msra.mxu0 0
        %381 = vmatprep.subr.bf16.mxu0 0
        %382 = vmatpush1.bf16.msra.mxu0 0
        %383 = vmatprep.subr.bf16.mxu0 0
        %384 = vmatpush1.bf16.msra.mxu0 0
        %385 = vmatprep.subr.bf16.mxu0 0
        %386 = vmatpush1.bf16.msra.mxu0 0
        %387 = vmatprep.subr.bf16.mxu0 0
        %388 = vmatpush1.bf16.msra.mxu0 0
        %389 = vmatprep.subr.bf16.mxu0 0
        %390 = vmatpush1.bf16.msra.mxu0 0
        %391 = vmatprep.subr.bf16.mxu0 0
        %392 = vmatpush1.bf16.msra.mxu0 0
        %393 = vmatprep.subr.bf16.mxu0 0
        %394 = vmatpush1.bf16.msra.mxu0 0
        %395 = vmatprep.subr.bf16.mxu0 0
        %396 = vmatpush1.bf16.msra.mxu0 0
        %397 = vmatprep.subr.bf16.mxu0 0
        %398 = vmatpush1.bf16.msra.mxu0 0
        %399 = vmatprep.subr.bf16.mxu0 0
        %400 = vmatpush1.bf16.msra.mxu0 0
        %401 = vmatprep.subr.bf16.mxu0 0
        %402 = vmatpush1.bf16.msra.mxu0 0
        %403 = vmatprep.subr.bf16.mxu0 0
        %404 = vmatpush1.bf16.msra.mxu0 0
        %405 = vmatprep.mubr.bf16.mxu0 0
        %406 = vmatmul.mubr.bf16.gmra.mrb[0].mxu0 %v328
        %v407 = vpop.f32.mrb[0].mxu0
        %v408 = vadd.f32 0.0, %v407
        %v409 = vpop.f32.mrb[0].mxu0
        %v410 = vadd.f32 0.0, %v409
        %v411 = vpop.f32.mrb[0].mxu0
        %v412 = vadd.f32 0.0, %v411
        %v413 = vpop.f32.mrb[0].mxu0
        %v414 = vadd.f32 0.0, %v413
        %415 = vdwg.mxu0
        %416 = vmatprep.subr.bf16.mxu0 %v291
        %417 = vmatpush1.bf16.msra.mxu0 %v290
        %418 = vmatprep.subr.bf16.mxu0 0
        %419 = vmatpush1.bf16.msra.mxu0 0
        %420 = vmatprep.subr.bf16.mxu0 0
        %421 = vmatpush1.bf16.msra.mxu0 0
        %422 = vmatprep.subr.bf16.mxu0 0
        %423 = vmatpush1.bf16.msra.mxu0 0
        %424 = vmatprep.subr.bf16.mxu0 0
        %425 = vmatpush1.bf16.msra.mxu0 0
        %426 = vmatprep.subr.bf16.mxu0 0
        %427 = vmatpush1.bf16.msra.mxu0 0
        %428 = vmatprep.subr.bf16.mxu0 0
        %429 = vmatpush1.bf16.msra.mxu0 0
        %430 = vmatprep.subr.bf16.mxu0 0
        %431 = vmatpush1.bf16.msra.mxu0 0
        %432 = vmatprep.subr.bf16.mxu0 0
        %433 = vmatpush1.bf16.msra.mxu0 0
        %434 = vmatprep.subr.bf16.mxu0 0
        %435 = vmatpush1.bf16.msra.mxu0 0
        %436 = vmatprep.subr.bf16.mxu0 0
        %437 = vmatpush1.bf16.msra.mxu0 0
        %438 = vmatprep.subr.bf16.mxu0 0
        %439 = vmatpush1.bf16.msra.mxu0 0
        %440 = vmatprep.subr.bf16.mxu0 0
        %441 = vmatpush1.bf16.msra.mxu0 0
        %442 = vmatprep.subr.bf16.mxu0 0
        %443 = vmatpush1.bf16.msra.mxu0 0
        %444 = vmatprep.subr.bf16.mxu0 0
        %445 = vmatpush1.bf16.msra.mxu0 0
        %446 = vmatprep.subr.bf16.mxu0 0
        %447 = vmatpush1.bf16.msra.mxu0 0
        %448 = vmatprep.mubr.bf16.mxu0 0
        %449 = vmatmul.mubr.bf16.gmra.mrb[0].mxu0 %v328
        %v450 = vpop.f32.mrb[0].mxu0
        %v451 = vadd.f32 0.0, %v450
        %v452 = vpop.f32.mrb[0].mxu0
        %v453 = vadd.f32 0.0, %v452
        %v454 = vpop.f32.mrb[0].mxu0
        %v455 = vadd.f32 0.0, %v454
        %v456 = vpop.f32.mrb[0].mxu0
        %v457 = vadd.f32 0.0, %v456
        %458 = vdwg.mxu0
        %459 = vmatprep.subr.bf16.mxu0 %v293
        %460 = vmatpush1.bf16.msra.mxu0 %v292
        %461 = vmatprep.subr.bf16.mxu0 0
        %462 = vmatpush1.bf16.msra.mxu0 0
        %463 = vmatprep.subr.bf16.mxu0 0
        %464 = vmatpush1.bf16.msra.mxu0 0
        %465 = vmatprep.subr.bf16.mxu0 0
        %466 = vmatpush1.bf16.msra.mxu0 0
        %467 = vmatprep.subr.bf16.mxu0 0
        %468 = vmatpush1.bf16.msra.mxu0 0
        %469 = vmatprep.subr.bf16.mxu0 0
        %470 = vmatpush1.bf16.msra.mxu0 0
        %471 = vmatprep.subr.bf16.mxu0 0
        %472 = vmatpush1.bf16.msra.mxu0 0
        %473 = vmatprep.subr.bf16.mxu0 0
        %474 = vmatpush1.bf16.msra.mxu0 0
        %475 = vmatprep.subr.bf16.mxu0 0
        %476 = vmatpush1.bf16.msra.mxu0 0
        %477 = vmatprep.subr.bf16.mxu0 0
        %478 = vmatpush1.bf16.msra.mxu0 0
        %479 = vmatprep.subr.bf16.mxu0 0
        %480 = vmatpush1.bf16.msra.mxu0 0
        %481 = vmatprep.subr.bf16.mxu0 0
        %482 = vmatpush1.bf16.msra.mxu0 0
        %483 = vmatprep.subr.bf16.mxu0 0
        %484 = vmatpush1.bf16.msra.mxu0 0
        %485 = vmatprep.subr.bf16.mxu0 0
        %486 = vmatpush1.bf16.msra.mxu0 0
        %487 = vmatprep.subr.bf16.mxu0 0
        %488 = vmatpush1.bf16.msra.mxu0 0
        %489 = vmatprep.subr.bf16.mxu0 0
        %490 = vmatpush1.bf16.msra.mxu0 0
        %491 = vmatprep.mubr.bf16.mxu0 0
        %492 = vmatmul.mubr.bf16.gmra.mrb[0].mxu0 %v328
        %v493 = vpop.f32.mrb[0].mxu0
        %v494 = vadd.f32 0.0, %v493
        %v495 = vpop.f32.mrb[0].mxu0
        %v496 = vadd.f32 0.0, %v495
        %v497 = vpop.f32.mrb[0].mxu0
        %v498 = vadd.f32 0.0, %v497
        %v499 = vpop.f32.mrb[0].mxu0
        %v500 = vadd.f32 0.0, %v499
        %501 = vdwg.mxu0
        %502 = vmatprep.subr.bf16.mxu0 %v295
        %503 = vmatpush1.bf16.msra.mxu0 %v294
        %504 = vmatprep.subr.bf16.mxu0 0
        %505 = vmatpush1.bf16.msra.mxu0 0
        %506 = vmatprep.subr.bf16.mxu0 0
        %507 = vmatpush1.bf16.msra.mxu0 0
        %508 = vmatprep.subr.bf16.mxu0 0
        %509 = vmatpush1.bf16.msra.mxu0 0
        %510 = vmatprep.subr.bf16.mxu0 0
        %511 = vmatpush1.bf16.msra.mxu0 0
        %512 = vmatprep.subr.bf16.mxu0 0
        %513 = vmatpush1.bf16.msra.mxu0 0
        %514 = vmatprep.subr.bf16.mxu0 0
        %515 = vmatpush1.bf16.msra.mxu0 0
        %516 = vmatprep.subr.bf16.mxu0 0
        %517 = vmatpush1.bf16.msra.mxu0 0
        %518 = vmatprep.subr.bf16.mxu0 0
        %519 = vmatpush1.bf16.msra.mxu0 0
        %520 = vmatprep.subr.bf16.mxu0 0
        %521 = vmatpush1.bf16.msra.mxu0 0
        %522 = vmatprep.subr.bf16.mxu0 0
        %523 = vmatpush1.bf16.msra.mxu0 0
        %524 = vmatprep.subr.bf16.mxu0 0
        %525 = vmatpush1.bf16.msra.mxu0 0
        %526 = vmatprep.subr.bf16.mxu0 0
        %527 = vmatpush1.bf16.msra.mxu0 0
        %528 = vmatprep.subr.bf16.mxu0 0
        %529 = vmatpush1.bf16.msra.mxu0 0
        %530 = vmatprep.subr.bf16.mxu0 0
        %531 = vmatpush1.bf16.msra.mxu0 0
        %532 = vmatprep.subr.bf16.mxu0 0
        %533 = vmatpush1.bf16.msra.mxu0 0
        %534 = vmatprep.mubr.bf16.mxu0 0
        %535 = vmatmul.mubr.bf16.gmra.mrb[0].mxu0 %v328
        %v536 = vpop.f32.mrb[0].mxu0
        %v537 = vadd.f32 0.0, %v536
        %v538 = vpop.f32.mrb[0].mxu0
        %v539 = vadd.f32 0.0, %v538
        %v540 = vpop.f32.mrb[0].mxu0
        %v541 = vadd.f32 0.0, %v540
        %v542 = vpop.f32.mrb[0].mxu0
        %v543 = vadd.f32 0.0, %v542
        %544 = vdwg.mxu0
        %545 = vmatprep.subr.bf16.mxu0 %v297
        %546 = vmatpush1.bf16.msra.mxu0 %v296
        %547 = vmatprep.subr.bf16.mxu0 0
        %548 = vmatpush1.bf16.msra.mxu0 0
        %549 = vmatprep.subr.bf16.mxu0 0
        %550 = vmatpush1.bf16.msra.mxu0 0
        %551 = vmatprep.subr.bf16.mxu0 0
        %552 = vmatpush1.bf16.msra.mxu0 0
        %553 = vmatprep.subr.bf16.mxu0 0
        %554 = vmatpush1.bf16.msra.mxu0 0
        %555 = vmatprep.subr.bf16.mxu0 0
        %556 = vmatpush1.bf16.msra.mxu0 0
        %557 = vmatprep.subr.bf16.mxu0 0
        %558 = vmatpush1.bf16.msra.mxu0 0
        %559 = vmatprep.subr.bf16.mxu0 0
        %560 = vmatpush1.bf16.msra.mxu0 0
        %561 = vmatprep.subr.bf16.mxu0 0
        %562 = vmatpush1.bf16.msra.mxu0 0
        %563 = vmatprep.subr.bf16.mxu0 0
        %564 = vmatpush1.bf16.msra.mxu0 0
        %565 = vmatprep.subr.bf16.mxu0 0
        %566 = vmatpush1.bf16.msra.mxu0 0
        %567 = vmatprep.subr.bf16.mxu0 0
        %568 = vmatpush1.bf16.msra.mxu0 0
        %569 = vmatprep.subr.bf16.mxu0 0
        %570 = vmatpush1.bf16.msra.mxu0 0
        %571 = vmatprep.subr.bf16.mxu0 0
        %572 = vmatpush1.bf16.msra.mxu0 0
        %573 = vmatprep.subr.bf16.mxu0 0
        %574 = vmatpush1.bf16.msra.mxu0 0
        %575 = vmatprep.subr.bf16.mxu0 0
        %576 = vmatpush1.bf16.msra.mxu0 0
        %577 = vmatprep.mubr.bf16.mxu0 0
        %578 = vmatmul.mubr.bf16.gmra.mrb[0].mxu0 %v328
        %v579 = vpop.f32.mrb[0].mxu0
        %v580 = vadd.f32 0.0, %v579
        %v581 = vpop.f32.mrb[0].mxu0
        %v582 = vadd.f32 0.0, %v581
        %v583 = vpop.f32.mrb[0].mxu0
        %v584 = vadd.f32 0.0, %v583
        %v585 = vpop.f32.mrb[0].mxu0
        %v586 = vadd.f32 0.0, %v585
        %587 = vdwg.mxu0
        %588 = vmatprep.subr.bf16.mxu0 %v299
        %589 = vmatpush1.bf16.msra.mxu0 %v298
        %590 = vmatprep.subr.bf16.mxu0 0
        %591 = vmatpush1.bf16.msra.mxu0 0
        %592 = vmatprep.subr.bf16.mxu0 0
        %593 = vmatpush1.bf16.msra.mxu0 0
        %594 = vmatprep.subr.bf16.mxu0 0
        %595 = vmatpush1.bf16.msra.mxu0 0
        %596 = vmatprep.subr.bf16.mxu0 0
        %597 = vmatpush1.bf16.msra.mxu0 0
        %598 = vmatprep.subr.bf16.mxu0 0
        %599 = vmatpush1.bf16.msra.mxu0 0
        %600 = vmatprep.subr.bf16.mxu0 0
        %601 = vmatpush1.bf16.msra.mxu0 0
        %602 = vmatprep.subr.bf16.mxu0 0
        %603 = vmatpush1.bf16.msra.mxu0 0
        %604 = vmatprep.subr.bf16.mxu0 0
        %605 = vmatpush1.bf16.msra.mxu0 0
        %606 = vmatprep.subr.bf16.mxu0 0
        %607 = vmatpush1.bf16.msra.mxu0 0
        %608 = vmatprep.subr.bf16.mxu0 0
        %609 = vmatpush1.bf16.msra.mxu0 0
        %610 = vmatprep.subr.bf16.mxu0 0
        %611 = vmatpush1.bf16.msra.mxu0 0
        %612 = vmatprep.subr.bf16.mxu0 0
        %613 = vmatpush1.bf16.msra.mxu0 0
        %614 = vmatprep.subr.bf16.mxu0 0
        %615 = vmatpush1.bf16.msra.mxu0 0
        %616 = vmatprep.subr.bf16.mxu0 0
        %617 = vmatpush1.bf16.msra.mxu0 0
        %618 = vmatprep.subr.bf16.mxu0 0
        %619 = vmatpush1.bf16.msra.mxu0 0
        %620 = vmatprep.mubr.bf16.mxu0 0
        %621 = vmatmul.mubr.bf16.gmra.mrb[0].mxu0 %v328
        %v622 = vpop.f32.mrb[0].mxu0
        %v623 = vadd.f32 0.0, %v622
        %v624 = vpop.f32.mrb[0].mxu0
        %v625 = vadd.f32 0.0, %v624
        %v626 = vpop.f32.mrb[0].mxu0
        %v627 = vadd.f32 0.0, %v626
        %v628 = vpop.f32.mrb[0].mxu0
        %v629 = vadd.f32 0.0, %v628
        %630 = vdwg.mxu0
        %631 = vmatprep.subr.bf16.mxu0 %v301
        %632 = vmatpush1.bf16.msra.mxu0 %v300
        %633 = vmatprep.subr.bf16.mxu0 0
        %634 = vmatpush1.bf16.msra.mxu0 0
        %635 = vmatprep.subr.bf16.mxu0 0
        %636 = vmatpush1.bf16.msra.mxu0 0
        %637 = vmatprep.subr.bf16.mxu0 0
        %638 = vmatpush1.bf16.msra.mxu0 0
        %639 = vmatprep.subr.bf16.mxu0 0
        %640 = vmatpush1.bf16.msra.mxu0 0
        %641 = vmatprep.subr.bf16.mxu0 0
        %642 = vmatpush1.bf16.msra.mxu0 0
        %643 = vmatprep.subr.bf16.mxu0 0
        %644 = vmatpush1.bf16.msra.mxu0 0
        %645 = vmatprep.subr.bf16.mxu0 0
        %646 = vmatpush1.bf16.msra.mxu0 0
        %647 = vmatprep.subr.bf16.mxu0 0
        %648 = vmatpush1.bf16.msra.mxu0 0
        %649 = vmatprep.subr.bf16.mxu0 0
        %650 = vmatpush1.bf16.msra.mxu0 0
        %651 = vmatprep.subr.bf16.mxu0 0
        %652 = vmatpush1.bf16.msra.mxu0 0
        %653 = vmatprep.subr.bf16.mxu0 0
        %654 = vmatpush1.bf16.msra.mxu0 0
        %655 = vmatprep.subr.bf16.mxu0 0
        %656 = vmatpush1.bf16.msra.mxu0 0
        %657 = vmatprep.subr.bf16.mxu0 0
        %658 = vmatpush1.bf16.msra.mxu0 0
        %659 = vmatprep.subr.bf16.mxu0 0
        %660 = vmatpush1.bf16.msra.mxu0 0
        %661 = vmatprep.subr.bf16.mxu0 0
        %662 = vmatpush1.bf16.msra.mxu0 0
        %663 = vmatprep.mubr.bf16.mxu0 0
        %664 = vmatmul.mubr.bf16.gmra.mrb[0].mxu0 %v328
        %v665 = vpop.f32.mrb[0].mxu0
        %v666 = vadd.f32 0.0, %v665
        %v667 = vpop.f32.mrb[0].mxu0
        %v668 = vadd.f32 0.0, %v667
        %v669 = vpop.f32.mrb[0].mxu0
        %v670 = vadd.f32 0.0, %v669
        %v671 = vpop.f32.mrb[0].mxu0
        %v672 = vadd.f32 0.0, %v671
        %673 = vdwg.mxu0
        %674 = vmatprep.subr.bf16.mxu0 %v303
        %675 = vmatpush1.bf16.msra.mxu0 %v302
        %676 = vmatprep.subr.bf16.mxu0 0
        %677 = vmatpush1.bf16.msra.mxu0 0
        %678 = vmatprep.subr.bf16.mxu0 0
        %679 = vmatpush1.bf16.msra.mxu0 0
        %680 = vmatprep.subr.bf16.mxu0 0
        %681 = vmatpush1.bf16.msra.mxu0 0
        %682 = vmatprep.subr.bf16.mxu0 0
        %683 = vmatpush1.bf16.msra.mxu0 0
        %684 = vmatprep.subr.bf16.mxu0 0
        %685 = vmatpush1.bf16.msra.mxu0 0
        %686 = vmatprep.subr.bf16.mxu0 0
        %687 = vmatpush1.bf16.msra.mxu0 0
        %688 = vmatprep.subr.bf16.mxu0 0
        %689 = vmatpush1.bf16.msra.mxu0 0
        %690 = vmatprep.subr.bf16.mxu0 0
        %691 = vmatpush1.bf16.msra.mxu0 0
        %692 = vmatprep.subr.bf16.mxu0 0
        %693 = vmatpush1.bf16.msra.mxu0 0
        %694 = vmatprep.subr.bf16.mxu0 0
        %695 = vmatpush1.bf16.msra.mxu0 0
        %696 = vmatprep.subr.bf16.mxu0 0
        %697 = vmatpush1.bf16.msra.mxu0 0
        %698 = vmatprep.subr.bf16.mxu0 0
        %699 = vmatpush1.bf16.msra.mxu0 0
        %700 = vmatprep.subr.bf16.mxu0 0
        %701 = vmatpush1.bf16.msra.mxu0 0
        %702 = vmatprep.subr.bf16.mxu0 0
        %703 = vmatpush1.bf16.msra.mxu0 0
        %704 = vmatprep.subr.bf16.mxu0 0
        %705 = vmatpush1.bf16.msra.mxu0 0
        %706 = vmatprep.mubr.bf16.mxu0 0
        %707 = vmatmul.mubr.bf16.gmra.mrb[0].mxu0 %v328
        %v708 = vpop.f32.mrb[0].mxu0
        %v709 = vadd.f32 0.0, %v708
        %v710 = vpop.f32.mrb[0].mxu0
        %v711 = vadd.f32 0.0, %v710
        %v712 = vpop.f32.mrb[0].mxu0
        %v713 = vadd.f32 0.0, %v712
        %v714 = vpop.f32.mrb[0].mxu0
        %v715 = vadd.f32 0.0, %v714
        %716 = vdwg.mxu0
        %717 = vmatprep.subr.bf16.mxu0 %v305
        %718 = vmatpush1.bf16.msra.mxu0 %v304
        %719 = vmatprep.subr.bf16.mxu0 0
        %720 = vmatpush1.bf16.msra.mxu0 0
        %721 = vmatprep.subr.bf16.mxu0 0
        %722 = vmatpush1.bf16.msra.mxu0 0
        %723 = vmatprep.subr.bf16.mxu0 0
        %724 = vmatpush1.bf16.msra.mxu0 0
        %725 = vmatprep.subr.bf16.mxu0 0
        %726 = vmatpush1.bf16.msra.mxu0 0
        %727 = vmatprep.subr.bf16.mxu0 0
        %728 = vmatpush1.bf16.msra.mxu0 0
        %729 = vmatprep.subr.bf16.mxu0 0
        %730 = vmatpush1.bf16.msra.mxu0 0
        %731 = vmatprep.subr.bf16.mxu0 0
        %732 = vmatpush1.bf16.msra.mxu0 0
        %733 = vmatprep.subr.bf16.mxu0 0
        %734 = vmatpush1.bf16.msra.mxu0 0
        %735 = vmatprep.subr.bf16.mxu0 0
        %736 = vmatpush1.bf16.msra.mxu0 0
        %737 = vmatprep.subr.bf16.mxu0 0
        %738 = vmatpush1.bf16.msra.mxu0 0
        %739 = vmatprep.subr.bf16.mxu0 0
        %740 = vmatpush1.bf16.msra.mxu0 0
        %741 = vmatprep.subr.bf16.mxu0 0
        %742 = vmatpush1.bf16.msra.mxu0 0
        %743 = vmatprep.subr.bf16.mxu0 0
        %744 = vmatpush1.bf16.msra.mxu0 0
        %745 = vmatprep.subr.bf16.mxu0 0
        %746 = vmatpush1.bf16.msra.mxu0 0
        %747 = vmatprep.subr.bf16.mxu0 0
        %748 = vmatpush1.bf16.msra.mxu0 0
        %749 = vmatprep.mubr.bf16.mxu0 0
        %750 = vmatmul.mubr.bf16.gmra.mrb[0].mxu0 %v328
        %v751 = vpop.f32.mrb[0].mxu0
        %v752 = vadd.f32 0.0, %v751
        %v753 = vpop.f32.mrb[0].mxu0
        %v754 = vadd.f32 0.0, %v753
        %v755 = vpop.f32.mrb[0].mxu0
        %v756 = vadd.f32 0.0, %v755
        %v757 = vpop.f32.mrb[0].mxu0
        %v758 = vadd.f32 0.0, %v757
        %759 = vdwg.mxu0
        %v760 = vpack.c.bf16 %v369, %v365
        %v761 = vpack.c.bf16 %v371, %v367
        %v762 = vpack.c.bf16 %v412, %v408
        %v763 = vpack.c.bf16 %v414, %v410
        %v764 = vpack.c.bf16 %v455, %v451
        %v765 = vpack.c.bf16 %v457, %v453
        %v766 = vpack.c.bf16 %v498, %v494
        %v767 = vpack.c.bf16 %v500, %v496
        %v768 = vpack.c.bf16 %v541, %v537
        %v769 = vpack.c.bf16 %v543, %v539
        %v770 = vpack.c.bf16 %v584, %v580
        %v771 = vpack.c.bf16 %v586, %v582
        %v772 = vpack.c.bf16 %v627, %v623
        %v773 = vpack.c.bf16 %v629, %v625
        %v774 = vpack.c.bf16 %v670, %v666
        %v775 = vpack.c.bf16 %v672, %v668
        %v776 = vpack.c.bf16 %v713, %v709
        %v777 = vpack.c.bf16 %v715, %v711
        %v778 = vpack.c.bf16 %v756, %v752
        %v779 = vpack.c.bf16 %v758, %v754
        %v800 = vunpack.c.l.b16 %v760
        %v801 = vunpack.c.l.b16 %v761
        %v802 = vunpack.c.l.b16 %v762
        %v803 = vunpack.c.l.b16 %v763
        %v804 = vunpack.c.l.b16 %v764
        %v805 = vunpack.c.l.b16 %v765
        %v806 = vunpack.c.l.b16 %v766
        %v807 = vunpack.c.l.b16 %v767
        %v808 = vunpack.c.l.b16 %v768
        %v809 = vunpack.c.l.b16 %v769
        %v810 = vunpack.c.l.b16 %v770
        %v811 = vunpack.c.l.b16 %v771
        %v812 = vunpack.c.l.b16 %v772
        %v813 = vunpack.c.l.b16 %v773
        %v814 = vunpack.c.l.b16 %v774
        %v815 = vunpack.c.l.b16 %v775
        %v816 = vunpack.c.l.b16 %v776
        %v817 = vunpack.c.l.b16 %v777
        %v818 = vunpack.c.l.b16 %v778
        %v819 = vunpack.c.l.b16 %v779
        %v820 = vunpack.c.h.b16 %v760
        %v821 = vunpack.c.h.b16 %v761
        %v822 = vunpack.c.h.b16 %v762
        %v823 = vunpack.c.h.b16 %v763
        %v824 = vunpack.c.h.b16 %v764
        %v825 = vunpack.c.h.b16 %v765
        %v826 = vunpack.c.h.b16 %v766
        %v827 = vunpack.c.h.b16 %v767
        %v828 = vunpack.c.h.b16 %v768
        %v829 = vunpack.c.h.b16 %v769
        %v830 = vunpack.c.h.b16 %v770
        %v831 = vunpack.c.h.b16 %v771
        %v832 = vunpack.c.h.b16 %v772
        %v833 = vunpack.c.h.b16 %v773
        %v834 = vunpack.c.h.b16 %v774
        %v835 = vunpack.c.h.b16 %v775
        %v836 = vunpack.c.h.b16 %v776
        %v837 = vunpack.c.h.b16 %v777
        %v838 = vunpack.c.h.b16 %v778
        %v839 = vunpack.c.h.b16 %v779
        %v840 = vpack.c.b16 %v801, %v800
        %v841 = vpack.c.b16 %v803, %v802
        %v842 = vpack.c.b16 %v805, %v804
        %v843 = vpack.c.b16 %v807, %v806
        %v844 = vpack.c.b16 %v809, %v808
        %v845 = vpack.c.b16 %v811, %v810
        %v846 = vpack.c.b16 %v813, %v812
        %v847 = vpack.c.b16 %v815, %v814
        %v848 = vpack.c.b16 %v817, %v816
        %v849 = vpack.c.b16 %v819, %v818
        %v850 = vpack.c.b16 %v821, %v820
        %v851 = vpack.c.b16 %v823, %v822
        %v852 = vpack.c.b16 %v825, %v824
        %v853 = vpack.c.b16 %v827, %v826
        %v854 = vpack.c.b16 %v829, %v828
        %v855 = vpack.c.b16 %v831, %v830
        %v856 = vpack.c.b16 %v833, %v832
        %v857 = vpack.c.b16 %v835, %v834
        %v858 = vpack.c.b16 %v837, %v836
        %v859 = vpack.c.b16 %v839, %v838
        %880 = vst [vmem:[%s195] sm:$0xff] %v840
        %881 = vst [vmem:[%s195 + $0x8] sm:$0xff] %v841
        %882 = vst [vmem:[%s195 + $0x10] sm:$0xff] %v842
        %883 = vst [vmem:[%s195 + $0x18] sm:$0xff] %v843
        %884 = vst [vmem:[%s195 + $0x20] sm:$0xff] %v844
        %885 = vst [vmem:[%s195 + $0x28] sm:$0xff] %v845
        %886 = vst [vmem:[%s195 + $0x30] sm:$0xff] %v846
        %887 = vst [vmem:[%s195 + $0x38] sm:$0xff] %v847
        %888 = vst [vmem:[%s195 + $0x40] sm:$0xff] %v848
        %889 = vst [vmem:[%s195 + $0x48] sm:$0xff] %v849
        %890 = vst [vmem:[%s195 + $0x50] sm:$0xff] %v850
        %891 = vst [vmem:[%s195 + $0x58] sm:$0xff] %v851
        %892 = vst [vmem:[%s195 + $0x60] sm:$0xff] %v852
        %893 = vst [vmem:[%s195 + $0x68] sm:$0xff] %v853
        %894 = vst [vmem:[%s195 + $0x70] sm:$0xff] %v854
        %895 = vst [vmem:[%s195 + $0x78] sm:$0xff] %v855
        %896 = vst [vmem:[%s195 + $0x80] sm:$0xff] %v856
        %897 = vst [vmem:[%s195 + $0x88] sm:$0xff] %v857
        %898 = vst [vmem:[%s195 + $0x90] sm:$0xff] %v858
        %899 = vst [vmem:[%s195 + $0x98] sm:$0xff] %v859
        %s900 = sand.u32 %s68, 1
        %s901 = sand.u32 %s68, 1
        %s902 = smul.addr %s901, 160
        %s903 = scalar_lea.vmem [#allocation3], %s902
        // Predicated region
        $region52: #{ssi_forward.19} parent=46 // pred_check
          %p904 = pneg %p78
        $region53: #{ssi_forward.19} parent=46 // pred_check_branch
          %906 = sbr.rel (%p904) target = $region55
        $region54: #{ssi_forward.19} parent=46 // pred_region
          %s907 = smul.u32 20, %s13
          %s908 = smul.addr %s907, 4
          %s909 = scalar_lea.vmem %s2, %s908
          // Predicated region
          $region56: #{ssi_forward.19} parent=54 // pred_check
            _
          $region57: #{ssi_forward.19} parent=54 // pred_check_branch
            %911 = sbr.rel (0) target = $region59
          $region58: #{ssi_forward.19} parent=54 // pred_region
            // Predicated region
            $region60: #{ssi_forward.19} parent=58 // pred_check
              _
            $region61: #{ssi_forward.19} parent=58 // pred_check_branch
              %913 = sbr.rel (0) target = $region63
            $region62: #{ssi_forward.19} parent=58 // pred_region
              loop: start=0, step=1, limit=1
              $region64: #{ssi_forward.19} parent=62 // loop_pre_header
                _
              $region65: #{ssi_forward.19} parent=62 // loop_header
                %s915 = sphi 0, %s919
                %p916 = scmp.ge.s32.totalorder %s915, 1
                %s920 = sphi %s903, %s903
                %s921 = sphi %s909, %s909
              $region66: #{ssi_forward.19} parent=62 // loop_header_branch
                %918 = sbr.rel (%p916) target = $region70
              $region67: #{ssi_forward.19} parent=62 // loop_body
                %v922 = vld [vmem:[%s920] sm:$0xff]
                %923 = vst [vmem:[%s921] sm:$0xff] %v922
                %v924 = vld [vmem:[%s920 + $0x8] sm:$0xff]
                %925 = vst [vmem:[%s921 + $0x8] sm:$0xff] %v924
                %v926 = vld [vmem:[%s920 + $0x10] sm:$0xff]
                %927 = vst [vmem:[%s921 + $0x10] sm:$0xff] %v926
                %v928 = vld [vmem:[%s920 + $0x18] sm:$0xff]
                %929 = vst [vmem:[%s921 + $0x18] sm:$0xff] %v928
                %v930 = vld [vmem:[%s920 + $0x20] sm:$0xff]
                %931 = vst [vmem:[%s921 + $0x20] sm:$0xff] %v930
                %v932 = vld [vmem:[%s920 + $0x28] sm:$0xff]
                %933 = vst [vmem:[%s921 + $0x28] sm:$0xff] %v932
                %v934 = vld [vmem:[%s920 + $0x30] sm:$0xff]
                %935 = vst [vmem:[%s921 + $0x30] sm:$0xff] %v934
                %v936 = vld [vmem:[%s920 + $0x38] sm:$0xff]
                %937 = vst [vmem:[%s921 + $0x38] sm:$0xff] %v936
                %v938 = vld [vmem:[%s920 + $0x40] sm:$0xff]
                %939 = vst [vmem:[%s921 + $0x40] sm:$0xff] %v938
                %v940 = vld [vmem:[%s920 + $0x48] sm:$0xff]
                %941 = vst [vmem:[%s921 + $0x48] sm:$0xff] %v940
                %v942 = vld [vmem:[%s920 + $0x50] sm:$0xff]
                %943 = vst [vmem:[%s921 + $0xa0] sm:$0xff] %v942
                %v944 = vld [vmem:[%s920 + $0x58] sm:$0xff]
                %945 = vst [vmem:[%s921 + $0xa8] sm:$0xff] %v944
                %v946 = vld [vmem:[%s920 + $0x60] sm:$0xff]
                %947 = vst [vmem:[%s921 + $0xb0] sm:$0xff] %v946
                %v948 = vld [vmem:[%s920 + $0x68] sm:$0xff]
                %949 = vst [vmem:[%s921 + $0xb8] sm:$0xff] %v948
                %v950 = vld [vmem:[%s920 + $0x70] sm:$0xff]
                %951 = vst [vmem:[%s921 + $0xc0] sm:$0xff] %v950
                %v952 = vld [vmem:[%s920 + $0x78] sm:$0xff]
                %953 = vst [vmem:[%s921 + $0xc8] sm:$0xff] %v952
                %v954 = vld [vmem:[%s920 + $0x80] sm:$0xff]
                %955 = vst [vmem:[%s921 + $0xd0] sm:$0xff] %v954
                %v956 = vld [vmem:[%s920 + $0x88] sm:$0xff]
                %957 = vst [vmem:[%s921 + $0xd8] sm:$0xff] %v956
                %v958 = vld [vmem:[%s920 + $0x90] sm:$0xff]
                %959 = vst [vmem:[%s921 + $0xe0] sm:$0xff] %v958
                %v960 = vld [vmem:[%s920 + $0x98] sm:$0xff]
                %961 = vst [vmem:[%s921 + $0xe8] sm:$0xff] %v960
              $region68: #{ssi_forward.19} parent=62 // loop_footer
                %s919 = sadd.s32 1, %s915
              $region69: #{ssi_forward.19} parent=62 // loop_footer_branch
                %914 = sbr.rel target = $region65
              $region70: #{ssi_forward.19} parent=62 // loop_exit
                _
            $region63: #{ssi_forward.19} parent=58 // pred_fallthru
              _
            // Predicated region
            $region71: #{ssi_forward.19} parent=58 // pred_check
              _
            $region72: #{ssi_forward.19} parent=58 // pred_check_branch
              %963 = sbr.rel target = $region74
            $region73: #{ssi_forward.19} parent=58 // pred_region
              _
            $region74: #{ssi_forward.19} parent=58 // pred_fallthru
              _
          $region59: #{ssi_forward.19} parent=54 // pred_fallthru
            _
          %964 = vnop
        $region55: #{ssi_forward.19} parent=46 // pred_fallthru
          _
      $region47: #{ssi_forward.19} parent=5 // pred_fallthru
        _
      %p965 = scmp.le.s32.totalorder 2, %s8
      // Predicated region
      $region75: #{ssi_forward.19} parent=5 // pred_check
        %p966 = pneg %p965
      $region76: #{ssi_forward.19} parent=5 // pred_check_branch
        %968 = sbr.rel (%p966) target = $region78
      $region77: #{ssi_forward.19} parent=5 // pred_region
        %s969 = ssub.s32 %s8, 2
        // Predicated region
        $region79: #{ssi_forward.19} parent=77 // pred_check
          %p970 = pneg %p84
        $region80: #{ssi_forward.19} parent=77 // pred_check_branch
          %972 = sbr.rel (%p970) target = $region82
        $region81: #{ssi_forward.19} parent=77 // pred_region
          %s973 = sand.u32 %s69, 1
          %s974 = sand.u32 %s69, 1
          %s975 = smul.addr %s974, 160
          %s976 = scalar_lea.vmem [#allocation3], %s975
        $region82: #{ssi_forward.19} parent=77 // pred_fallthru
          _
      $region78: #{ssi_forward.19} parent=5 // pred_fallthru
        _
    $region6: #{ssi_forward.19} parent=1 // loop_footer
      %s12 = sadd.s32 1, %s8
    $region7: #{ssi_forward.19} parent=1 // loop_footer_branch
      %7 = sbr.rel target = $region3
    $region8: #{ssi_forward.19} parent=1 // loop_exit
      _

// kernel: ssi_forward.21
$region0: #{ssi_forward.21}
  #allocation0 [shape = 'u32[]', space=smem, size = 0x4, offset = 0x4, fixed_abs, tag = 'smem constant byte address 0x4 - core index']
  #allocation1 [shape = 'u32[144,128]{1,0:T(1,128)}', space=vmem, size = 0x12000, scoped, tag = 'internal scratch']
  %s0 = inlined_call_operand.vmem [shape: bf16[2,8,256], index: 0, kind: input, shape index: {}]
  %s1 = inlined_call_operand.vmem [shape: bf16[8,8], index: 1, kind: input, shape index: {}]
  %s2 = inlined_call_operand.vmem [shape: f32[8,1], index: 2, kind: input, shape index: {}]
  %s3 = inlined_call_operand.vmem [shape: f32[8,1], index: 3, kind: input, shape index: {}]
  %s4 = inlined_call_operand.vmem [shape: f32[2,8,256], index: 4, kind: output, shape index: {}]
  %s5 = sld [smem:[#allocation0]]
  $region49: #{ssi_forward.21} parent=0
    _
  %s7 = ssub.s32 1, %s5
  %s8 = scalar_select 0, %s7, %s5
  loop: start=0, step=1, limit=4
  $region2: #{ssi_forward.21} parent=0 // loop_pre_header
    _
  $region3: #{ssi_forward.21} parent=0 // loop_header
    %s10 = sphi 0, %s14
    %p11 = scmp.ge.s32.totalorder %s10, 4
    %s17 = sphi 0, %s29
    %s18 = sphi 0, %s25
    %s19 = sphi 0, %s17
    %s20 = sphi 0, %s18
    %s21 = sphi 0, %s19
    %s22 = sphi 0, %s20
    %s34 = sphi 0, %s36
    %s37 = sphi 0, %s34
    %s38 = sphi 0, %s37
    %s54 = sphi 0, %s38
    %s58 = sphi 0, %s58
    %s60 = sphi 0, %s58
    %s61 = sphi 0, %s60
    %s75 = sphi 0, %s61
    %s79 = sphi 0, %s79
    %s81 = sphi 0, %s79
    %s82 = sphi 0, %s81
    %s96 = sphi 0, %s82
    %s100 = sphi 0, %s100
    %s102 = sphi 0, %s100
    %s103 = sphi 0, %s102
    %s117 = sphi 0, %s103
    %s125 = sphi 0, %s127
    %s128 = sphi 0, %s125
    %s129 = sphi 0, %s128
    %s145 = sphi 0, %s129
  $region4: #{ssi_forward.21} parent=0 // loop_header_branch
    %13 = sbr.rel (%p11) target = $region8
  $region5: #{ssi_forward.21} parent=0 // loop_body
    %s15 = ssub.s32 %s10, 1
    %s16 = ssub.s32 %s10, 2
    %s23 = sadd.s32 1, %s18
    %p24 = scmp.ge.s32.totalorder %s23, 1
    %s25 = scalar_select %p24, 0, %s23
    %s26 = sadd.s32 1, %s17
    %s27 = scalar_select %p24, %s26, %s17
    %p28 = scmp.ge.s32.totalorder %s27, 2
    %s29 = scalar_select %p28, 0, %s27
    %s30 = ssub.s32 %s17, %s29
    %s31 = ssub.s32 %s18, %s25
    %s32 = sor.u32 %s30, %s31
    %p33 = scmp.eq.s32.totalorder %s32, 0
    %s35 = sadd.s32 %s34, 1
    %s36 = scalar_select %p33, %s34, %s35
    %p39 = pneg %p33
    %p40 = scmp.eq.s32.totalorder %s10, 1
    %p41 = por %p39, %p40
    %p42 = scmp.ne.s32.totalorder %s34, %s37
    %p43 = scmp.eq.s32.totalorder %s10, 0
    %p44 = por %p42, %p43
    %p45 = scmp.ne.s32.totalorder %s34, %s37
    %p46 = scmp.eq.s32.totalorder %s15, 1
    %p47 = por %p45, %p46
    %p48 = scmp.ne.s32.totalorder %s37, %s38
    %p49 = scmp.eq.s32.totalorder %s15, 0
    %p50 = por %p48, %p49
    %p51 = scmp.ne.s32.totalorder %s37, %s38
    %p52 = scmp.eq.s32.totalorder %s16, 1
    %p53 = por %p51, %p52
    %p55 = scmp.ne.s32.totalorder %s38, %s54
    %p56 = scmp.eq.s32.totalorder %s16, 0
    %p57 = por %p55, %p56
    %s59 = sadd.s32 %s58, 1
    %p62 = scmp.eq.s32.totalorder %s10, 1
    %p63 = scmp.ne.s32.totalorder %s58, %s60
    %p64 = scmp.eq.s32.totalorder %s10, 0
    %p65 = por %p63, %p64
    %p66 = scmp.ne.s32.totalorder %s58, %s60
    %p67 = scmp.eq.s32.totalorder %s15, 1
    %p68 = por %p66, %p67
    %p69 = scmp.ne.s32.totalorder %s60, %s61
    %p70 = scmp.eq.s32.totalorder %s15, 0
    %p71 = por %p69, %p70
    %p72 = scmp.ne.s32.totalorder %s60, %s61
    %p73 = scmp.eq.s32.totalorder %s16, 1
    %p74 = por %p72, %p73
    %p76 = scmp.ne.s32.totalorder %s61, %s75
    %p77 = scmp.eq.s32.totalorder %s16, 0
    %p78 = por %p76, %p77
    %s80 = sadd.s32 %s79, 1
    %p83 = scmp.eq.s32.totalorder %s10, 1
    %p84 = scmp.ne.s32.totalorder %s79, %s81
    %p85 = scmp.eq.s32.totalorder %s10, 0
    %p86 = por %p84, %p85
    %p87 = scmp.ne.s32.totalorder %s79, %s81
    %p88 = scmp.eq.s32.totalorder %s15, 1
    %p89 = por %p87, %p88
    %p90 = scmp.ne.s32.totalorder %s81, %s82
    %p91 = scmp.eq.s32.totalorder %s15, 0
    %p92 = por %p90, %p91
    %p93 = scmp.ne.s32.totalorder %s81, %s82
    %p94 = scmp.eq.s32.totalorder %s16, 1
    %p95 = por %p93, %p94
    %p97 = scmp.ne.s32.totalorder %s82, %s96
    %p98 = scmp.eq.s32.totalorder %s16, 0
    %p99 = por %p97, %p98
    %s101 = sadd.s32 %s100, 1
    %p104 = scmp.eq.s32.totalorder %s10, 1
    %p105 = scmp.ne.s32.totalorder %s100, %s102
    %p106 = scmp.eq.s32.totalorder %s10, 0
    %p107 = por %p105, %p106
    %p108 = scmp.ne.s32.totalorder %s100, %s102
    %p109 = scmp.eq.s32.totalorder %s15, 1
    %p110 = por %p108, %p109
    %p111 = scmp.ne.s32.totalorder %s102, %s103
    %p112 = scmp.eq.s32.totalorder %s15, 0
    %p113 = por %p111, %p112
    %p114 = scmp.ne.s32.totalorder %s102, %s103
    %p115 = scmp.eq.s32.totalorder %s16, 1
    %p116 = por %p114, %p115
    %p118 = scmp.ne.s32.totalorder %s103, %s117
    %p119 = scmp.eq.s32.totalorder %s16, 0
    %p120 = por %p118, %p119
    %s121 = ssub.s32 %s17, %s29
    %s122 = ssub.s32 %s18, %s25
    %s123 = sor.u32 %s121, %s122
    %p124 = scmp.eq.s32.totalorder %s123, 0
    %s126 = sadd.s32 %s125, 1
    %s127 = scalar_select %p124, %s125, %s126
    %p130 = pneg %p124
    %p131 = scmp.eq.s32.totalorder %s10, 1
    %p132 = por %p130, %p131
    %p133 = scmp.ne.s32.totalorder %s125, %s128
    %p134 = scmp.eq.s32.totalorder %s10, 0
    %p135 = por %p133, %p134
    %p136 = scmp.ne.s32.totalorder %s125, %s128
    %p137 = scmp.eq.s32.totalorder %s15, 1
    %p138 = por %p136, %p137
    %p139 = scmp.ne.s32.totalorder %s128, %s129
    %p140 = scmp.eq.s32.totalorder %s15, 0
    %p141 = por %p139, %p140
    %p142 = scmp.ne.s32.totalorder %s128, %s129
    %p143 = scmp.eq.s32.totalorder %s16, 1
    %p144 = por %p142, %p143
    %p146 = scmp.ne.s32.totalorder %s129, %s145
    %p147 = scmp.eq.s32.totalorder %s16, 0
    %p148 = por %p146, %p147
    %p149 = scmp.le.s32.totalorder 1, %s10
    %p150 = scmp.lt.s32.totalorder %s10, 3
    %p151 = pnand %p149, %p150
    %p152 = pneg %p151
    // Predicated region
    $region9: #{ssi_forward.21} parent=5 // pred_check
      _
    $region10: #{ssi_forward.21} parent=5 // pred_check_branch
      %154 = sbr.rel (%p151) target = $region12
    $region11: #{ssi_forward.21} parent=5 // pred_region
      %s155 = ssub.s32 %s10, 1
      // Predicated region
      $region13: #{ssi_forward.21} parent=11 // pred_check
        %p156 = pneg %p71
      $region14: #{ssi_forward.21} parent=11 // pred_check_branch
        %158 = sbr.rel (%p156) target = $region16
      $region15: #{ssi_forward.21} parent=11 // pred_region
        _
      $region16: #{ssi_forward.21} parent=11 // pred_fallthru
        _
      // Predicated region
      $region17: #{ssi_forward.21} parent=11 // pred_check
        %p159 = pneg %p92
      $region18: #{ssi_forward.21} parent=11 // pred_check_branch
        %161 = sbr.rel (%p159) target = $region20
      $region19: #{ssi_forward.21} parent=11 // pred_region
        _
      $region20: #{ssi_forward.21} parent=11 // pred_fallthru
        _
      // Predicated region
      $region21: #{ssi_forward.21} parent=11 // pred_check
        %p162 = pneg %p113
      $region22: #{ssi_forward.21} parent=11 // pred_check_branch
        %164 = sbr.rel (%p162) target = $region24
      $region23: #{ssi_forward.21} parent=11 // pred_region
        _
      $region24: #{ssi_forward.21} parent=11 // pred_fallthru
        _
    $region12: #{ssi_forward.21} parent=5 // pred_fallthru
      _
    %p165 = scmp.lt.s32.totalorder %s10, 2
    // Predicated region
    $region25: #{ssi_forward.21} parent=5 // pred_check
      %p166 = pneg %p165
    $region26: #{ssi_forward.21} parent=5 // pred_check_branch
      %168 = sbr.rel (%p166) target = $region28
    $region27: #{ssi_forward.21} parent=5 // pred_region
      // Predicated region
      $region29: #{ssi_forward.21} parent=27 // pred_check
        %p169 = pneg %p44
      $region30: #{ssi_forward.21} parent=27 // pred_check_branch
        %171 = sbr.rel (%p169) target = $region32
      $region31: #{ssi_forward.21} parent=27 // pred_region
        %s172 = smul.u32 2, %s18
        %p173 = scmp.lt.s32.totalorder %s17, 1
        %s174 = scalar_select %p173, %s17, 1
        %p175 = scmp.lt.s32.totalorder %s172, 1
        %s176 = scalar_select %p175, %s172, 1
        %s177 = smul.addr %s174, 2
        %s178 = sadd.s32 %s176, %s177
        %s179 = smul.addr %s178, 4
        %s180 = scalar_lea.vmem %s0, %s179
        %s181 = smul.u32 2, %s18
      $region32: #{ssi_forward.21} parent=27 // pred_fallthru
        _
    $region28: #{ssi_forward.21} parent=5 // pred_fallthru
      _
    %p182 = scmp.le.s32.totalorder 1, %s10
    %p183 = scmp.lt.s32.totalorder %s10, 3
    %p184 = pnand %p182, %p183
    %p185 = pneg %p184
    // Predicated region
    $region33: #{ssi_forward.21} parent=5 // pred_check
      _
    $region34: #{ssi_forward.21} parent=5 // pred_check_branch
      %187 = sbr.rel (%p184) target = $region36
    $region35: #{ssi_forward.21} parent=5 // pred_region
      %s188 = ssub.s32 %s10, 1
      %s189 = smul.u32 2, %s20
      %p190 = scmp.lt.s32.totalorder %s19, 1
      %s191 = scalar_select %p190, %s19, 1
      %p192 = scmp.lt.s32.totalorder %s189, 1
      %s193 = scalar_select %p192, %s189, 1
      %s194 = smul.addr %s191, 2
      %s195 = sadd.s32 %s193, %s194
      %s196 = smul.addr %s195, 4
      %s197 = scalar_lea.vmem %s0, %s196
      %p198 = pneg %p50
      %p199 = pneg %p47
      %p200 = pneg %p71
      %p201 = pneg %p68
      %p202 = pneg %p92
      %p203 = pneg %p89
      %p204 = pneg %p113
      %p205 = pneg %p110
      %p206 = pneg %p141
      %p207 = pneg %p138
      %s208 = smul.u32 2, %s20
      %p209 = scmp.lt.s32.totalorder %s19, 1
      %s210 = scalar_select %p209, %s19, 1
      %p211 = scmp.lt.s32.totalorder %s208, 1
      %s212 = scalar_select %p211, %s208, 1
      %s213 = smul.addr %s210, 2
      %s214 = sadd.s32 %s212, %s213
      %s215 = smul.addr %s214, 8
      %s216 = scalar_lea.vmem %s4, %s215
      %s217 = smul.u32 2, %s20
      %p218 = scmp.lt.s32.totalorder %s19, 1
      %s219 = scalar_select %p218, %s19, 1
      %p220 = scmp.lt.s32.totalorder %s217, 1
      %s221 = scalar_select %p220, %s217, 1
      %s222 = smul.addr %s219, 2
      %s223 = sadd.s32 %s221, %s222
      %s224 = smul.addr %s223, 4
      %s225 = scalar_lea.vmem %s0, %s224
      %s226 = smul.u32 2, %s20
      %s227 = smul.u32 2, %s20
      %p228 = scmp.lt.s32.totalorder %s19, 1
      %s229 = scalar_select %p228, %s19, 1
      %p230 = scmp.lt.s32.totalorder %s227, 1
      %s231 = scalar_select %p230, %s227, 1
      %s232 = smul.addr %s229, 2
      %s233 = sadd.s32 %s231, %s232
      %s234 = smul.addr %s233, 8
      %s235 = scalar_lea.vmem %s4, %s234
      %s236 = smul.u32 2, %s20
      %v238 = vld [vmem:[%s1] sm:$0xf]
      %v239 = vld [vmem:[%s225] sm:$0xff]
      %v241 = vunpack.c.l.b16 %v239
      %v242 = vunpack.c.h.b16 %v239
      %v243 = vpack.c.b16 %v241, %v241
      %v244 = vpack.c.b16 %v242, %v242
      %vm245 = vcmask 64512
      %v247 = vsel %vm245, %v238, 0
      %vm249 = vcmask 1043456
      %v251 = vsel %vm249, %v243, 0
      %v254 = vsel %vm249, %v244, 0
      %256 = vmatprep.subr.bf16.mxu0 %v254
      %257 = vmatpush1.bf16.msra.mxu0 %v251
      %258 = vmatprep.subr.bf16.mxu0 0
      %259 = vmatpush1.bf16.msra.mxu0 0
      %260 = vmatprep.subr.bf16.mxu0 0
      %261 = vmatpush1.bf16.msra.mxu0 0
      %262 = vmatprep.subr.bf16.mxu0 0
      %263 = vmatpush1.bf16.msra.mxu0 0
      %264 = vmatprep.subr.bf16.mxu0 0
      %265 = vmatpush1.bf16.msra.mxu0 0
      %266 = vmatprep.subr.bf16.mxu0 0
      %267 = vmatpush1.bf16.msra.mxu0 0
      %268 = vmatprep.subr.bf16.mxu0 0
      %269 = vmatpush1.bf16.msra.mxu0 0
      %270 = vmatprep.subr.bf16.mxu0 0
      %271 = vmatpush1.bf16.msra.mxu0 0
      %272 = vmatprep.subr.bf16.mxu0 0
      %273 = vmatpush1.bf16.msra.mxu0 0
      %274 = vmatprep.subr.bf16.mxu0 0
      %275 = vmatpush1.bf16.msra.mxu0 0
      %276 = vmatprep.subr.bf16.mxu0 0
      %277 = vmatpush1.bf16.msra.mxu0 0
      %278 = vmatprep.subr.bf16.mxu0 0
      %279 = vmatpush1.bf16.msra.mxu0 0
      %280 = vmatprep.subr.bf16.mxu0 0
      %281 = vmatpush1.bf16.msra.mxu0 0
      %282 = vmatprep.subr.bf16.mxu0 0
      %283 = vmatpush1.bf16.msra.mxu0 0
      %284 = vmatprep.subr.bf16.mxu0 0
      %285 = vmatpush1.bf16.msra.mxu0 0
      %286 = vmatprep.subr.bf16.mxu0 0
      %287 = vmatpush1.bf16.msra.mxu0 0
      %288 = vmatprep.mubr.bf16.mxu0 0
      %289 = vmatmul.mubr.bf16.gmra.mrb[0].mxu0 %v247
      %v290 = vpop.f32.mrb[0].mxu0
      %v291 = vadd.f32 0.0, %v290
      %v292 = vpop.f32.mrb[0].mxu0
      %v293 = vadd.f32 0.0, %v292
      %v294 = vpop.f32.mrb[0].mxu0
      %v295 = vpop.f32.mrb[0].mxu0
      %296 = vdwg.mxu0
      %v297 = vld [vmem:[%s2] sm:$0xff]
      %299 = vset.pattern.permute.xlu0 0
      %300 = vperm.xlu0 %299, %v297
      %v301 = vpop.permute.xlu0 %300
      %v303 = vmul.f32 %v291, %v301
      %v304 = vmul.f32 %v293, %v301
      %v305 = vld [vmem:[%s3] sm:$0xff]
      %307 = vset.pattern.permute.xlu0 0
      %308 = vperm.xlu0 %307, %v305
      %v309 = vpop.permute.xlu0 %308
      %v311 = vadd.f32 %v303, %v309
      %v312 = vadd.f32 %v304, %v309
      %s313 = smul.u32 %s20, 256
      %v314 = vlaneseq
      %v315 = vand.u32 %v314, 127
      %v316 = vadd.s32 %v315, 128
      %v317 = vstv %s313
      %v318 = vadd.s32 %v317, %v315
      %v319 = vadd.s32 %v317, %v316
      %vm320 = vcmp.lt.s32.totalorder %v318, 144
      %vm321 = vcmp.lt.s32.totalorder %v319, 144
      %v322 = vsel %vm320, %v311, 0.0
      %v323 = vsel %vm321, %v312, 0.0
      %324 = vst [vmem:[%s235] sm:$0xff] %v322
      %325 = vst [vmem:[%s235 + $0x8] sm:$0xff] %v323
      %s326 = smul.u32 2, %s20
      %p327 = scmp.lt.s32.totalorder %s19, 1
      %s328 = scalar_select %p327, %s19, 1
      %p329 = scmp.lt.s32.totalorder %s326, 1
      %s330 = scalar_select %p329, %s326, 1
      %s331 = smul.addr %s328, 2
      %s332 = sadd.s32 %s330, %s331
      %s333 = smul.addr %s332, 8
      %s334 = scalar_lea.vmem %s4, %s333
      // Predicated region
      $region37: #{ssi_forward.21} parent=35 // pred_check
        %p335 = pneg %p138
      $region38: #{ssi_forward.21} parent=35 // pred_check_branch
        %337 = sbr.rel (%p335) target = $region40
      $region39: #{ssi_forward.21} parent=35 // pred_region
        %s338 = smul.u32 2, %s20
      $region40: #{ssi_forward.21} parent=35 // pred_fallthru
        _
    $region36: #{ssi_forward.21} parent=5 // pred_fallthru
      _
    %p339 = scmp.le.s32.totalorder 2, %s10
    // Predicated region
    $region41: #{ssi_forward.21} parent=5 // pred_check
      %p340 = pneg %p339
    $region42: #{ssi_forward.21} parent=5 // pred_check_branch
      %342 = sbr.rel (%p340) target = $region44
    $region43: #{ssi_forward.21} parent=5 // pred_region
      %s343 = ssub.s32 %s10, 2
      // Predicated region
      $region45: #{ssi_forward.21} parent=43 // pred_check
        %p344 = pneg %p144
      $region46: #{ssi_forward.21} parent=43 // pred_check_branch
        %346 = sbr.rel (%p344) target = $region48
      $region47: #{ssi_forward.21} parent=43 // pred_region
        %s347 = smul.u32 2, %s22
        %p348 = scmp.lt.s32.totalorder %s21, 1
        %s349 = scalar_select %p348, %s21, 1
        %p350 = scmp.lt.s32.totalorder %s347, 1
        %s351 = scalar_select %p350, %s347, 1
        %s352 = smul.addr %s349, 2
        %s353 = sadd.s32 %s351, %s352
        %s354 = smul.addr %s353, 8
        %s355 = scalar_lea.vmem %s4, %s354
      $region48: #{ssi_forward.21} parent=43 // pred_fallthru
        _
    $region44: #{ssi_forward.21} parent=5 // pred_fallthru
      _
  $region6: #{ssi_forward.21} parent=0 // loop_footer
    %s14 = sadd.s32 1, %s10
  $region7: #{ssi_forward.21} parent=0 // loop_footer_branch
    %9 = sbr.rel target = $region3
  $region8: #{ssi_forward.21} parent=0 // loop_exit
    _

// kernel: ssi_forward.18
$region0: #{ssi_forward.18}
  #allocation0 [shape = 'u32[]', space=smem, size = 0x4, offset = 0x4, fixed_abs, tag = 'smem constant byte address 0x4 - core index']
  #allocation1 [shape = 'u32[144,128]{1,0:T(1,128)}', space=vmem, size = 0x12000, scoped, tag = 'internal scratch']
  %s0 = inlined_call_operand.vmem [shape: bf16[16,16], index: 0, kind: input, shape index: {}]
  %s1 = inlined_call_operand.vmem [shape: bf16[16,2048], index: 1, kind: input, shape index: {}]
  %s2 = inlined_call_operand.vmem [shape: bf16[16,2048], index: 2, kind: output, shape index: {}]
  %s3 = sld [smem:[#allocation0]]
  $region18: #{ssi_forward.18} parent=0
    _
  %s5 = ssub.s32 1, %s3
  %s6 = scalar_select 0, %s5, %s3
  // Predicated region
  $region2: #{ssi_forward.18} parent=0 // pred_check
    _
  $region3: #{ssi_forward.18} parent=0 // pred_check_branch
    %8 = sbr.rel (0) target = $region5
  $region4: #{ssi_forward.18} parent=0 // pred_region
    _
  $region5: #{ssi_forward.18} parent=0 // pred_fallthru
    _
  // Predicated region
  $region6: #{ssi_forward.18} parent=0 // pred_check
    _
  $region7: #{ssi_forward.18} parent=0 // pred_check_branch
    %10 = sbr.rel (0) target = $region9
  $region8: #{ssi_forward.18} parent=0 // pred_region
    _
  $region9: #{ssi_forward.18} parent=0 // pred_fallthru
    _
  %v12 = vld [vmem:[%s0] sm:$0xf]
  %v13 = vld [vmem:[%s0 + $0x4] sm:$0xf]
  %v14 = vld [vmem:[%s1] sm:$0xff]
  %v15 = vld [vmem:[%s1 + $0x8] sm:$0xff]
  %v16 = vld [vmem:[%s1 + $0x10] sm:$0xff]
  %v17 = vld [vmem:[%s1 + $0x18] sm:$0xff]
  %v18 = vld [vmem:[%s1 + $0x20] sm:$0xff]
  %v19 = vld [vmem:[%s1 + $0x28] sm:$0xff]
  %v20 = vld [vmem:[%s1 + $0x30] sm:$0xff]
  %v21 = vld [vmem:[%s1 + $0x38] sm:$0xff]
  %v22 = vld [vmem:[%s1 + $0x40] sm:$0xff]
  %v23 = vld [vmem:[%s1 + $0x48] sm:$0xff]
  %v24 = vld [vmem:[%s1 + $0x50] sm:$0xff]
  %v25 = vld [vmem:[%s1 + $0x58] sm:$0xff]
  %v26 = vld [vmem:[%s1 + $0x60] sm:$0xff]
  %v27 = vld [vmem:[%s1 + $0x68] sm:$0xff]
  %v28 = vld [vmem:[%s1 + $0x70] sm:$0xff]
  %v29 = vld [vmem:[%s1 + $0x78] sm:$0xff]
  %v32 = vunpack.c.l.b16 %v12
  %v33 = vunpack.c.l.b16 %v13
  %v34 = vpack.c.b16 %v33, %v32
  %v51 = vunpack.c.l.b16 %v14
  %v52 = vunpack.c.h.b16 %v14
  %v53 = vunpack.c.l.b16 %v15
  %v54 = vunpack.c.h.b16 %v15
  %v55 = vunpack.c.l.b16 %v16
  %v56 = vunpack.c.h.b16 %v16
  %v57 = vunpack.c.l.b16 %v17
  %v58 = vunpack.c.h.b16 %v17
  %v59 = vunpack.c.l.b16 %v18
  %v60 = vunpack.c.h.b16 %v18
  %v61 = vunpack.c.l.b16 %v19
  %v62 = vunpack.c.h.b16 %v19
  %v63 = vunpack.c.l.b16 %v20
  %v64 = vunpack.c.h.b16 %v20
  %v65 = vunpack.c.l.b16 %v21
  %v66 = vunpack.c.h.b16 %v21
  %v67 = vunpack.c.l.b16 %v22
  %v68 = vunpack.c.h.b16 %v22
  %v69 = vunpack.c.l.b16 %v23
  %v70 = vunpack.c.h.b16 %v23
  %v71 = vunpack.c.l.b16 %v24
  %v72 = vunpack.c.h.b16 %v24
  %v73 = vunpack.c.l.b16 %v25
  %v74 = vunpack.c.h.b16 %v25
  %v75 = vunpack.c.l.b16 %v26
  %v76 = vunpack.c.h.b16 %v26
  %v77 = vunpack.c.l.b16 %v27
  %v78 = vunpack.c.h.b16 %v27
  %v79 = vunpack.c.l.b16 %v28
  %v80 = vunpack.c.h.b16 %v28
  %v81 = vunpack.c.l.b16 %v29
  %v82 = vunpack.c.h.b16 %v29
  %v83 = vpack.c.b16 %v67, %v51
  %v84 = vpack.c.b16 %v68, %v52
  %v85 = vpack.c.b16 %v69, %v53
  %v86 = vpack.c.b16 %v70, %v54
  %v87 = vpack.c.b16 %v71, %v55
  %v88 = vpack.c.b16 %v72, %v56
  %v89 = vpack.c.b16 %v73, %v57
  %v90 = vpack.c.b16 %v74, %v58
  %v91 = vpack.c.b16 %v75, %v59
  %v92 = vpack.c.b16 %v76, %v60
  %v93 = vpack.c.b16 %v77, %v61
  %v94 = vpack.c.b16 %v78, %v62
  %v95 = vpack.c.b16 %v79, %v63
  %v96 = vpack.c.b16 %v80, %v64
  %v97 = vpack.c.b16 %v81, %v65
  %v98 = vpack.c.b16 %v82, %v66
  %vm115 = vcmask 130048
  %v117 = vsel %vm115, %v34, 0
  %119 = vmatprep.subr.bf16.mxu0 %v84
  %120 = vmatpush1.bf16.msra.mxu0 %v83
  %121 = vmatprep.subr.bf16.mxu0 0
  %122 = vmatpush1.bf16.msra.mxu0 0
  %123 = vmatprep.subr.bf16.mxu0 0
  %124 = vmatpush1.bf16.msra.mxu0 0
  %125 = vmatprep.subr.bf16.mxu0 0
  %126 = vmatpush1.bf16.msra.mxu0 0
  %127 = vmatprep.subr.bf16.mxu0 0
  %128 = vmatpush1.bf16.msra.mxu0 0
  %129 = vmatprep.subr.bf16.mxu0 0
  %130 = vmatpush1.bf16.msra.mxu0 0
  %131 = vmatprep.subr.bf16.mxu0 0
  %132 = vmatpush1.bf16.msra.mxu0 0
  %133 = vmatprep.subr.bf16.mxu0 0
  %134 = vmatpush1.bf16.msra.mxu0 0
  %135 = vmatprep.subr.bf16.mxu0 0
  %136 = vmatpush1.bf16.msra.mxu0 0
  %137 = vmatprep.subr.bf16.mxu0 0
  %138 = vmatpush1.bf16.msra.mxu0 0
  %139 = vmatprep.subr.bf16.mxu0 0
  %140 = vmatpush1.bf16.msra.mxu0 0
  %141 = vmatprep.subr.bf16.mxu0 0
  %142 = vmatpush1.bf16.msra.mxu0 0
  %143 = vmatprep.subr.bf16.mxu0 0
  %144 = vmatpush1.bf16.msra.mxu0 0
  %145 = vmatprep.subr.bf16.mxu0 0
  %146 = vmatpush1.bf16.msra.mxu0 0
  %147 = vmatprep.subr.bf16.mxu0 0
  %148 = vmatpush1.bf16.msra.mxu0 0
  %149 = vmatprep.subr.bf16.mxu0 0
  %150 = vmatpush1.bf16.msra.mxu0 0
  %151 = vmatprep.mubr.bf16.mxu0 0
  %152 = vmatmul.mubr.bf16.gmra.mrb[0].mxu0 %v117
  %v153 = vpop.f32.mrb[0].mxu0
  %v154 = vadd.f32 0.0, %v153
  %v155 = vpop.f32.mrb[0].mxu0
  %v156 = vadd.f32 0.0, %v155
  %v157 = vpop.f32.mrb[0].mxu0
  %v158 = vadd.f32 0.0, %v157
  %v159 = vpop.f32.mrb[0].mxu0
  %v160 = vadd.f32 0.0, %v159
  %161 = vdwg.mxu0
  %162 = vmatprep.subr.bf16.mxu0 %v86
  %163 = vmatpush1.bf16.msra.mxu0 %v85
  %164 = vmatprep.subr.bf16.mxu0 0
  %165 = vmatpush1.bf16.msra.mxu0 0
  %166 = vmatprep.subr.bf16.mxu0 0
  %167 = vmatpush1.bf16.msra.mxu0 0
  %168 = vmatprep.subr.bf16.mxu0 0
  %169 = vmatpush1.bf16.msra.mxu0 0
  %170 = vmatprep.subr.bf16.mxu0 0
  %171 = vmatpush1.bf16.msra.mxu0 0
  %172 = vmatprep.subr.bf16.mxu0 0
  %173 = vmatpush1.bf16.msra.mxu0 0
  %174 = vmatprep.subr.bf16.mxu0 0
  %175 = vmatpush1.bf16.msra.mxu0 0
  %176 = vmatprep.subr.bf16.mxu0 0
  %177 = vmatpush1.bf16.msra.mxu0 0
  %178 = vmatprep.subr.bf16.mxu0 0
  %179 = vmatpush1.bf16.msra.mxu0 0
  %180 = vmatprep.subr.bf16.mxu0 0
  %181 = vmatpush1.bf16.msra.mxu0 0
  %182 = vmatprep.subr.bf16.mxu0 0
  %183 = vmatpush1.bf16.msra.mxu0 0
  %184 = vmatprep.subr.bf16.mxu0 0
  %185 = vmatpush1.bf16.msra.mxu0 0
  %186 = vmatprep.subr.bf16.mxu0 0
  %187 = vmatpush1.bf16.msra.mxu0 0
  %188 = vmatprep.subr.bf16.mxu0 0
  %189 = vmatpush1.bf16.msra.mxu0 0
  %190 = vmatprep.subr.bf16.mxu0 0
  %191 = vmatpush1.bf16.msra.mxu0 0
  %192 = vmatprep.subr.bf16.mxu0 0
  %193 = vmatpush1.bf16.msra.mxu0 0
  %194 = vmatprep.mubr.bf16.mxu0 0
  %195 = vmatmul.mubr.bf16.gmra.mrb[0].mxu0 %v117
  %v196 = vpop.f32.mrb[0].mxu0
  %v197 = vadd.f32 0.0, %v196
  %v198 = vpop.f32.mrb[0].mxu0
  %v199 = vadd.f32 0.0, %v198
  %v200 = vpop.f32.mrb[0].mxu0
  %v201 = vadd.f32 0.0, %v200
  %v202 = vpop.f32.mrb[0].mxu0
  %v203 = vadd.f32 0.0, %v202
  %204 = vdwg.mxu0
  %205 = vmatprep.subr.bf16.mxu0 %v88
  %206 = vmatpush1.bf16.msra.mxu0 %v87
  %207 = vmatprep.subr.bf16.mxu0 0
  %208 = vmatpush1.bf16.msra.mxu0 0
  %209 = vmatprep.subr.bf16.mxu0 0
  %210 = vmatpush1.bf16.msra.mxu0 0
  %211 = vmatprep.subr.bf16.mxu0 0
  %212 = vmatpush1.bf16.msra.mxu0 0
  %213 = vmatprep.subr.bf16.mxu0 0
  %214 = vmatpush1.bf16.msra.mxu0 0
  %215 = vmatprep.subr.bf16.mxu0 0
  %216 = vmatpush1.bf16.msra.mxu0 0
  %217 = vmatprep.subr.bf16.mxu0 0
  %218 = vmatpush1.bf16.msra.mxu0 0
  %219 = vmatprep.subr.bf16.mxu0 0
  %220 = vmatpush1.bf16.msra.mxu0 0
  %221 = vmatprep.subr.bf16.mxu0 0
  %222 = vmatpush1.bf16.msra.mxu0 0
  %223 = vmatprep.subr.bf16.mxu0 0
  %224 = vmatpush1.bf16.msra.mxu0 0
  %225 = vmatprep.subr.bf16.mxu0 0
  %226 = vmatpush1.bf16.msra.mxu0 0
  %227 = vmatprep.subr.bf16.mxu0 0
  %228 = vmatpush1.bf16.msra.mxu0 0
  %229 = vmatprep.subr.bf16.mxu0 0
  %230 = vmatpush1.bf16.msra.mxu0 0
  %231 = vmatprep.subr.bf16.mxu0 0
  %232 = vmatpush1.bf16.msra.mxu0 0
  %233 = vmatprep.subr.bf16.mxu0 0
  %234 = vmatpush1.bf16.msra.mxu0 0
  %235 = vmatprep.subr.bf16.mxu0 0
  %236 = vmatpush1.bf16.msra.mxu0 0
  %237 = vmatprep.mubr.bf16.mxu0 0
  %238 = vmatmul.mubr.bf16.gmra.mrb[0].mxu0 %v117
  %v239 = vpop.f32.mrb[0].mxu0
  %v240 = vadd.f32 0.0, %v239
  %v241 = vpop.f32.mrb[0].mxu0
  %v242 = vadd.f32 0.0, %v241
  %v243 = vpop.f32.mrb[0].mxu0
  %v244 = vadd.f32 0.0, %v243
  %v245 = vpop.f32.mrb[0].mxu0
  %v246 = vadd.f32 0.0, %v245
  %247 = vdwg.mxu0
  %248 = vmatprep.subr.bf16.mxu0 %v90
  %249 = vmatpush1.bf16.msra.mxu0 %v89
  %250 = vmatprep.subr.bf16.mxu0 0
  %251 = vmatpush1.bf16.msra.mxu0 0
  %252 = vmatprep.subr.bf16.mxu0 0
  %253 = vmatpush1.bf16.msra.mxu0 0
  %254 = vmatprep.subr.bf16.mxu0 0
  %255 = vmatpush1.bf16.msra.mxu0 0
  %256 = vmatprep.subr.bf16.mxu0 0
  %257 = vmatpush1.bf16.msra.mxu0 0
  %258 = vmatprep.subr.bf16.mxu0 0
  %259 = vmatpush1.bf16.msra.mxu0 0
  %260 = vmatprep.subr.bf16.mxu0 0
  %261 = vmatpush1.bf16.msra.mxu0 0
  %262 = vmatprep.subr.bf16.mxu0 0
  %263 = vmatpush1.bf16.msra.mxu0 0
  %264 = vmatprep.subr.bf16.mxu0 0
  %265 = vmatpush1.bf16.msra.mxu0 0
  %266 = vmatprep.subr.bf16.mxu0 0
  %267 = vmatpush1.bf16.msra.mxu0 0
  %268 = vmatprep.subr.bf16.mxu0 0
  %269 = vmatpush1.bf16.msra.mxu0 0
  %270 = vmatprep.subr.bf16.mxu0 0
  %271 = vmatpush1.bf16.msra.mxu0 0
  %272 = vmatprep.subr.bf16.mxu0 0
  %273 = vmatpush1.bf16.msra.mxu0 0
  %274 = vmatprep.subr.bf16.mxu0 0
  %275 = vmatpush1.bf16.msra.mxu0 0
  %276 = vmatprep.subr.bf16.mxu0 0
  %277 = vmatpush1.bf16.msra.mxu0 0
  %278 = vmatprep.subr.bf16.mxu0 0
  %279 = vmatpush1.bf16.msra.mxu0 0
  %280 = vmatprep.mubr.bf16.mxu0 0
  %281 = vmatmul.mubr.bf16.gmra.mrb[0].mxu0 %v117
  %v282 = vpop.f32.mrb[0].mxu0
  %v283 = vadd.f32 0.0, %v282
  %v284 = vpop.f32.mrb[0].mxu0
  %v285 = vadd.f32 0.0, %v284
  %v286 = vpop.f32.mrb[0].mxu0
  %v287 = vadd.f32 0.0, %v286
  %v288 = vpop.f32.mrb[0].mxu0
  %v289 = vadd.f32 0.0, %v288
  %290 = vdwg.mxu0
  %291 = vmatprep.subr.bf16.mxu0 %v92
  %292 = vmatpush1.bf16.msra.mxu0 %v91
  %293 = vmatprep.subr.bf16.mxu0 0
  %294 = vmatpush1.bf16.msra.mxu0 0
  %295 = vmatprep.subr.bf16.mxu0 0
  %296 = vmatpush1.bf16.msra.mxu0 0
  %297 = vmatprep.subr.bf16.mxu0 0
  %298 = vmatpush1.bf16.msra.mxu0 0
  %299 = vmatprep.subr.bf16.mxu0 0
  %300 = vmatpush1.bf16.msra.mxu0 0
  %301 = vmatprep.subr.bf16.mxu0 0
  %302 = vmatpush1.bf16.msra.mxu0 0
  %303 = vmatprep.subr.bf16.mxu0 0
  %304 = vmatpush1.bf16.msra.mxu0 0
  %305 = vmatprep.subr.bf16.mxu0 0
  %306 = vmatpush1.bf16.msra.mxu0 0
  %307 = vmatprep.subr.bf16.mxu0 0
  %308 = vmatpush1.bf16.msra.mxu0 0
  %309 = vmatprep.subr.bf16.mxu0 0
  %310 = vmatpush1.bf16.msra.mxu0 0
  %311 = vmatprep.subr.bf16.mxu0 0
  %312 = vmatpush1.bf16.msra.mxu0 0
  %313 = vmatprep.subr.bf16.mxu0 0
  %314 = vmatpush1.bf16.msra.mxu0 0
  %315 = vmatprep.subr.bf16.mxu0 0
  %316 = vmatpush1.bf16.msra.mxu0 0
  %317 = vmatprep.subr.bf16.mxu0 0
  %318 = vmatpush1.bf16.msra.mxu0 0
  %319 = vmatprep.subr.bf16.mxu0 0
  %320 = vmatpush1.bf16.msra.mxu0 0
  %321 = vmatprep.subr.bf16.mxu0 0
  %322 = vmatpush1.bf16.msra.mxu0 0
  %323 = vmatprep.mubr.bf16.mxu0 0
  %324 = vmatmul.mubr.bf16.gmra.mrb[0].mxu0 %v117
  %v325 = vpop.f32.mrb[0].mxu0
  %v326 = vadd.f32 0.0, %v325
  %v327 = vpop.f32.mrb[0].mxu0
  %v328 = vadd.f32 0.0, %v327
  %v329 = vpop.f32.mrb[0].mxu0
  %v330 = vadd.f32 0.0, %v329
  %v331 = vpop.f32.mrb[0].mxu0
  %v332 = vadd.f32 0.0, %v331
  %333 = vdwg.mxu0
  %334 = vmatprep.subr.bf16.mxu0 %v94
  %335 = vmatpush1.bf16.msra.mxu0 %v93
  %336 = vmatprep.subr.bf16.mxu0 0
  %337 = vmatpush1.bf16.msra.mxu0 0
  %338 = vmatprep.subr.bf16.mxu0 0
  %339 = vmatpush1.bf16.msra.mxu0 0
  %340 = vmatprep.subr.bf16.mxu0 0
  %341 = vmatpush1.bf16.msra.mxu0 0
  %342 = vmatprep.subr.bf16.mxu0 0
  %343 = vmatpush1.bf16.msra.mxu0 0
  %344 = vmatprep.subr.bf16.mxu0 0
  %345 = vmatpush1.bf16.msra.mxu0 0
  %346 = vmatprep.subr.bf16.mxu0 0
  %347 = vmatpush1.bf16.msra.mxu0 0
  %348 = vmatprep.subr.bf16.mxu0 0
  %349 = vmatpush1.bf16.msra.mxu0 0
  %350 = vmatprep.subr.bf16.mxu0 0
  %351 = vmatpush1.bf16.msra.mxu0 0
  %352 = vmatprep.subr.bf16.mxu0 0
  %353 = vmatpush1.bf16.msra.mxu0 0
  %354 = vmatprep.subr.bf16.mxu0 0
  %355 = vmatpush1.bf16.msra.mxu0 0
  %356 = vmatprep.subr.bf16.mxu0 0
  %357 = vmatpush1.bf16.msra.mxu0 0
  %358 = vmatprep.subr.bf16.mxu0 0
  %359 = vmatpush1.bf16.msra.mxu0 0
  %360 = vmatprep.subr.bf16.mxu0 0
  %361 = vmatpush1.bf16.msra.mxu0 0
  %362 = vmatprep.subr.bf16.mxu0 0
  %363 = vmatpush1.bf16.msra.mxu0 0
  %364 = vmatprep.subr.bf16.mxu0 0
  %365 = vmatpush1.bf16.msra.mxu0 0
  %366 = vmatprep.mubr.bf16.mxu0 0
  %367 = vmatmul.mubr.bf16.gmra.mrb[0].mxu0 %v117
  %v368 = vpop.f32.mrb[0].mxu0
  %v369 = vadd.f32 0.0, %v368
  %v370 = vpop.f32.mrb[0].mxu0
  %v371 = vadd.f32 0.0, %v370
  %v372 = vpop.f32.mrb[0].mxu0
  %v373 = vadd.f32 0.0, %v372
  %v374 = vpop.f32.mrb[0].mxu0
  %v375 = vadd.f32 0.0, %v374
  %376 = vdwg.mxu0
  %377 = vmatprep.subr.bf16.mxu0 %v96
  %378 = vmatpush1.bf16.msra.mxu0 %v95
  %379 = vmatprep.subr.bf16.mxu0 0
  %380 = vmatpush1.bf16.msra.mxu0 0
  %381 = vmatprep.subr.bf16.mxu0 0
  %382 = vmatpush1.bf16.msra.mxu0 0
  %383 = vmatprep.subr.bf16.mxu0 0
  %384 = vmatpush1.bf16.msra.mxu0 0
  %385 = vmatprep.subr.bf16.mxu0 0
  %386 = vmatpush1.bf16.msra.mxu0 0
  %387 = vmatprep.subr.bf16.mxu0 0
  %388 = vmatpush1.bf16.msra.mxu0 0
  %389 = vmatprep.subr.bf16.mxu0 0
  %390 = vmatpush1.bf16.msra.mxu0 0
  %391 = vmatprep.subr.bf16.mxu0 0
  %392 = vmatpush1.bf16.msra.mxu0 0
  %393 = vmatprep.subr.bf16.mxu0 0
  %394 = vmatpush1.bf16.msra.mxu0 0
  %395 = vmatprep.subr.bf16.mxu0 0
  %396 = vmatpush1.bf16.msra.mxu0 0
  %397 = vmatprep.subr.bf16.mxu0 0
  %398 = vmatpush1.bf16.msra.mxu0 0
  %399 = vmatprep.subr.bf16.mxu0 0
  %400 = vmatpush1.bf16.msra.mxu0 0
  %401 = vmatprep.subr.bf16.mxu0 0
  %402 = vmatpush1.bf16.msra.mxu0 0
  %403 = vmatprep.subr.bf16.mxu0 0
  %404 = vmatpush1.bf16.msra.mxu0 0
  %405 = vmatprep.subr.bf16.mxu0 0
  %406 = vmatpush1.bf16.msra.mxu0 0
  %407 = vmatprep.subr.bf16.mxu0 0
  %408 = vmatpush1.bf16.msra.mxu0 0
  %409 = vmatprep.mubr.bf16.mxu0 0
  %410 = vmatmul.mubr.bf16.gmra.mrb[0].mxu0 %v117
  %v411 = vpop.f32.mrb[0].mxu0
  %v412 = vadd.f32 0.0, %v411
  %v413 = vpop.f32.mrb[0].mxu0
  %v414 = vadd.f32 0.0, %v413
  %v415 = vpop.f32.mrb[0].mxu0
  %v416 = vadd.f32 0.0, %v415
  %v417 = vpop.f32.mrb[0].mxu0
  %v418 = vadd.f32 0.0, %v417
  %419 = vdwg.mxu0
  %420 = vmatprep.subr.bf16.mxu0 %v98
  %421 = vmatpush1.bf16.msra.mxu0 %v97
  %422 = vmatprep.subr.bf16.mxu0 0
  %423 = vmatpush1.bf16.msra.mxu0 0
  %424 = vmatprep.subr.bf16.mxu0 0
  %425 = vmatpush1.bf16.msra.mxu0 0
  %426 = vmatprep.subr.bf16.mxu0 0
  %427 = vmatpush1.bf16.msra.mxu0 0
  %428 = vmatprep.subr.bf16.mxu0 0
  %429 = vmatpush1.bf16.msra.mxu0 0
  %430 = vmatprep.subr.bf16.mxu0 0
  %431 = vmatpush1.bf16.msra.mxu0 0
  %432 = vmatprep.subr.bf16.mxu0 0
  %433 = vmatpush1.bf16.msra.mxu0 0
  %434 = vmatprep.subr.bf16.mxu0 0
  %435 = vmatpush1.bf16.msra.mxu0 0
  %436 = vmatprep.subr.bf16.mxu0 0
  %437 = vmatpush1.bf16.msra.mxu0 0
  %438 = vmatprep.subr.bf16.mxu0 0
  %439 = vmatpush1.bf16.msra.mxu0 0
  %440 = vmatprep.subr.bf16.mxu0 0
  %441 = vmatpush1.bf16.msra.mxu0 0
  %442 = vmatprep.subr.bf16.mxu0 0
  %443 = vmatpush1.bf16.msra.mxu0 0
  %444 = vmatprep.subr.bf16.mxu0 0
  %445 = vmatpush1.bf16.msra.mxu0 0
  %446 = vmatprep.subr.bf16.mxu0 0
  %447 = vmatpush1.bf16.msra.mxu0 0
  %448 = vmatprep.subr.bf16.mxu0 0
  %449 = vmatpush1.bf16.msra.mxu0 0
  %450 = vmatprep.subr.bf16.mxu0 0
  %451 = vmatpush1.bf16.msra.mxu0 0
  %452 = vmatprep.mubr.bf16.mxu0 0
  %453 = vmatmul.mubr.bf16.gmra.mrb[0].mxu0 %v117
  %v454 = vpop.f32.mrb[0].mxu0
  %v455 = vadd.f32 0.0, %v454
  %v456 = vpop.f32.mrb[0].mxu0
  %v457 = vadd.f32 0.0, %v456
  %v458 = vpop.f32.mrb[0].mxu0
  %v459 = vadd.f32 0.0, %v458
  %v460 = vpop.f32.mrb[0].mxu0
  %v461 = vadd.f32 0.0, %v460
  %462 = vdwg.mxu0
  %v463 = vpack.c.bf16 %v158, %v154
  %v464 = vpack.c.bf16 %v160, %v156
  %v465 = vpack.c.bf16 %v201, %v197
  %v466 = vpack.c.bf16 %v203, %v199
  %v467 = vpack.c.bf16 %v244, %v240
  %v468 = vpack.c.bf16 %v246, %v242
  %v469 = vpack.c.bf16 %v287, %v283
  %v470 = vpack.c.bf16 %v289, %v285
  %v471 = vpack.c.bf16 %v330, %v326
  %v472 = vpack.c.bf16 %v332, %v328
  %v473 = vpack.c.bf16 %v373, %v369
  %v474 = vpack.c.bf16 %v375, %v371
  %v475 = vpack.c.bf16 %v416, %v412
  %v476 = vpack.c.bf16 %v418, %v414
  %v477 = vpack.c.bf16 %v459, %v455
  %v478 = vpack.c.bf16 %v461, %v457
  %v495 = vunpack.c.l.b16 %v463
  %v496 = vunpack.c.l.b16 %v464
  %v497 = vunpack.c.l.b16 %v465
  %v498 = vunpack.c.l.b16 %v466
  %v499 = vunpack.c.l.b16 %v467
  %v500 = vunpack.c.l.b16 %v468
  %v501 = vunpack.c.l.b16 %v469
  %v502 = vunpack.c.l.b16 %v470
  %v503 = vunpack.c.l.b16 %v471
  %v504 = vunpack.c.l.b16 %v472
  %v505 = vunpack.c.l.b16 %v473
  %v506 = vunpack.c.l.b16 %v474
  %v507 = vunpack.c.l.b16 %v475
  %v508 = vunpack.c.l.b16 %v476
  %v509 = vunpack.c.l.b16 %v477
  %v510 = vunpack.c.l.b16 %v478
  %v511 = vunpack.c.h.b16 %v463
  %v512 = vunpack.c.h.b16 %v464
  %v513 = vunpack.c.h.b16 %v465
  %v514 = vunpack.c.h.b16 %v466
  %v515 = vunpack.c.h.b16 %v467
  %v516 = vunpack.c.h.b16 %v468
  %v517 = vunpack.c.h.b16 %v469
  %v518 = vunpack.c.h.b16 %v470
  %v519 = vunpack.c.h.b16 %v471
  %v520 = vunpack.c.h.b16 %v472
  %v521 = vunpack.c.h.b16 %v473
  %v522 = vunpack.c.h.b16 %v474
  %v523 = vunpack.c.h.b16 %v475
  %v524 = vunpack.c.h.b16 %v476
  %v525 = vunpack.c.h.b16 %v477
  %v526 = vunpack.c.h.b16 %v478
  %v527 = vpack.c.b16 %v496, %v495
  %v528 = vpack.c.b16 %v498, %v497
  %v529 = vpack.c.b16 %v500, %v499
  %v530 = vpack.c.b16 %v502, %v501
  %v531 = vpack.c.b16 %v504, %v503
  %v532 = vpack.c.b16 %v506, %v505
  %v533 = vpack.c.b16 %v508, %v507
  %v534 = vpack.c.b16 %v510, %v509
  %v535 = vpack.c.b16 %v512, %v511
  %v536 = vpack.c.b16 %v514, %v513
  %v537 = vpack.c.b16 %v516, %v515
  %v538 = vpack.c.b16 %v518, %v517
  %v539 = vpack.c.b16 %v520, %v519
  %v540 = vpack.c.b16 %v522, %v521
  %v541 = vpack.c.b16 %v524, %v523
  %v542 = vpack.c.b16 %v526, %v525
  %559 = vst [vmem:[%s2] sm:$0xff] %v527
  %560 = vst [vmem:[%s2 + $0x8] sm:$0xff] %v528
  %561 = vst [vmem:[%s2 + $0x10] sm:$0xff] %v529
  %562 = vst [vmem:[%s2 + $0x18] sm:$0xff] %v530
  %563 = vst [vmem:[%s2 + $0x20] sm:$0xff] %v531
  %564 = vst [vmem:[%s2 + $0x28] sm:$0xff] %v532
  %565 = vst [vmem:[%s2 + $0x30] sm:$0xff] %v533
  %566 = vst [vmem:[%s2 + $0x38] sm:$0xff] %v534
  %567 = vst [vmem:[%s2 + $0x40] sm:$0xff] %v535
  %568 = vst [vmem:[%s2 + $0x48] sm:$0xff] %v536
  %569 = vst [vmem:[%s2 + $0x50] sm:$0xff] %v537
  %570 = vst [vmem:[%s2 + $0x58] sm:$0xff] %v538
  %571 = vst [vmem:[%s2 + $0x60] sm:$0xff] %v539
  %572 = vst [vmem:[%s2 + $0x68] sm:$0xff] %v540
  %573 = vst [vmem:[%s2 + $0x70] sm:$0xff] %v541
  %574 = vst [vmem:[%s2 + $0x78] sm:$0xff] %v542
  // Predicated region
  $region10: #{ssi_forward.18} parent=0 // pred_check
    _
  $region11: #{ssi_forward.18} parent=0 // pred_check_branch
    %576 = sbr.rel (0) target = $region13
  $region12: #{ssi_forward.18} parent=0 // pred_region
    _
  $region13: #{ssi_forward.18} parent=0 // pred_fallthru
    _
  // Predicated region
  $region14: #{ssi_forward.18} parent=0 // pred_check
    _
  $region15: #{ssi_forward.18} parent=0 // pred_check_branch
    %578 = sbr.rel (0) target = $region17
  $region16: #{ssi_forward.18} parent=0 // pred_region
    _
  $region17: #{ssi_forward.18} parent=0 // pred_fallthru
    _

</llo_original>
